<compile_context>
chip_gen: v5e
topology: v5e:2x2
jax: 0.10.0
libtpu: 0.0.40
codegen_flags: <defaults>
</compile_context>

<pallas_src>
import functools

import jax
import jax.numpy as jnp
import numpy as np
from jax.experimental import pallas as pl
from jax.experimental.pallas import tpu as pltpu

# ------------------------- scaled-down configuration -------------------------
IMG = 16                      # image H = W              (scaled from 224)
PATCH = 8                     # patch size               (scaled from 16)
CIN = 3                       # RGB input channels
NP = (IMG // PATCH) ** 2      # 4 patches
N_TOK = NP + 1                # + cls token -> 5 tokens
P_DIM = CIN * PATCH * PATCH   # 192 flattened patch pixels
D = 128                       # hidden dim               (scaled from 768)
N_LAYERS = 2                  # transformer blocks       (scaled from 12)
N_ATTN_HEADS = 4              # attention heads          (scaled from 12)
DH = D // N_ATTN_HEADS        # 32
MLP = 256                     # MLP dim                  (scaled from 3072)
CLS_HID = 128                 # classifier hidden        (scaled from 512)
NUM_CLASSES = 2
NUM_HEADS = 3                 # DivDis ensemble heads
LN_EPS_BB = 1e-6
LN_EPS_CLS = 1e-5
NEG_INF = -1e30

# TODO(synk): at the real Theia scale (D=768, MLP=3072, 12 layers) the weights
# would not stay fully VMEM-resident; a layer grid axis with per-layer weight
# BlockSpecs (and bf16 weights, esp. on v7x's 64 MiB VMEM) would be required.


# ------------------------------ in-kernel math -------------------------------
def _ln(x, g, b, eps):
    mu = jnp.mean(x, axis=-1, keepdims=True)
    var = jnp.mean((x - mu) ** 2, axis=-1, keepdims=True)
    return (x - mu) * jax.lax.rsqrt(var + eps) * g + b


def _gelu(x):
    c = 0.7978845608028654  # sqrt(2/pi)
    return 0.5 * x * (1.0 + jnp.tanh(c * (x + 0.044715 * x * x * x)))


# ----------------- fused kernel: ViT backbone + DivDis heads -----------------
def theia_kernel(patches_ref, pe_w_ref, add_ref, img_mask_ref, head_mask_ref,
                 pool_ref, lns_ref, wqkv_ref, bqkv_ref, wo_ref, bo_ref,
                 w1_ref, b1_ref, w2_ref, b2_ref, lnf_ref,
                 cw1_ref, cb1_ref, cw2_ref, cb2_ref,
                 out_ref, *, logits):
    f32 = jnp.float32

    # Patch embedding.  Rows = all tokens of all images (B*N_TOK, P_DIM).
    # The cls rows of `patches` are zeros; cls token, positional embedding and
    # patch-embed bias are folded into `add` by the wrapper.
    x = jnp.dot(patches_ref[...], pe_w_ref[...],
                preferred_element_type=f32) + add_ref[...]        # (R, D)

    img_mask = img_mask_ref[...]        # (R, R) block-diagonal additive mask
    scale = 1.0 / (DH ** 0.5)

    for l in range(N_LAYERS):
        lns_l = lns_ref[l]                                        # (4, D)

        # ---- multi-head self attention (pre-norm), fused QKV / O matmuls ----
        h = _ln(x, lns_l[0:1], lns_l[1:2], LN_EPS_BB)
        qkv = jnp.dot(h, wqkv_ref[l], preferred_element_type=f32) + bqkv_ref[l]
        q = qkv[:, 0:D]
        k = qkv[:, D:2 * D]
        v = qkv[:, 2 * D:3 * D]

        ctx = jnp.zeros(x.shape, f32)
        for hd in range(N_ATTN_HEADS):
            hmask = head_mask_ref[hd]                             # (1, D) 0/1
            qh = q * hmask
            kh = k * hmask
            # qh/kh are zero outside this head's lanes -> full-D contraction
            # equals the per-head DH contraction.
            s = jax.lax.dot_general(qh, kh, (((1,), (1,)), ((), ())),
                                    preferred_element_type=f32) * scale
            s = s + img_mask
            s = s - jnp.max(s, axis=-1, keepdims=True)
            e = jnp.exp(s)
            p = e * pl.reciprocal(jnp.sum(e, axis=-1, keepdims=True),
                                  approx=True)
            # P @ (V masked to this head's lanes) writes only this head's
            # output lanes; summing over heads rebuilds the concat'd context.
            ctx = ctx + jnp.dot(p, v * hmask, preferred_element_type=f32)
        x = x + jnp.dot(ctx, wo_ref[l], preferred_element_type=f32) + bo_ref[l]

        # ---- MLP (pre-norm) ----
        h2 = _ln(x, lns_l[2:3], lns_l[3:4], LN_EPS_BB)
        m = _gelu(jnp.dot(h2, w1_ref[l], preferred_element_type=f32) + b1_ref[l])
        x = x + jnp.dot(m, w2_ref[l], preferred_element_type=f32) + b2_ref[l]

    lnf = lnf_ref[...]
    x = _ln(x, lnf[0:1], lnf[1:2], LN_EPS_BB)                     # (R, D)

    # -------- fused DivDis classifier epilogue (all 3 heads, one pass) -------
    # tokens.mean(1) via a pooling matmul: (B, R) @ (R, D) -> (B, D)
    feat = jnp.dot(pool_ref[...], x, preferred_element_type=f32)
    # shared LayerNorm statistics; per-head affine is folded into cw1/cb1.
    mu = jnp.mean(feat, axis=-1, keepdims=True)
    var = jnp.mean((feat - mu) ** 2, axis=-1, keepdims=True)
    nfeat = (feat - mu) * jax.lax.rsqrt(var + LN_EPS_CLS)
    # one (D, NUM_HEADS*CLS_HID) matmul for all heads' first linear + ReLU
    hid = jnp.maximum(jnp.dot(nfeat, cw1_ref[...],
                              preferred_element_type=f32) + cb1_ref[...], 0.0)
    # TODO(synk): nn.Dropout(0.1) is identity in eval mode; training-mode dropout not implemented.
    for hd in range(NUM_HEADS):
        hh = hid[:, hd * CLS_HID:(hd + 1) * CLS_HID]              # 128-aligned
        o = jnp.dot(hh, cw2_ref[hd], preferred_element_type=f32) + cb2_ref[hd]
        if not logits:
            o = o - jnp.max(o, axis=-1, keepdims=True)
            eo = jnp.exp(o)
            o = eo * pl.reciprocal(jnp.sum(eo, axis=-1, keepdims=True),
                                   approx=True)
        out_ref[hd] = o


# ------------------------- wrapper / weight packing ---------------------------
def _full_spec(shape):
    n = len(shape)
    return pl.BlockSpec(tuple(shape), lambda i, _n=n: (0,) * _n)


PACK_ORDER = ["pe_w", "add", "img_mask", "head_mask", "pool", "lns",
              "wqkv", "bqkv", "wo", "bo", "w1", "b1", "w2", "b2", "lnf",
              "cw1", "cb1", "cw2", "cb2"]


def _cat_heads(w, axis):
    return jnp.concatenate([w[:, h] for h in range(N_ATTN_HEADS)], axis=axis)


def pack_params(bb, cp, batch):
    """Repack natural (per-head) parameters into fused kernel operands."""
    # fused attention projections: columns / rows in head-major order
    wq = _cat_heads(bb["wq"], -1)                     # (L, D, D)
    wk = _cat_heads(bb["wk"], -1)
    wv = _cat_heads(bb["wv"], -1)
    wqkv = jnp.concatenate([wq, wk, wv], axis=-1)     # (L, D, 3D)
    bq = _cat_heads(bb["bq"], -1)                     # (L, 1, D)
    bk = _cat_heads(bb["bk"], -1)
    bv = _cat_heads(bb["bv"], -1)
    bqkv = jnp.concatenate([bq, bk, bv], axis=-1)     # (L, 1, 3D)
    wo = _cat_heads(bb["wo"], 1)                      # (L, D, D)

    lns = jnp.concatenate([bb["ln1_g"], bb["ln1_b"],
                           bb["ln2_g"], bb["ln2_b"]], axis=1)   # (L, 4, D)
    lnf = jnp.concatenate([bb["lnf_g"], bb["lnf_b"]], axis=0)   # (2, D)

    # additive term: add[t>0] = pos[t] + pe_b ; add[0] = cls + pos[0]
    add = bb["pos"] + bb["pe_b"]
    add = add.at[0].set(bb["cls"][0] + bb["pos"][0])
    add = jnp.tile(add, (batch, 1))                   # (B*N_TOK, D)

    # classifier: fold per-head LN affine into the first linear, stack heads
    w1_eff = cp["w1"] * jnp.transpose(cp["g"], (0, 2, 1))             # (H,D,C)
    b1_eff = cp["b1"] + jnp.einsum("hod,hdc->hoc", cp["b"], cp["w1"])  # (H,1,C)
    cw1 = jnp.concatenate([w1_eff[h] for h in range(NUM_HEADS)], axis=-1)
    cb1 = jnp.concatenate([b1_eff[h] for h in range(NUM_HEADS)], axis=-1)

    # constant index masks (host-built: no iota / integer-div in kernel)
    R = batch * N_TOK
    img = np.repeat(np.arange(batch), N_TOK)
    img_mask = np.where(img[:, None] == img[None, :], 0.0, NEG_INF)
    pool = (img[None, :] == np.arange(batch)[:, None]).astype(np.float32)
    pool = pool / np.float32(N_TOK)                   # (B, R) mean-pool matrix
    hm = np.zeros((N_ATTN_HEADS, 1, D), np.float32)
    for h in range(N_ATTN_HEADS):
        hm[h, 0, h * DH:(h + 1) * DH] = 1.0

    return dict(
        pe_w=bb["pe_w"], add=add,
        img_mask=jnp.asarray(img_mask, jnp.float32),
        head_mask=jnp.asarray(hm),
        pool=jnp.asarray(pool),
        lns=lns, wqkv=wqkv, bqkv=bqkv, wo=wo, bo=bb["bo"],
        w1=bb["w1"], b1=bb["b1"], w2=bb["w2"], b2=bb["b2"], lnf=lnf,
        cw1=cw1, cb1=cb1, cw2=cp["w2"], cb2=cp["b2"],
    )


def extract_patches(x):
    # x: (B, C, H, W) NCHW -> (B, NP, C*PATCH*PATCH)
    B = x.shape[0]
    g = IMG // PATCH
    x = x.reshape(B, CIN, g, PATCH, g, PATCH)
    x = jnp.transpose(x, (0, 2, 4, 1, 3, 5))
    return x.reshape(B, NP, P_DIM)


def theia_full_forward(x, bb, cp, logits=False):
    B = x.shape[0]
    patches = extract_patches(x)
    # prepend an all-zero "patch" for the cls slot, flatten batch x tokens
    patches = jnp.concatenate(
        [jnp.zeros((B, 1, P_DIM), jnp.float32), patches], axis=1)
    patches = patches.reshape(B * N_TOK, P_DIM)

    pk = pack_params(bb, cp, B)
    inputs = [patches] + [pk[k] for k in PACK_ORDER]

    kern = functools.partial(theia_kernel, logits=logits)
    out = pl.pallas_call(
        kern,
        out_shape=jax.ShapeDtypeStruct((NUM_HEADS, B, NUM_CLASSES), jnp.float32),
        grid_spec=pltpu.PrefetchScalarGridSpec(
            num_scalar_prefetch=0, grid=(1,),
            in_specs=[_full_spec(a.shape) for a in inputs],
            out_specs=_full_spec((NUM_HEADS, B, NUM_CLASSES))),
        compiler_params=pltpu.CompilerParams(
            dimension_semantics=("parallel",)),
    )(*inputs)
    return jnp.transpose(out, (1, 0, 2))   # (B, NUM_HEADS, NUM_CLASSES)


# ------------------------------ parameter init --------------------------------
def init_params(key):
    keys = list(jax.random.split(key, 24))

    def nrm(shape, scale=0.02):
        return (scale * jax.random.normal(keys.pop(), shape)).astype(jnp.float32)

    bb = dict(
        pe_w=nrm((P_DIM, D)), pe_b=nrm((1, D)),
        cls=nrm((1, D)), pos=nrm((N_TOK, D)),
        ln1_g=jnp.ones((N_LAYERS, 1, D), jnp.float32),
        ln1_b=jnp.zeros((N_LAYERS, 1, D), jnp.float32),
        wq=nrm((N_LAYERS, N_ATTN_HEADS, D, DH)),
        bq=nrm((N_LAYERS, N_ATTN_HEADS, 1, DH)),
        wk=nrm((N_LAYERS, N_ATTN_HEADS, D, DH)),
        bk=nrm((N_LAYERS, N_ATTN_HEADS, 1, DH)),
        wv=nrm((N_LAYERS, N_ATTN_HEADS, D, DH)),
        bv=nrm((N_LAYERS, N_ATTN_HEADS, 1, DH)),
        wo=nrm((N_LAYERS, N_ATTN_HEADS, DH, D)),
        bo=nrm((N_LAYERS, 1, D)),
        ln2_g=jnp.ones((N_LAYERS, 1, D), jnp.float32),
        ln2_b=jnp.zeros((N_LAYERS, 1, D), jnp.float32),
        w1=nrm((N_LAYERS, D, MLP)), b1=nrm((N_LAYERS, 1, MLP)),
        w2=nrm((N_LAYERS, MLP, D)), b2=nrm((N_LAYERS, 1, D)),
        lnf_g=jnp.ones((1, D), jnp.float32),
        lnf_b=jnp.zeros((1, D), jnp.float32),
    )
    cp = dict(
        g=jnp.ones((NUM_HEADS, 1, D), jnp.float32),
        b=jnp.zeros((NUM_HEADS, 1, D), jnp.float32),
        w1=nrm((NUM_HEADS, D, CLS_HID)), b1=nrm((NUM_HEADS, 1, CLS_HID)),
        w2=nrm((NUM_HEADS, CLS_HID, NUM_CLASSES)),
        b2=nrm((NUM_HEADS, 1, NUM_CLASSES)),
    )
    return bb, cp


# ---------------------------- pure-JAX reference -------------------------------
def reference_forward(x, bb, cp, logits=False):
    def ln(v, g, b, eps):
        mu = v.mean(-1, keepdims=True)
        var = ((v - mu) ** 2).mean(-1, keepdims=True)
        return (v - mu) / jnp.sqrt(var + eps) * g + b

    B = x.shape[0]
    patches = extract_patches(x)
    t = patches @ bb["pe_w"] + bb["pe_b"]
    cls = jnp.broadcast_to(bb["cls"][None], (B, 1, D))
    t = jnp.concatenate([cls, t], axis=1) + bb["pos"][None]
    scale = 1.0 / (DH ** 0.5)
    for l in range(N_LAYERS):
        h = ln(t, bb["ln1_g"][l], bb["ln1_b"][l], LN_EPS_BB)
        attn = jnp.zeros_like(t)
        for hd in range(N_ATTN_HEADS):
            q = h @ bb["wq"][l, hd] + bb["bq"][l, hd]
            k = h @ bb["wk"][l, hd] + bb["bk"][l, hd]
            v = h @ bb["wv"][l, hd] + bb["bv"][l, hd]
            s = jnp.einsum("bnd,bmd->bnm", q, k) * scale
            p = jax.nn.softmax(s, axis=-1)
            attn = attn + jnp.einsum("bnm,bmd->bnd", p, v) @ bb["wo"][l, hd]
        t = t + attn + bb["bo"][l]
        h2 = ln(t, bb["ln2_g"][l], bb["ln2_b"][l], LN_EPS_BB)
        m = h2 @ bb["w1"][l] + bb["b1"][l]
        m = 0.5 * m * (1.0 + jnp.tanh(0.7978845608028654 * (m + 0.044715 * m ** 3)))
        t = t + m @ bb["w2"][l] + bb["b2"][l]
    t = ln(t, bb["lnf_g"], bb["lnf_b"], LN_EPS_BB)
    feat = t.mean(1)
    preds = []
    for hdx in range(NUM_HEADS):
        hh = ln(feat, cp["g"][hdx], cp["b"][hdx], LN_EPS_CLS)
        hh = jnp.maximum(hh @ cp["w1"][hdx] + cp["b1"][hdx], 0.0)
        o = hh @ cp["w2"][hdx] + cp["b2"][hdx]
        if not logits:
            o = jax.nn.softmax(o, axis=-1)
        preds.append(o)
    return jnp.stack(preds, axis=1)


# ------------------------------------ main -------------------------------------
if __name__ == "__main__":
    key = jax.random.PRNGKey(0)
    kx, kp = jax.random.split(key)
    bb, cp = init_params(kp)
    x = jax.random.normal(kx, (2, CIN, IMG, IMG), dtype=jnp.float32)  # NCHW

    pred = theia_full_forward(x, bb, cp, logits=False)
    pred = jax.block_until_ready(pred)

    ref = reference_forward(x, bb, cp, logits=False)
    np.testing.assert_allclose(np.asarray(pred), np.asarray(ref),
                               atol=1e-2, rtol=1e-2)
    assert pred.shape == (2, NUM_HEADS, NUM_CLASSES)
    print("KERNEL_OK")
</pallas_src>

<mosaic_0001>
module attributes {stable_mosaic.version = 11 : i64} {
  func.func @theia_kernel(%arg0: i32, %arg1: memref<10x192xf32, #tpu.memory_space<vmem>>, %arg2: memref<192x128xf32, #tpu.memory_space<vmem>>, %arg3: memref<10x128xf32, #tpu.memory_space<vmem>>, %arg4: memref<10x10xf32, #tpu.memory_space<vmem>>, %arg5: memref<4x1x128xf32, #tpu.memory_space<vmem>>, %arg6: memref<2x10xf32, #tpu.memory_space<vmem>>, %arg7: memref<2x4x128xf32, #tpu.memory_space<vmem>>, %arg8: memref<2x128x384xf32, #tpu.memory_space<vmem>>, %arg9: memref<2x1x384xf32, #tpu.memory_space<vmem>>, %arg10: memref<2x128x128xf32, #tpu.memory_space<vmem>>, %arg11: memref<2x1x128xf32, #tpu.memory_space<vmem>>, %arg12: memref<2x128x256xf32, #tpu.memory_space<vmem>>, %arg13: memref<2x1x256xf32, #tpu.memory_space<vmem>>, %arg14: memref<2x256x128xf32, #tpu.memory_space<vmem>>, %arg15: memref<2x1x128xf32, #tpu.memory_space<vmem>>, %arg16: memref<2x128xf32, #tpu.memory_space<vmem>>, %arg17: memref<128x384xf32, #tpu.memory_space<vmem>>, %arg18: memref<1x384xf32, #tpu.memory_space<vmem>>, %arg19: memref<3x128x2xf32, #tpu.memory_space<vmem>>, %arg20: memref<3x1x2xf32, #tpu.memory_space<vmem>>, %arg21: memref<3x2x2xf32, #tpu.memory_space<vmem>>) attributes {dimension_semantics = [#tpu.dimension_semantics<parallel>], iteration_bounds = array<i64: 1>, scalar_prefetch = 0 : i64, scratch_operands = 0 : i64, tpu.core_type = #tpu.core_type<tc>, window_params = [{pipeline_mode = #tpu.pipeline_mode<synchronous>, transform_indices = @transform_0, window_bounds = array<i64: 10, 192>}, {pipeline_mode = #tpu.pipeline_mode<synchronous>, transform_indices = @transform_1, window_bounds = array<i64: 192, 128>}, {pipeline_mode = #tpu.pipeline_mode<synchronous>, transform_indices = @transform_2, window_bounds = array<i64: 10, 128>}, {pipeline_mode = #tpu.pipeline_mode<synchronous>, transform_indices = @transform_3, window_bounds = array<i64: 10, 10>}, {pipeline_mode = #tpu.pipeline_mode<synchronous>, transform_indices = @transform_4, window_bounds = array<i64: 4, 1, 128>}, {pipeline_mode = #tpu.pipeline_mode<synchronous>, transform_indices = @transform_5, window_bounds = array<i64: 2, 10>}, {pipeline_mode = #tpu.pipeline_mode<synchronous>, transform_indices = @transform_6, window_bounds = array<i64: 2, 4, 128>}, {pipeline_mode = #tpu.pipeline_mode<synchronous>, transform_indices = @transform_7, window_bounds = array<i64: 2, 128, 384>}, {pipeline_mode = #tpu.pipeline_mode<synchronous>, transform_indices = @transform_8, window_bounds = array<i64: 2, 1, 384>}, {pipeline_mode = #tpu.pipeline_mode<synchronous>, transform_indices = @transform_9, window_bounds = array<i64: 2, 128, 128>}, {pipeline_mode = #tpu.pipeline_mode<synchronous>, transform_indices = @transform_10, window_bounds = array<i64: 2, 1, 128>}, {pipeline_mode = #tpu.pipeline_mode<synchronous>, transform_indices = @transform_11, window_bounds = array<i64: 2, 128, 256>}, {pipeline_mode = #tpu.pipeline_mode<synchronous>, transform_indices = @transform_12, window_bounds = array<i64: 2, 1, 256>}, {pipeline_mode = #tpu.pipeline_mode<synchronous>, transform_indices = @transform_13, window_bounds = array<i64: 2, 256, 128>}, {pipeline_mode = #tpu.pipeline_mode<synchronous>, transform_indices = @transform_14, window_bounds = array<i64: 2, 1, 128>}, {pipeline_mode = #tpu.pipeline_mode<synchronous>, transform_indices = @transform_15, window_bounds = array<i64: 2, 128>}, {pipeline_mode = #tpu.pipeline_mode<synchronous>, transform_indices = @transform_16, window_bounds = array<i64: 128, 384>}, {pipeline_mode = #tpu.pipeline_mode<synchronous>, transform_indices = @transform_17, window_bounds = array<i64: 1, 384>}, {pipeline_mode = #tpu.pipeline_mode<synchronous>, transform_indices = @transform_18, window_bounds = array<i64: 3, 128, 2>}, {pipeline_mode = #tpu.pipeline_mode<synchronous>, transform_indices = @transform_19, window_bounds = array<i64: 3, 1, 2>}, {pipeline_mode = #tpu.pipeline_mode<synchronous>, transform_indices = @transform_20, window_bounds = array<i64: 3, 2, 2>}]} {
    %c0 = arith.constant 0 : index
    %c0_0 = arith.constant 0 : index
    %0 = vector.load %arg1[%c0, %c0_0] : memref<10x192xf32, #tpu.memory_space<vmem>>, vector<10x192xf32>
    %c0_1 = arith.constant 0 : index
    %c0_2 = arith.constant 0 : index
    %1 = vector.load %arg2[%c0_1, %c0_2] : memref<192x128xf32, #tpu.memory_space<vmem>>, vector<192x128xf32>
    %cst = arith.constant dense<0.000000e+00> : vector<10x128xf32>
    %2 = tpu.matmul %0, %1, %cst {dimension_numbers = #tpu.dot_dimension_numbers<[1], [0], [0], [1], [0, 0, 1, 1], [], []>} : vector<10x192xf32>, vector<192x128xf32>, vector<10x128xf32> -> vector<10x128xf32>
    %c0_3 = arith.constant 0 : index
    %c0_4 = arith.constant 0 : index
    %3 = vector.load %arg3[%c0_3, %c0_4] : memref<10x128xf32, #tpu.memory_space<vmem>>, vector<10x128xf32>
    %4 = arith.addf %2, %3 : vector<10x128xf32>
    %c0_5 = arith.constant 0 : index
    %c0_6 = arith.constant 0 : index
    %5 = vector.load %arg4[%c0_5, %c0_6] : memref<10x10xf32, #tpu.memory_space<vmem>>, vector<10x10xf32>
    %c0_7 = arith.constant 0 : index
    %c0_8 = arith.constant 0 : index
    %c0_9 = arith.constant 0 : index
    %6 = vector.load %arg7[%c0_7, %c0_8, %c0_9] : memref<2x4x128xf32, #tpu.memory_space<vmem>>, vector<1x4x128xf32>
    %7 = vector.shape_cast %6 : vector<1x4x128xf32> to vector<4x128xf32>
    %8 = vector.extract_strided_slice %7 {offsets = [0, 0], sizes = [1, 128], strides = [1, 1]} : vector<4x128xf32> to vector<1x128xf32>
    %9 = vector.extract_strided_slice %7 {offsets = [1, 0], sizes = [1, 128], strides = [1, 1]} : vector<4x128xf32> to vector<1x128xf32>
    %cst_10 = arith.constant dense<0.000000e+00> : vector<10xf32>
    %10 = vector.multi_reduction <add>, %4, %cst_10 [1] : vector<10x128xf32> to vector<10xf32>
    %11 = vector.shape_cast %10 : vector<10xf32> to vector<10x1xf32>
    %cst_11 = arith.constant 1.280000e+02 : f32
    %12 = vector.broadcast %cst_11 : f32 to vector<10x1xf32>
    %13 = arith.divf %11, %12 : vector<10x1xf32>
    %14 = vector.broadcast %13 : vector<10x1xf32> to vector<10x128xf32>
    %15 = arith.subf %4, %14 : vector<10x128xf32>
    %16 = arith.mulf %15, %15 : vector<10x128xf32>
    %cst_12 = arith.constant dense<0.000000e+00> : vector<10xf32>
    %17 = vector.multi_reduction <add>, %16, %cst_12 [1] : vector<10x128xf32> to vector<10xf32>
    %18 = vector.shape_cast %17 : vector<10xf32> to vector<10x1xf32>
    %cst_13 = arith.constant 1.280000e+02 : f32
    %19 = vector.broadcast %cst_13 : f32 to vector<10x1xf32>
    %20 = arith.divf %18, %19 : vector<10x1xf32>
    %21 = vector.broadcast %13 : vector<10x1xf32> to vector<10x128xf32>
    %22 = arith.subf %4, %21 : vector<10x128xf32>
    %cst_14 = arith.constant 9.99999997E-7 : f32
    %23 = vector.broadcast %cst_14 : f32 to vector<10x1xf32>
    %24 = arith.addf %20, %23 : vector<10x1xf32>
    %25 = math.rsqrt %24 : vector<10x1xf32>
    %26 = vector.broadcast %25 : vector<10x1xf32> to vector<10x128xf32>
    %27 = arith.mulf %22, %26 : vector<10x128xf32>
    %28 = vector.broadcast %8 : vector<1x128xf32> to vector<10x128xf32>
    %29 = arith.mulf %27, %28 : vector<10x128xf32>
    %30 = vector.broadcast %9 : vector<1x128xf32> to vector<10x128xf32>
    %31 = arith.addf %29, %30 : vector<10x128xf32>
    %c0_15 = arith.constant 0 : index
    %c0_16 = arith.constant 0 : index
    %c0_17 = arith.constant 0 : index
    %32 = vector.load %arg8[%c0_15, %c0_16, %c0_17] : memref<2x128x384xf32, #tpu.memory_space<vmem>>, vector<1x128x384xf32>
    %33 = vector.shape_cast %32 : vector<1x128x384xf32> to vector<128x384xf32>
    %cst_18 = arith.constant dense<0.000000e+00> : vector<10x384xf32>
    %34 = tpu.matmul %31, %33, %cst_18 {dimension_numbers = #tpu.dot_dimension_numbers<[1], [0], [0], [1], [0, 0, 1, 1], [], []>} : vector<10x128xf32>, vector<128x384xf32>, vector<10x384xf32> -> vector<10x384xf32>
    %c0_19 = arith.constant 0 : index
    %c0_20 = arith.constant 0 : index
    %c0_21 = arith.constant 0 : index
    %35 = vector.load %arg9[%c0_19, %c0_20, %c0_21] : memref<2x1x384xf32, #tpu.memory_space<vmem>>, vector<1x1x384xf32>
    %36 = vector.shape_cast %35 : vector<1x1x384xf32> to vector<1x384xf32>
    %37 = vector.broadcast %36 : vector<1x384xf32> to vector<10x384xf32>
    %38 = arith.addf %34, %37 : vector<10x384xf32>
    %39 = vector.extract_strided_slice %38 {offsets = [0, 0], sizes = [10, 128], strides = [1, 1]} : vector<10x384xf32> to vector<10x128xf32>
    %40 = vector.extract_strided_slice %38 {offsets = [0, 128], sizes = [10, 128], strides = [1, 1]} : vector<10x384xf32> to vector<10x128xf32>
    %41 = vector.extract_strided_slice %38 {offsets = [0, 256], sizes = [10, 128], strides = [1, 1]} : vector<10x384xf32> to vector<10x128xf32>
    %cst_22 = arith.constant 0.000000e+00 : f32
    %42 = vector.broadcast %cst_22 : f32 to vector<10x128xf32>
    %c0_23 = arith.constant 0 : index
    %c0_24 = arith.constant 0 : index
    %c0_25 = arith.constant 0 : index
    %43 = vector.load %arg5[%c0_23, %c0_24, %c0_25] : memref<4x1x128xf32, #tpu.memory_space<vmem>>, vector<1x1x128xf32>
    %44 = vector.shape_cast %43 : vector<1x1x128xf32> to vector<1x128xf32>
    %45 = vector.broadcast %44 : vector<1x128xf32> to vector<10x128xf32>
    %46 = arith.mulf %39, %45 : vector<10x128xf32>
    %47 = vector.broadcast %44 : vector<1x128xf32> to vector<10x128xf32>
    %48 = arith.mulf %40, %47 : vector<10x128xf32>
    %cst_26 = arith.constant dense<0.000000e+00> : vector<10x10xf32>
    %49 = tpu.matmul %46, %48, %cst_26 {dimension_numbers = #tpu.dot_dimension_numbers<[1], [1], [0], [0], [0, 0, 1, 0], [], []>} : vector<10x128xf32>, vector<10x128xf32>, vector<10x10xf32> -> vector<10x10xf32>
    %cst_27 = arith.constant 0.176776692 : f32
    %50 = vector.broadcast %cst_27 : f32 to vector<10x10xf32>
    %51 = arith.mulf %49, %50 : vector<10x10xf32>
    %52 = arith.addf %51, %5 : vector<10x10xf32>
    %cst_28 = arith.constant dense<0xFF800000> : vector<10xf32>
    %53 = vector.multi_reduction <maximumf>, %52, %cst_28 [1] : vector<10x10xf32> to vector<10xf32>
    %54 = vector.shape_cast %53 : vector<10xf32> to vector<10x1xf32>
    %55 = vector.broadcast %54 : vector<10x1xf32> to vector<10x10xf32>
    %56 = arith.subf %52, %55 : vector<10x10xf32>
    %57 = math.exp %56 : vector<10x10xf32>
    %cst_29 = arith.constant dense<0.000000e+00> : vector<10xf32>
    %58 = vector.multi_reduction <add>, %57, %cst_29 [1] : vector<10x10xf32> to vector<10xf32>
    %59 = vector.shape_cast %58 : vector<10xf32> to vector<10x1xf32>
    %60 = tpu.reciprocal %59 {approx = true} : vector<10x1xf32> -> vector<10x1xf32>
    %61 = vector.broadcast %60 : vector<10x1xf32> to vector<10x10xf32>
    %62 = arith.mulf %57, %61 : vector<10x10xf32>
    %63 = vector.broadcast %44 : vector<1x128xf32> to vector<10x128xf32>
    %64 = arith.mulf %41, %63 : vector<10x128xf32>
    %cst_30 = arith.constant dense<0.000000e+00> : vector<10x128xf32>
    %65 = tpu.matmul %62, %64, %cst_30 {dimension_numbers = #tpu.dot_dimension_numbers<[1], [0], [0], [1], [0, 0, 1, 1], [], []>} : vector<10x10xf32>, vector<10x128xf32>, vector<10x128xf32> -> vector<10x128xf32>
    %66 = arith.addf %42, %65 : vector<10x128xf32>
    %c1 = arith.constant 1 : index
    %c0_31 = arith.constant 0 : index
    %c0_32 = arith.constant 0 : index
    %67 = vector.load %arg5[%c1, %c0_31, %c0_32] : memref<4x1x128xf32, #tpu.memory_space<vmem>>, vector<1x1x128xf32>
    %68 = vector.shape_cast %67 : vector<1x1x128xf32> to vector<1x128xf32>
    %69 = vector.broadcast %68 : vector<1x128xf32> to vector<10x128xf32>
    %70 = arith.mulf %39, %69 : vector<10x128xf32>
    %71 = vector.broadcast %68 : vector<1x128xf32> to vector<10x128xf32>
    %72 = arith.mulf %40, %71 : vector<10x128xf32>
    %cst_33 = arith.constant dense<0.000000e+00> : vector<10x10xf32>
    %73 = tpu.matmul %70, %72, %cst_33 {dimension_numbers = #tpu.dot_dimension_numbers<[1], [1], [0], [0], [0, 0, 1, 0], [], []>} : vector<10x128xf32>, vector<10x128xf32>, vector<10x10xf32> -> vector<10x10xf32>
    %cst_34 = arith.constant 0.176776692 : f32
    %74 = vector.broadcast %cst_34 : f32 to vector<10x10xf32>
    %75 = arith.mulf %73, %74 : vector<10x10xf32>
    %76 = arith.addf %75, %5 : vector<10x10xf32>
    %cst_35 = arith.constant dense<0xFF800000> : vector<10xf32>
    %77 = vector.multi_reduction <maximumf>, %76, %cst_35 [1] : vector<10x10xf32> to vector<10xf32>
    %78 = vector.shape_cast %77 : vector<10xf32> to vector<10x1xf32>
    %79 = vector.broadcast %78 : vector<10x1xf32> to vector<10x10xf32>
    %80 = arith.subf %76, %79 : vector<10x10xf32>
    %81 = math.exp %80 : vector<10x10xf32>
    %cst_36 = arith.constant dense<0.000000e+00> : vector<10xf32>
    %82 = vector.multi_reduction <add>, %81, %cst_36 [1] : vector<10x10xf32> to vector<10xf32>
    %83 = vector.shape_cast %82 : vector<10xf32> to vector<10x1xf32>
    %84 = tpu.reciprocal %83 {approx = true} : vector<10x1xf32> -> vector<10x1xf32>
    %85 = vector.broadcast %84 : vector<10x1xf32> to vector<10x10xf32>
    %86 = arith.mulf %81, %85 : vector<10x10xf32>
    %87 = vector.broadcast %68 : vector<1x128xf32> to vector<10x128xf32>
    %88 = arith.mulf %41, %87 : vector<10x128xf32>
    %cst_37 = arith.constant dense<0.000000e+00> : vector<10x128xf32>
    %89 = tpu.matmul %86, %88, %cst_37 {dimension_numbers = #tpu.dot_dimension_numbers<[1], [0], [0], [1], [0, 0, 1, 1], [], []>} : vector<10x10xf32>, vector<10x128xf32>, vector<10x128xf32> -> vector<10x128xf32>
    %90 = arith.addf %66, %89 : vector<10x128xf32>
    %c2 = arith.constant 2 : index
    %c0_38 = arith.constant 0 : index
    %c0_39 = arith.constant 0 : index
    %91 = vector.load %arg5[%c2, %c0_38, %c0_39] : memref<4x1x128xf32, #tpu.memory_space<vmem>>, vector<1x1x128xf32>
    %92 = vector.shape_cast %91 : vector<1x1x128xf32> to vector<1x128xf32>
    %93 = vector.broadcast %92 : vector<1x128xf32> to vector<10x128xf32>
    %94 = arith.mulf %39, %93 : vector<10x128xf32>
    %95 = vector.broadcast %92 : vector<1x128xf32> to vector<10x128xf32>
    %96 = arith.mulf %40, %95 : vector<10x128xf32>
    %cst_40 = arith.constant dense<0.000000e+00> : vector<10x10xf32>
    %97 = tpu.matmul %94, %96, %cst_40 {dimension_numbers = #tpu.dot_dimension_numbers<[1], [1], [0], [0], [0, 0, 1, 0], [], []>} : vector<10x128xf32>, vector<10x128xf32>, vector<10x10xf32> -> vector<10x10xf32>
    %cst_41 = arith.constant 0.176776692 : f32
    %98 = vector.broadcast %cst_41 : f32 to vector<10x10xf32>
    %99 = arith.mulf %97, %98 : vector<10x10xf32>
    %100 = arith.addf %99, %5 : vector<10x10xf32>
    %cst_42 = arith.constant dense<0xFF800000> : vector<10xf32>
    %101 = vector.multi_reduction <maximumf>, %100, %cst_42 [1] : vector<10x10xf32> to vector<10xf32>
    %102 = vector.shape_cast %101 : vector<10xf32> to vector<10x1xf32>
    %103 = vector.broadcast %102 : vector<10x1xf32> to vector<10x10xf32>
    %104 = arith.subf %100, %103 : vector<10x10xf32>
    %105 = math.exp %104 : vector<10x10xf32>
    %cst_43 = arith.constant dense<0.000000e+00> : vector<10xf32>
    %106 = vector.multi_reduction <add>, %105, %cst_43 [1] : vector<10x10xf32> to vector<10xf32>
    %107 = vector.shape_cast %106 : vector<10xf32> to vector<10x1xf32>
    %108 = tpu.reciprocal %107 {approx = true} : vector<10x1xf32> -> vector<10x1xf32>
    %109 = vector.broadcast %108 : vector<10x1xf32> to vector<10x10xf32>
    %110 = arith.mulf %105, %109 : vector<10x10xf32>
    %111 = vector.broadcast %92 : vector<1x128xf32> to vector<10x128xf32>
    %112 = arith.mulf %41, %111 : vector<10x128xf32>
    %cst_44 = arith.constant dense<0.000000e+00> : vector<10x128xf32>
    %113 = tpu.matmul %110, %112, %cst_44 {dimension_numbers = #tpu.dot_dimension_numbers<[1], [0], [0], [1], [0, 0, 1, 1], [], []>} : vector<10x10xf32>, vector<10x128xf32>, vector<10x128xf32> -> vector<10x128xf32>
    %114 = arith.addf %90, %113 : vector<10x128xf32>
    %c3 = arith.constant 3 : index
    %c0_45 = arith.constant 0 : index
    %c0_46 = arith.constant 0 : index
    %115 = vector.load %arg5[%c3, %c0_45, %c0_46] : memref<4x1x128xf32, #tpu.memory_space<vmem>>, vector<1x1x128xf32>
    %116 = vector.shape_cast %115 : vector<1x1x128xf32> to vector<1x128xf32>
    %117 = vector.broadcast %116 : vector<1x128xf32> to vector<10x128xf32>
    %118 = arith.mulf %39, %117 : vector<10x128xf32>
    %119 = vector.broadcast %116 : vector<1x128xf32> to vector<10x128xf32>
    %120 = arith.mulf %40, %119 : vector<10x128xf32>
    %cst_47 = arith.constant dense<0.000000e+00> : vector<10x10xf32>
    %121 = tpu.matmul %118, %120, %cst_47 {dimension_numbers = #tpu.dot_dimension_numbers<[1], [1], [0], [0], [0, 0, 1, 0], [], []>} : vector<10x128xf32>, vector<10x128xf32>, vector<10x10xf32> -> vector<10x10xf32>
    %cst_48 = arith.constant 0.176776692 : f32
    %122 = vector.broadcast %cst_48 : f32 to vector<10x10xf32>
    %123 = arith.mulf %121, %122 : vector<10x10xf32>
    %124 = arith.addf %123, %5 : vector<10x10xf32>
    %cst_49 = arith.constant dense<0xFF800000> : vector<10xf32>
    %125 = vector.multi_reduction <maximumf>, %124, %cst_49 [1] : vector<10x10xf32> to vector<10xf32>
    %126 = vector.shape_cast %125 : vector<10xf32> to vector<10x1xf32>
    %127 = vector.broadcast %126 : vector<10x1xf32> to vector<10x10xf32>
    %128 = arith.subf %124, %127 : vector<10x10xf32>
    %129 = math.exp %128 : vector<10x10xf32>
    %cst_50 = arith.constant dense<0.000000e+00> : vector<10xf32>
    %130 = vector.multi_reduction <add>, %129, %cst_50 [1] : vector<10x10xf32> to vector<10xf32>
    %131 = vector.shape_cast %130 : vector<10xf32> to vector<10x1xf32>
    %132 = tpu.reciprocal %131 {approx = true} : vector<10x1xf32> -> vector<10x1xf32>
    %133 = vector.broadcast %132 : vector<10x1xf32> to vector<10x10xf32>
    %134 = arith.mulf %129, %133 : vector<10x10xf32>
    %135 = vector.broadcast %116 : vector<1x128xf32> to vector<10x128xf32>
    %136 = arith.mulf %41, %135 : vector<10x128xf32>
    %cst_51 = arith.constant dense<0.000000e+00> : vector<10x128xf32>
    %137 = tpu.matmul %134, %136, %cst_51 {dimension_numbers = #tpu.dot_dimension_numbers<[1], [0], [0], [1], [0, 0, 1, 1], [], []>} : vector<10x10xf32>, vector<10x128xf32>, vector<10x128xf32> -> vector<10x128xf32>
    %138 = arith.addf %114, %137 : vector<10x128xf32>
    %c0_52 = arith.constant 0 : index
    %c0_53 = arith.constant 0 : index
    %c0_54 = arith.constant 0 : index
    %139 = vector.load %arg10[%c0_52, %c0_53, %c0_54] : memref<2x128x128xf32, #tpu.memory_space<vmem>>, vector<1x128x128xf32>
    %140 = vector.shape_cast %139 : vector<1x128x128xf32> to vector<128x128xf32>
    %cst_55 = arith.constant dense<0.000000e+00> : vector<10x128xf32>
    %141 = tpu.matmul %138, %140, %cst_55 {dimension_numbers = #tpu.dot_dimension_numbers<[1], [0], [0], [1], [0, 0, 1, 1], [], []>} : vector<10x128xf32>, vector<128x128xf32>, vector<10x128xf32> -> vector<10x128xf32>
    %142 = arith.addf %4, %141 : vector<10x128xf32>
    %c0_56 = arith.constant 0 : index
    %c0_57 = arith.constant 0 : index
    %c0_58 = arith.constant 0 : index
    %143 = vector.load %arg11[%c0_56, %c0_57, %c0_58] : memref<2x1x128xf32, #tpu.memory_space<vmem>>, vector<1x1x128xf32>
    %144 = vector.shape_cast %143 : vector<1x1x128xf32> to vector<1x128xf32>
    %145 = vector.broadcast %144 : vector<1x128xf32> to vector<10x128xf32>
    %146 = arith.addf %142, %145 : vector<10x128xf32>
    %147 = vector.extract_strided_slice %7 {offsets = [2, 0], sizes = [1, 128], strides = [1, 1]} : vector<4x128xf32> to vector<1x128xf32>
    %148 = vector.extract_strided_slice %7 {offsets = [3, 0], sizes = [1, 128], strides = [1, 1]} : vector<4x128xf32> to vector<1x128xf32>
    %cst_59 = arith.constant dense<0.000000e+00> : vector<10xf32>
    %149 = vector.multi_reduction <add>, %146, %cst_59 [1] : vector<10x128xf32> to vector<10xf32>
    %150 = vector.shape_cast %149 : vector<10xf32> to vector<10x1xf32>
    %cst_60 = arith.constant 1.280000e+02 : f32
    %151 = vector.broadcast %cst_60 : f32 to vector<10x1xf32>
    %152 = arith.divf %150, %151 : vector<10x1xf32>
    %153 = vector.broadcast %152 : vector<10x1xf32> to vector<10x128xf32>
    %154 = arith.subf %146, %153 : vector<10x128xf32>
    %155 = arith.mulf %154, %154 : vector<10x128xf32>
    %cst_61 = arith.constant dense<0.000000e+00> : vector<10xf32>
    %156 = vector.multi_reduction <add>, %155, %cst_61 [1] : vector<10x128xf32> to vector<10xf32>
    %157 = vector.shape_cast %156 : vector<10xf32> to vector<10x1xf32>
    %cst_62 = arith.constant 1.280000e+02 : f32
    %158 = vector.broadcast %cst_62 : f32 to vector<10x1xf32>
    %159 = arith.divf %157, %158 : vector<10x1xf32>
    %160 = vector.broadcast %152 : vector<10x1xf32> to vector<10x128xf32>
    %161 = arith.subf %146, %160 : vector<10x128xf32>
    %cst_63 = arith.constant 9.99999997E-7 : f32
    %162 = vector.broadcast %cst_63 : f32 to vector<10x1xf32>
    %163 = arith.addf %159, %162 : vector<10x1xf32>
    %164 = math.rsqrt %163 : vector<10x1xf32>
    %165 = vector.broadcast %164 : vector<10x1xf32> to vector<10x128xf32>
    %166 = arith.mulf %161, %165 : vector<10x128xf32>
    %167 = vector.broadcast %147 : vector<1x128xf32> to vector<10x128xf32>
    %168 = arith.mulf %166, %167 : vector<10x128xf32>
    %169 = vector.broadcast %148 : vector<1x128xf32> to vector<10x128xf32>
    %170 = arith.addf %168, %169 : vector<10x128xf32>
    %c0_64 = arith.constant 0 : index
    %c0_65 = arith.constant 0 : index
    %c0_66 = arith.constant 0 : index
    %171 = vector.load %arg12[%c0_64, %c0_65, %c0_66] : memref<2x128x256xf32, #tpu.memory_space<vmem>>, vector<1x128x256xf32>
    %172 = vector.shape_cast %171 : vector<1x128x256xf32> to vector<128x256xf32>
    %cst_67 = arith.constant dense<0.000000e+00> : vector<10x256xf32>
    %173 = tpu.matmul %170, %172, %cst_67 {dimension_numbers = #tpu.dot_dimension_numbers<[1], [0], [0], [1], [0, 0, 1, 1], [], []>} : vector<10x128xf32>, vector<128x256xf32>, vector<10x256xf32> -> vector<10x256xf32>
    %c0_68 = arith.constant 0 : index
    %c0_69 = arith.constant 0 : index
    %c0_70 = arith.constant 0 : index
    %174 = vector.load %arg13[%c0_68, %c0_69, %c0_70] : memref<2x1x256xf32, #tpu.memory_space<vmem>>, vector<1x1x256xf32>
    %175 = vector.shape_cast %174 : vector<1x1x256xf32> to vector<1x256xf32>
    %176 = vector.broadcast %175 : vector<1x256xf32> to vector<10x256xf32>
    %177 = arith.addf %173, %176 : vector<10x256xf32>
    %cst_71 = arith.constant 5.000000e-01 : f32
    %178 = vector.broadcast %cst_71 : f32 to vector<10x256xf32>
    %179 = arith.mulf %178, %177 : vector<10x256xf32>
    %cst_72 = arith.constant 4.471500e-02 : f32
    %180 = vector.broadcast %cst_72 : f32 to vector<10x256xf32>
    %181 = arith.mulf %180, %177 : vector<10x256xf32>
    %182 = arith.mulf %181, %177 : vector<10x256xf32>
    %183 = arith.mulf %182, %177 : vector<10x256xf32>
    %184 = arith.addf %177, %183 : vector<10x256xf32>
    %cst_73 = arith.constant 0.797884583 : f32
    %185 = vector.broadcast %cst_73 : f32 to vector<10x256xf32>
    %186 = arith.mulf %185, %184 : vector<10x256xf32>
    %187 = math.tanh %186 : vector<10x256xf32>
    %cst_74 = arith.constant 1.000000e+00 : f32
    %188 = vector.broadcast %cst_74 : f32 to vector<10x256xf32>
    %189 = arith.addf %188, %187 : vector<10x256xf32>
    %190 = arith.mulf %179, %189 : vector<10x256xf32>
    %c0_75 = arith.constant 0 : index
    %c0_76 = arith.constant 0 : index
    %c0_77 = arith.constant 0 : index
    %191 = vector.load %arg14[%c0_75, %c0_76, %c0_77] : memref<2x256x128xf32, #tpu.memory_space<vmem>>, vector<1x256x128xf32>
    %192 = vector.shape_cast %191 : vector<1x256x128xf32> to vector<256x128xf32>
    %cst_78 = arith.constant dense<0.000000e+00> : vector<10x128xf32>
    %193 = tpu.matmul %190, %192, %cst_78 {dimension_numbers = #tpu.dot_dimension_numbers<[1], [0], [0], [1], [0, 0, 1, 1], [], []>} : vector<10x256xf32>, vector<256x128xf32>, vector<10x128xf32> -> vector<10x128xf32>
    %194 = arith.addf %146, %193 : vector<10x128xf32>
    %c0_79 = arith.constant 0 : index
    %c0_80 = arith.constant 0 : index
    %c0_81 = arith.constant 0 : index
    %195 = vector.load %arg15[%c0_79, %c0_80, %c0_81] : memref<2x1x128xf32, #tpu.memory_space<vmem>>, vector<1x1x128xf32>
    %196 = vector.shape_cast %195 : vector<1x1x128xf32> to vector<1x128xf32>
    %197 = vector.broadcast %196 : vector<1x128xf32> to vector<10x128xf32>
    %198 = arith.addf %194, %197 : vector<10x128xf32>
    %c1_82 = arith.constant 1 : index
    %c0_83 = arith.constant 0 : index
    %c0_84 = arith.constant 0 : index
    %199 = vector.load %arg7[%c1_82, %c0_83, %c0_84] : memref<2x4x128xf32, #tpu.memory_space<vmem>>, vector<1x4x128xf32>
    %200 = vector.shape_cast %199 : vector<1x4x128xf32> to vector<4x128xf32>
    %201 = vector.extract_strided_slice %200 {offsets = [0, 0], sizes = [1, 128], strides = [1, 1]} : vector<4x128xf32> to vector<1x128xf32>
    %202 = vector.extract_strided_slice %200 {offsets = [1, 0], sizes = [1, 128], strides = [1, 1]} : vector<4x128xf32> to vector<1x128xf32>
    %cst_85 = arith.constant dense<0.000000e+00> : vector<10xf32>
    %203 = vector.multi_reduction <add>, %198, %cst_85 [1] : vector<10x128xf32> to vector<10xf32>
    %204 = vector.shape_cast %203 : vector<10xf32> to vector<10x1xf32>
    %cst_86 = arith.constant 1.280000e+02 : f32
    %205 = vector.broadcast %cst_86 : f32 to vector<10x1xf32>
    %206 = arith.divf %204, %205 : vector<10x1xf32>
    %207 = vector.broadcast %206 : vector<10x1xf32> to vector<10x128xf32>
    %208 = arith.subf %198, %207 : vector<10x128xf32>
    %209 = arith.mulf %208, %208 : vector<10x128xf32>
    %cst_87 = arith.constant dense<0.000000e+00> : vector<10xf32>
    %210 = vector.multi_reduction <add>, %209, %cst_87 [1] : vector<10x128xf32> to vector<10xf32>
    %211 = vector.shape_cast %210 : vector<10xf32> to vector<10x1xf32>
    %cst_88 = arith.constant 1.280000e+02 : f32
    %212 = vector.broadcast %cst_88 : f32 to vector<10x1xf32>
    %213 = arith.divf %211, %212 : vector<10x1xf32>
    %214 = vector.broadcast %206 : vector<10x1xf32> to vector<10x128xf32>
    %215 = arith.subf %198, %214 : vector<10x128xf32>
    %cst_89 = arith.constant 9.99999997E-7 : f32
    %216 = vector.broadcast %cst_89 : f32 to vector<10x1xf32>
    %217 = arith.addf %213, %216 : vector<10x1xf32>
    %218 = math.rsqrt %217 : vector<10x1xf32>
    %219 = vector.broadcast %218 : vector<10x1xf32> to vector<10x128xf32>
    %220 = arith.mulf %215, %219 : vector<10x128xf32>
    %221 = vector.broadcast %201 : vector<1x128xf32> to vector<10x128xf32>
    %222 = arith.mulf %220, %221 : vector<10x128xf32>
    %223 = vector.broadcast %202 : vector<1x128xf32> to vector<10x128xf32>
    %224 = arith.addf %222, %223 : vector<10x128xf32>
    %c1_90 = arith.constant 1 : index
    %c0_91 = arith.constant 0 : index
    %c0_92 = arith.constant 0 : index
    %225 = vector.load %arg8[%c1_90, %c0_91, %c0_92] : memref<2x128x384xf32, #tpu.memory_space<vmem>>, vector<1x128x384xf32>
    %226 = vector.shape_cast %225 : vector<1x128x384xf32> to vector<128x384xf32>
    %cst_93 = arith.constant dense<0.000000e+00> : vector<10x384xf32>
    %227 = tpu.matmul %224, %226, %cst_93 {dimension_numbers = #tpu.dot_dimension_numbers<[1], [0], [0], [1], [0, 0, 1, 1], [], []>} : vector<10x128xf32>, vector<128x384xf32>, vector<10x384xf32> -> vector<10x384xf32>
    %c1_94 = arith.constant 1 : index
    %c0_95 = arith.constant 0 : index
    %c0_96 = arith.constant 0 : index
    %228 = vector.load %arg9[%c1_94, %c0_95, %c0_96] : memref<2x1x384xf32, #tpu.memory_space<vmem>>, vector<1x1x384xf32>
    %229 = vector.shape_cast %228 : vector<1x1x384xf32> to vector<1x384xf32>
    %230 = vector.broadcast %229 : vector<1x384xf32> to vector<10x384xf32>
    %231 = arith.addf %227, %230 : vector<10x384xf32>
    %232 = vector.extract_strided_slice %231 {offsets = [0, 0], sizes = [10, 128], strides = [1, 1]} : vector<10x384xf32> to vector<10x128xf32>
    %233 = vector.extract_strided_slice %231 {offsets = [0, 128], sizes = [10, 128], strides = [1, 1]} : vector<10x384xf32> to vector<10x128xf32>
    %234 = vector.extract_strided_slice %231 {offsets = [0, 256], sizes = [10, 128], strides = [1, 1]} : vector<10x384xf32> to vector<10x128xf32>
    %cst_97 = arith.constant 0.000000e+00 : f32
    %235 = vector.broadcast %cst_97 : f32 to vector<10x128xf32>
    %c0_98 = arith.constant 0 : index
    %c0_99 = arith.constant 0 : index
    %c0_100 = arith.constant 0 : index
    %236 = vector.load %arg5[%c0_98, %c0_99, %c0_100] : memref<4x1x128xf32, #tpu.memory_space<vmem>>, vector<1x1x128xf32>
    %237 = vector.shape_cast %236 : vector<1x1x128xf32> to vector<1x128xf32>
    %238 = vector.broadcast %237 : vector<1x128xf32> to vector<10x128xf32>
    %239 = arith.mulf %232, %238 : vector<10x128xf32>
    %240 = vector.broadcast %237 : vector<1x128xf32> to vector<10x128xf32>
    %241 = arith.mulf %233, %240 : vector<10x128xf32>
    %cst_101 = arith.constant dense<0.000000e+00> : vector<10x10xf32>
    %242 = tpu.matmul %239, %241, %cst_101 {dimension_numbers = #tpu.dot_dimension_numbers<[1], [1], [0], [0], [0, 0, 1, 0], [], []>} : vector<10x128xf32>, vector<10x128xf32>, vector<10x10xf32> -> vector<10x10xf32>
    %cst_102 = arith.constant 0.176776692 : f32
    %243 = vector.broadcast %cst_102 : f32 to vector<10x10xf32>
    %244 = arith.mulf %242, %243 : vector<10x10xf32>
    %245 = arith.addf %244, %5 : vector<10x10xf32>
    %cst_103 = arith.constant dense<0xFF800000> : vector<10xf32>
    %246 = vector.multi_reduction <maximumf>, %245, %cst_103 [1] : vector<10x10xf32> to vector<10xf32>
    %247 = vector.shape_cast %246 : vector<10xf32> to vector<10x1xf32>
    %248 = vector.broadcast %247 : vector<10x1xf32> to vector<10x10xf32>
    %249 = arith.subf %245, %248 : vector<10x10xf32>
    %250 = math.exp %249 : vector<10x10xf32>
    %cst_104 = arith.constant dense<0.000000e+00> : vector<10xf32>
    %251 = vector.multi_reduction <add>, %250, %cst_104 [1] : vector<10x10xf32> to vector<10xf32>
    %252 = vector.shape_cast %251 : vector<10xf32> to vector<10x1xf32>
    %253 = tpu.reciprocal %252 {approx = true} : vector<10x1xf32> -> vector<10x1xf32>
    %254 = vector.broadcast %253 : vector<10x1xf32> to vector<10x10xf32>
    %255 = arith.mulf %250, %254 : vector<10x10xf32>
    %256 = vector.broadcast %237 : vector<1x128xf32> to vector<10x128xf32>
    %257 = arith.mulf %234, %256 : vector<10x128xf32>
    %cst_105 = arith.constant dense<0.000000e+00> : vector<10x128xf32>
    %258 = tpu.matmul %255, %257, %cst_105 {dimension_numbers = #tpu.dot_dimension_numbers<[1], [0], [0], [1], [0, 0, 1, 1], [], []>} : vector<10x10xf32>, vector<10x128xf32>, vector<10x128xf32> -> vector<10x128xf32>
    %259 = arith.addf %235, %258 : vector<10x128xf32>
    %c1_106 = arith.constant 1 : index
    %c0_107 = arith.constant 0 : index
    %c0_108 = arith.constant 0 : index
    %260 = vector.load %arg5[%c1_106, %c0_107, %c0_108] : memref<4x1x128xf32, #tpu.memory_space<vmem>>, vector<1x1x128xf32>
    %261 = vector.shape_cast %260 : vector<1x1x128xf32> to vector<1x128xf32>
    %262 = vector.broadcast %261 : vector<1x128xf32> to vector<10x128xf32>
    %263 = arith.mulf %232, %262 : vector<10x128xf32>
    %264 = vector.broadcast %261 : vector<1x128xf32> to vector<10x128xf32>
    %265 = arith.mulf %233, %264 : vector<10x128xf32>
    %cst_109 = arith.constant dense<0.000000e+00> : vector<10x10xf32>
    %266 = tpu.matmul %263, %265, %cst_109 {dimension_numbers = #tpu.dot_dimension_numbers<[1], [1], [0], [0], [0, 0, 1, 0], [], []>} : vector<10x128xf32>, vector<10x128xf32>, vector<10x10xf32> -> vector<10x10xf32>
    %cst_110 = arith.constant 0.176776692 : f32
    %267 = vector.broadcast %cst_110 : f32 to vector<10x10xf32>
    %268 = arith.mulf %266, %267 : vector<10x10xf32>
    %269 = arith.addf %268, %5 : vector<10x10xf32>
    %cst_111 = arith.constant dense<0xFF800000> : vector<10xf32>
    %270 = vector.multi_reduction <maximumf>, %269, %cst_111 [1] : vector<10x10xf32> to vector<10xf32>
    %271 = vector.shape_cast %270 : vector<10xf32> to vector<10x1xf32>
    %272 = vector.broadcast %271 : vector<10x1xf32> to vector<10x10xf32>
    %273 = arith.subf %269, %272 : vector<10x10xf32>
    %274 = math.exp %273 : vector<10x10xf32>
    %cst_112 = arith.constant dense<0.000000e+00> : vector<10xf32>
    %275 = vector.multi_reduction <add>, %274, %cst_112 [1] : vector<10x10xf32> to vector<10xf32>
    %276 = vector.shape_cast %275 : vector<10xf32> to vector<10x1xf32>
    %277 = tpu.reciprocal %276 {approx = true} : vector<10x1xf32> -> vector<10x1xf32>
    %278 = vector.broadcast %277 : vector<10x1xf32> to vector<10x10xf32>
    %279 = arith.mulf %274, %278 : vector<10x10xf32>
    %280 = vector.broadcast %261 : vector<1x128xf32> to vector<10x128xf32>
    %281 = arith.mulf %234, %280 : vector<10x128xf32>
    %cst_113 = arith.constant dense<0.000000e+00> : vector<10x128xf32>
    %282 = tpu.matmul %279, %281, %cst_113 {dimension_numbers = #tpu.dot_dimension_numbers<[1], [0], [0], [1], [0, 0, 1, 1], [], []>} : vector<10x10xf32>, vector<10x128xf32>, vector<10x128xf32> -> vector<10x128xf32>
    %283 = arith.addf %259, %282 : vector<10x128xf32>
    %c2_114 = arith.constant 2 : index
    %c0_115 = arith.constant 0 : index
    %c0_116 = arith.constant 0 : index
    %284 = vector.load %arg5[%c2_114, %c0_115, %c0_116] : memref<4x1x128xf32, #tpu.memory_space<vmem>>, vector<1x1x128xf32>
    %285 = vector.shape_cast %284 : vector<1x1x128xf32> to vector<1x128xf32>
    %286 = vector.broadcast %285 : vector<1x128xf32> to vector<10x128xf32>
    %287 = arith.mulf %232, %286 : vector<10x128xf32>
    %288 = vector.broadcast %285 : vector<1x128xf32> to vector<10x128xf32>
    %289 = arith.mulf %233, %288 : vector<10x128xf32>
    %cst_117 = arith.constant dense<0.000000e+00> : vector<10x10xf32>
    %290 = tpu.matmul %287, %289, %cst_117 {dimension_numbers = #tpu.dot_dimension_numbers<[1], [1], [0], [0], [0, 0, 1, 0], [], []>} : vector<10x128xf32>, vector<10x128xf32>, vector<10x10xf32> -> vector<10x10xf32>
    %cst_118 = arith.constant 0.176776692 : f32
    %291 = vector.broadcast %cst_118 : f32 to vector<10x10xf32>
    %292 = arith.mulf %290, %291 : vector<10x10xf32>
    %293 = arith.addf %292, %5 : vector<10x10xf32>
    %cst_119 = arith.constant dense<0xFF800000> : vector<10xf32>
    %294 = vector.multi_reduction <maximumf>, %293, %cst_119 [1] : vector<10x10xf32> to vector<10xf32>
    %295 = vector.shape_cast %294 : vector<10xf32> to vector<10x1xf32>
    %296 = vector.broadcast %295 : vector<10x1xf32> to vector<10x10xf32>
    %297 = arith.subf %293, %296 : vector<10x10xf32>
    %298 = math.exp %297 : vector<10x10xf32>
    %cst_120 = arith.constant dense<0.000000e+00> : vector<10xf32>
    %299 = vector.multi_reduction <add>, %298, %cst_120 [1] : vector<10x10xf32> to vector<10xf32>
    %300 = vector.shape_cast %299 : vector<10xf32> to vector<10x1xf32>
    %301 = tpu.reciprocal %300 {approx = true} : vector<10x1xf32> -> vector<10x1xf32>
    %302 = vector.broadcast %301 : vector<10x1xf32> to vector<10x10xf32>
    %303 = arith.mulf %298, %302 : vector<10x10xf32>
    %304 = vector.broadcast %285 : vector<1x128xf32> to vector<10x128xf32>
    %305 = arith.mulf %234, %304 : vector<10x128xf32>
    %cst_121 = arith.constant dense<0.000000e+00> : vector<10x128xf32>
    %306 = tpu.matmul %303, %305, %cst_121 {dimension_numbers = #tpu.dot_dimension_numbers<[1], [0], [0], [1], [0, 0, 1, 1], [], []>} : vector<10x10xf32>, vector<10x128xf32>, vector<10x128xf32> -> vector<10x128xf32>
    %307 = arith.addf %283, %306 : vector<10x128xf32>
    %c3_122 = arith.constant 3 : index
    %c0_123 = arith.constant 0 : index
    %c0_124 = arith.constant 0 : index
    %308 = vector.load %arg5[%c3_122, %c0_123, %c0_124] : memref<4x1x128xf32, #tpu.memory_space<vmem>>, vector<1x1x128xf32>
    %309 = vector.shape_cast %308 : vector<1x1x128xf32> to vector<1x128xf32>
    %310 = vector.broadcast %309 : vector<1x128xf32> to vector<10x128xf32>
    %311 = arith.mulf %232, %310 : vector<10x128xf32>
    %312 = vector.broadcast %309 : vector<1x128xf32> to vector<10x128xf32>
    %313 = arith.mulf %233, %312 : vector<10x128xf32>
    %cst_125 = arith.constant dense<0.000000e+00> : vector<10x10xf32>
    %314 = tpu.matmul %311, %313, %cst_125 {dimension_numbers = #tpu.dot_dimension_numbers<[1], [1], [0], [0], [0, 0, 1, 0], [], []>} : vector<10x128xf32>, vector<10x128xf32>, vector<10x10xf32> -> vector<10x10xf32>
    %cst_126 = arith.constant 0.176776692 : f32
    %315 = vector.broadcast %cst_126 : f32 to vector<10x10xf32>
    %316 = arith.mulf %314, %315 : vector<10x10xf32>
    %317 = arith.addf %316, %5 : vector<10x10xf32>
    %cst_127 = arith.constant dense<0xFF800000> : vector<10xf32>
    %318 = vector.multi_reduction <maximumf>, %317, %cst_127 [1] : vector<10x10xf32> to vector<10xf32>
    %319 = vector.shape_cast %318 : vector<10xf32> to vector<10x1xf32>
    %320 = vector.broadcast %319 : vector<10x1xf32> to vector<10x10xf32>
    %321 = arith.subf %317, %320 : vector<10x10xf32>
    %322 = math.exp %321 : vector<10x10xf32>
    %cst_128 = arith.constant dense<0.000000e+00> : vector<10xf32>
    %323 = vector.multi_reduction <add>, %322, %cst_128 [1] : vector<10x10xf32> to vector<10xf32>
    %324 = vector.shape_cast %323 : vector<10xf32> to vector<10x1xf32>
    %325 = tpu.reciprocal %324 {approx = true} : vector<10x1xf32> -> vector<10x1xf32>
    %326 = vector.broadcast %325 : vector<10x1xf32> to vector<10x10xf32>
    %327 = arith.mulf %322, %326 : vector<10x10xf32>
    %328 = vector.broadcast %309 : vector<1x128xf32> to vector<10x128xf32>
    %329 = arith.mulf %234, %328 : vector<10x128xf32>
    %cst_129 = arith.constant dense<0.000000e+00> : vector<10x128xf32>
    %330 = tpu.matmul %327, %329, %cst_129 {dimension_numbers = #tpu.dot_dimension_numbers<[1], [0], [0], [1], [0, 0, 1, 1], [], []>} : vector<10x10xf32>, vector<10x128xf32>, vector<10x128xf32> -> vector<10x128xf32>
    %331 = arith.addf %307, %330 : vector<10x128xf32>
    %c1_130 = arith.constant 1 : index
    %c0_131 = arith.constant 0 : index
    %c0_132 = arith.constant 0 : index
    %332 = vector.load %arg10[%c1_130, %c0_131, %c0_132] : memref<2x128x128xf32, #tpu.memory_space<vmem>>, vector<1x128x128xf32>
    %333 = vector.shape_cast %332 : vector<1x128x128xf32> to vector<128x128xf32>
    %cst_133 = arith.constant dense<0.000000e+00> : vector<10x128xf32>
    %334 = tpu.matmul %331, %333, %cst_133 {dimension_numbers = #tpu.dot_dimension_numbers<[1], [0], [0], [1], [0, 0, 1, 1], [], []>} : vector<10x128xf32>, vector<128x128xf32>, vector<10x128xf32> -> vector<10x128xf32>
    %335 = arith.addf %198, %334 : vector<10x128xf32>
    %c1_134 = arith.constant 1 : index
    %c0_135 = arith.constant 0 : index
    %c0_136 = arith.constant 0 : index
    %336 = vector.load %arg11[%c1_134, %c0_135, %c0_136] : memref<2x1x128xf32, #tpu.memory_space<vmem>>, vector<1x1x128xf32>
    %337 = vector.shape_cast %336 : vector<1x1x128xf32> to vector<1x128xf32>
    %338 = vector.broadcast %337 : vector<1x128xf32> to vector<10x128xf32>
    %339 = arith.addf %335, %338 : vector<10x128xf32>
    %340 = vector.extract_strided_slice %200 {offsets = [2, 0], sizes = [1, 128], strides = [1, 1]} : vector<4x128xf32> to vector<1x128xf32>
    %341 = vector.extract_strided_slice %200 {offsets = [3, 0], sizes = [1, 128], strides = [1, 1]} : vector<4x128xf32> to vector<1x128xf32>
    %cst_137 = arith.constant dense<0.000000e+00> : vector<10xf32>
    %342 = vector.multi_reduction <add>, %339, %cst_137 [1] : vector<10x128xf32> to vector<10xf32>
    %343 = vector.shape_cast %342 : vector<10xf32> to vector<10x1xf32>
    %cst_138 = arith.constant 1.280000e+02 : f32
    %344 = vector.broadcast %cst_138 : f32 to vector<10x1xf32>
    %345 = arith.divf %343, %344 : vector<10x1xf32>
    %346 = vector.broadcast %345 : vector<10x1xf32> to vector<10x128xf32>
    %347 = arith.subf %339, %346 : vector<10x128xf32>
    %348 = arith.mulf %347, %347 : vector<10x128xf32>
    %cst_139 = arith.constant dense<0.000000e+00> : vector<10xf32>
    %349 = vector.multi_reduction <add>, %348, %cst_139 [1] : vector<10x128xf32> to vector<10xf32>
    %350 = vector.shape_cast %349 : vector<10xf32> to vector<10x1xf32>
    %cst_140 = arith.constant 1.280000e+02 : f32
    %351 = vector.broadcast %cst_140 : f32 to vector<10x1xf32>
    %352 = arith.divf %350, %351 : vector<10x1xf32>
    %353 = vector.broadcast %345 : vector<10x1xf32> to vector<10x128xf32>
    %354 = arith.subf %339, %353 : vector<10x128xf32>
    %cst_141 = arith.constant 9.99999997E-7 : f32
    %355 = vector.broadcast %cst_141 : f32 to vector<10x1xf32>
    %356 = arith.addf %352, %355 : vector<10x1xf32>
    %357 = math.rsqrt %356 : vector<10x1xf32>
    %358 = vector.broadcast %357 : vector<10x1xf32> to vector<10x128xf32>
    %359 = arith.mulf %354, %358 : vector<10x128xf32>
    %360 = vector.broadcast %340 : vector<1x128xf32> to vector<10x128xf32>
    %361 = arith.mulf %359, %360 : vector<10x128xf32>
    %362 = vector.broadcast %341 : vector<1x128xf32> to vector<10x128xf32>
    %363 = arith.addf %361, %362 : vector<10x128xf32>
    %c1_142 = arith.constant 1 : index
    %c0_143 = arith.constant 0 : index
    %c0_144 = arith.constant 0 : index
    %364 = vector.load %arg12[%c1_142, %c0_143, %c0_144] : memref<2x128x256xf32, #tpu.memory_space<vmem>>, vector<1x128x256xf32>
    %365 = vector.shape_cast %364 : vector<1x128x256xf32> to vector<128x256xf32>
    %cst_145 = arith.constant dense<0.000000e+00> : vector<10x256xf32>
    %366 = tpu.matmul %363, %365, %cst_145 {dimension_numbers = #tpu.dot_dimension_numbers<[1], [0], [0], [1], [0, 0, 1, 1], [], []>} : vector<10x128xf32>, vector<128x256xf32>, vector<10x256xf32> -> vector<10x256xf32>
    %c1_146 = arith.constant 1 : index
    %c0_147 = arith.constant 0 : index
    %c0_148 = arith.constant 0 : index
    %367 = vector.load %arg13[%c1_146, %c0_147, %c0_148] : memref<2x1x256xf32, #tpu.memory_space<vmem>>, vector<1x1x256xf32>
    %368 = vector.shape_cast %367 : vector<1x1x256xf32> to vector<1x256xf32>
    %369 = vector.broadcast %368 : vector<1x256xf32> to vector<10x256xf32>
    %370 = arith.addf %366, %369 : vector<10x256xf32>
    %cst_149 = arith.constant 5.000000e-01 : f32
    %371 = vector.broadcast %cst_149 : f32 to vector<10x256xf32>
    %372 = arith.mulf %371, %370 : vector<10x256xf32>
    %cst_150 = arith.constant 4.471500e-02 : f32
    %373 = vector.broadcast %cst_150 : f32 to vector<10x256xf32>
    %374 = arith.mulf %373, %370 : vector<10x256xf32>
    %375 = arith.mulf %374, %370 : vector<10x256xf32>
    %376 = arith.mulf %375, %370 : vector<10x256xf32>
    %377 = arith.addf %370, %376 : vector<10x256xf32>
    %cst_151 = arith.constant 0.797884583 : f32
    %378 = vector.broadcast %cst_151 : f32 to vector<10x256xf32>
    %379 = arith.mulf %378, %377 : vector<10x256xf32>
    %380 = math.tanh %379 : vector<10x256xf32>
    %cst_152 = arith.constant 1.000000e+00 : f32
    %381 = vector.broadcast %cst_152 : f32 to vector<10x256xf32>
    %382 = arith.addf %381, %380 : vector<10x256xf32>
    %383 = arith.mulf %372, %382 : vector<10x256xf32>
    %c1_153 = arith.constant 1 : index
    %c0_154 = arith.constant 0 : index
    %c0_155 = arith.constant 0 : index
    %384 = vector.load %arg14[%c1_153, %c0_154, %c0_155] : memref<2x256x128xf32, #tpu.memory_space<vmem>>, vector<1x256x128xf32>
    %385 = vector.shape_cast %384 : vector<1x256x128xf32> to vector<256x128xf32>
    %cst_156 = arith.constant dense<0.000000e+00> : vector<10x128xf32>
    %386 = tpu.matmul %383, %385, %cst_156 {dimension_numbers = #tpu.dot_dimension_numbers<[1], [0], [0], [1], [0, 0, 1, 1], [], []>} : vector<10x256xf32>, vector<256x128xf32>, vector<10x128xf32> -> vector<10x128xf32>
    %387 = arith.addf %339, %386 : vector<10x128xf32>
    %c1_157 = arith.constant 1 : index
    %c0_158 = arith.constant 0 : index
    %c0_159 = arith.constant 0 : index
    %388 = vector.load %arg15[%c1_157, %c0_158, %c0_159] : memref<2x1x128xf32, #tpu.memory_space<vmem>>, vector<1x1x128xf32>
    %389 = vector.shape_cast %388 : vector<1x1x128xf32> to vector<1x128xf32>
    %390 = vector.broadcast %389 : vector<1x128xf32> to vector<10x128xf32>
    %391 = arith.addf %387, %390 : vector<10x128xf32>
    %c0_160 = arith.constant 0 : index
    %c0_161 = arith.constant 0 : index
    %392 = vector.load %arg16[%c0_160, %c0_161] : memref<2x128xf32, #tpu.memory_space<vmem>>, vector<2x128xf32>
    %393 = vector.extract_strided_slice %392 {offsets = [0, 0], sizes = [1, 128], strides = [1, 1]} : vector<2x128xf32> to vector<1x128xf32>
    %394 = vector.extract_strided_slice %392 {offsets = [1, 0], sizes = [1, 128], strides = [1, 1]} : vector<2x128xf32> to vector<1x128xf32>
    %cst_162 = arith.constant dense<0.000000e+00> : vector<10xf32>
    %395 = vector.multi_reduction <add>, %391, %cst_162 [1] : vector<10x128xf32> to vector<10xf32>
    %396 = vector.shape_cast %395 : vector<10xf32> to vector<10x1xf32>
    %cst_163 = arith.constant 1.280000e+02 : f32
    %397 = vector.broadcast %cst_163 : f32 to vector<10x1xf32>
    %398 = arith.divf %396, %397 : vector<10x1xf32>
    %399 = vector.broadcast %398 : vector<10x1xf32> to vector<10x128xf32>
    %400 = arith.subf %391, %399 : vector<10x128xf32>
    %401 = arith.mulf %400, %400 : vector<10x128xf32>
    %cst_164 = arith.constant dense<0.000000e+00> : vector<10xf32>
    %402 = vector.multi_reduction <add>, %401, %cst_164 [1] : vector<10x128xf32> to vector<10xf32>
    %403 = vector.shape_cast %402 : vector<10xf32> to vector<10x1xf32>
    %cst_165 = arith.constant 1.280000e+02 : f32
    %404 = vector.broadcast %cst_165 : f32 to vector<10x1xf32>
    %405 = arith.divf %403, %404 : vector<10x1xf32>
    %406 = vector.broadcast %398 : vector<10x1xf32> to vector<10x128xf32>
    %407 = arith.subf %391, %406 : vector<10x128xf32>
    %cst_166 = arith.constant 9.99999997E-7 : f32
    %408 = vector.broadcast %cst_166 : f32 to vector<10x1xf32>
    %409 = arith.addf %405, %408 : vector<10x1xf32>
    %410 = math.rsqrt %409 : vector<10x1xf32>
    %411 = vector.broadcast %410 : vector<10x1xf32> to vector<10x128xf32>
    %412 = arith.mulf %407, %411 : vector<10x128xf32>
    %413 = vector.broadcast %393 : vector<1x128xf32> to vector<10x128xf32>
    %414 = arith.mulf %412, %413 : vector<10x128xf32>
    %415 = vector.broadcast %394 : vector<1x128xf32> to vector<10x128xf32>
    %416 = arith.addf %414, %415 : vector<10x128xf32>
    %c0_167 = arith.constant 0 : index
    %c0_168 = arith.constant 0 : index
    %417 = vector.load %arg6[%c0_167, %c0_168] : memref<2x10xf32, #tpu.memory_space<vmem>>, vector<2x10xf32>
    %cst_169 = arith.constant dense<0.000000e+00> : vector<2x128xf32>
    %418 = tpu.matmul %417, %416, %cst_169 {dimension_numbers = #tpu.dot_dimension_numbers<[1], [0], [0], [1], [0, 0, 1, 1], [], []>} : vector<2x10xf32>, vector<10x128xf32>, vector<2x128xf32> -> vector<2x128xf32>
    %cst_170 = arith.constant dense<0.000000e+00> : vector<2xf32>
    %419 = vector.multi_reduction <add>, %418, %cst_170 [1] : vector<2x128xf32> to vector<2xf32>
    %420 = vector.shape_cast %419 : vector<2xf32> to vector<2x1xf32>
    %cst_171 = arith.constant 1.280000e+02 : f32
    %421 = vector.broadcast %cst_171 : f32 to vector<2x1xf32>
    %422 = arith.divf %420, %421 : vector<2x1xf32>
    %423 = vector.broadcast %422 : vector<2x1xf32> to vector<2x128xf32>
    %424 = arith.subf %418, %423 : vector<2x128xf32>
    %425 = arith.mulf %424, %424 : vector<2x128xf32>
    %cst_172 = arith.constant dense<0.000000e+00> : vector<2xf32>
    %426 = vector.multi_reduction <add>, %425, %cst_172 [1] : vector<2x128xf32> to vector<2xf32>
    %427 = vector.shape_cast %426 : vector<2xf32> to vector<2x1xf32>
    %cst_173 = arith.constant 1.280000e+02 : f32
    %428 = vector.broadcast %cst_173 : f32 to vector<2x1xf32>
    %429 = arith.divf %427, %428 : vector<2x1xf32>
    %430 = vector.broadcast %422 : vector<2x1xf32> to vector<2x128xf32>
    %431 = arith.subf %418, %430 : vector<2x128xf32>
    %cst_174 = arith.constant 9.99999974E-6 : f32
    %432 = vector.broadcast %cst_174 : f32 to vector<2x1xf32>
    %433 = arith.addf %429, %432 : vector<2x1xf32>
    %434 = math.rsqrt %433 : vector<2x1xf32>
    %435 = vector.broadcast %434 : vector<2x1xf32> to vector<2x128xf32>
    %436 = arith.mulf %431, %435 : vector<2x128xf32>
    %c0_175 = arith.constant 0 : index
    %c0_176 = arith.constant 0 : index
    %437 = vector.load %arg17[%c0_175, %c0_176] : memref<128x384xf32, #tpu.memory_space<vmem>>, vector<128x384xf32>
    %cst_177 = arith.constant dense<0.000000e+00> : vector<2x384xf32>
    %438 = tpu.matmul %436, %437, %cst_177 {dimension_numbers = #tpu.dot_dimension_numbers<[1], [0], [0], [1], [0, 0, 1, 1], [], []>} : vector<2x128xf32>, vector<128x384xf32>, vector<2x384xf32> -> vector<2x384xf32>
    %c0_178 = arith.constant 0 : index
    %c0_179 = arith.constant 0 : index
    %439 = vector.load %arg18[%c0_178, %c0_179] : memref<1x384xf32, #tpu.memory_space<vmem>>, vector<1x384xf32>
    %440 = vector.broadcast %439 : vector<1x384xf32> to vector<2x384xf32>
    %441 = arith.addf %438, %440 : vector<2x384xf32>
    %cst_180 = arith.constant 0.000000e+00 : f32
    %442 = vector.broadcast %cst_180 : f32 to vector<2x384xf32>
    %443 = arith.maximumf %441, %442 : vector<2x384xf32>
    %444 = vector.extract_strided_slice %443 {offsets = [0, 0], sizes = [2, 128], strides = [1, 1]} : vector<2x384xf32> to vector<2x128xf32>
    %c0_181 = arith.constant 0 : index
    %c0_182 = arith.constant 0 : index
    %c0_183 = arith.constant 0 : index
    %445 = vector.load %arg19[%c0_181, %c0_182, %c0_183] : memref<3x128x2xf32, #tpu.memory_space<vmem>>, vector<1x128x2xf32>
    %446 = vector.shape_cast %445 : vector<1x128x2xf32> to vector<128x2xf32>
    %cst_184 = arith.constant dense<0.000000e+00> : vector<2x2xf32>
    %447 = tpu.matmul %444, %446, %cst_184 {dimension_numbers = #tpu.dot_dimension_numbers<[1], [0], [0], [1], [0, 0, 1, 1], [], []>} : vector<2x128xf32>, vector<128x2xf32>, vector<2x2xf32> -> vector<2x2xf32>
    %c0_185 = arith.constant 0 : index
    %c0_186 = arith.constant 0 : index
    %c0_187 = arith.constant 0 : index
    %448 = vector.load %arg20[%c0_185, %c0_186, %c0_187] : memref<3x1x2xf32, #tpu.memory_space<vmem>>, vector<1x1x2xf32>
    %449 = vector.shape_cast %448 : vector<1x1x2xf32> to vector<1x2xf32>
    %450 = vector.broadcast %449 : vector<1x2xf32> to vector<2x2xf32>
    %451 = arith.addf %447, %450 : vector<2x2xf32>
    %cst_188 = arith.constant dense<0xFF800000> : vector<2xf32>
    %452 = vector.multi_reduction <maximumf>, %451, %cst_188 [1] : vector<2x2xf32> to vector<2xf32>
    %453 = vector.shape_cast %452 : vector<2xf32> to vector<2x1xf32>
    %454 = vector.broadcast %453 : vector<2x1xf32> to vector<2x2xf32>
    %455 = arith.subf %451, %454 : vector<2x2xf32>
    %456 = math.exp %455 : vector<2x2xf32>
    %cst_189 = arith.constant dense<0.000000e+00> : vector<2xf32>
    %457 = vector.multi_reduction <add>, %456, %cst_189 [1] : vector<2x2xf32> to vector<2xf32>
    %458 = vector.shape_cast %457 : vector<2xf32> to vector<2x1xf32>
    %459 = tpu.reciprocal %458 {approx = true} : vector<2x1xf32> -> vector<2x1xf32>
    %460 = vector.broadcast %459 : vector<2x1xf32> to vector<2x2xf32>
    %461 = arith.mulf %456, %460 : vector<2x2xf32>
    %c0_190 = arith.constant 0 : index
    %c0_191 = arith.constant 0 : index
    %c0_192 = arith.constant 0 : index
    %462 = vector.load %arg21[%c0_190, %c0_191, %c0_192] : memref<3x2x2xf32, #tpu.memory_space<vmem>>, vector<1x2x2xf32>
    %463 = vector.shape_cast %462 : vector<1x2x2xf32> to vector<2x2xf32>
    %464 = vector.shape_cast %461 : vector<2x2xf32> to vector<1x2x2xf32>
    tpu.vector_store %arg21[%c0_190, %c0_191, %c0_192], %464 {strides = array<i32>} : memref<3x2x2xf32, #tpu.memory_space<vmem>>, vector<1x2x2xf32>,
    %465 = vector.extract_strided_slice %443 {offsets = [0, 128], sizes = [2, 128], strides = [1, 1]} : vector<2x384xf32> to vector<2x128xf32>
    %c1_193 = arith.constant 1 : index
    %c0_194 = arith.constant 0 : index
    %c0_195 = arith.constant 0 : index
    %466 = vector.load %arg19[%c1_193, %c0_194, %c0_195] : memref<3x128x2xf32, #tpu.memory_space<vmem>>, vector<1x128x2xf32>
    %467 = vector.shape_cast %466 : vector<1x128x2xf32> to vector<128x2xf32>
    %cst_196 = arith.constant dense<0.000000e+00> : vector<2x2xf32>
    %468 = tpu.matmul %465, %467, %cst_196 {dimension_numbers = #tpu.dot_dimension_numbers<[1], [0], [0], [1], [0, 0, 1, 1], [], []>} : vector<2x128xf32>, vector<128x2xf32>, vector<2x2xf32> -> vector<2x2xf32>
    %c1_197 = arith.constant 1 : index
    %c0_198 = arith.constant 0 : index
    %c0_199 = arith.constant 0 : index
    %469 = vector.load %arg20[%c1_197, %c0_198, %c0_199] : memref<3x1x2xf32, #tpu.memory_space<vmem>>, vector<1x1x2xf32>
    %470 = vector.shape_cast %469 : vector<1x1x2xf32> to vector<1x2xf32>
    %471 = vector.broadcast %470 : vector<1x2xf32> to vector<2x2xf32>
    %472 = arith.addf %468, %471 : vector<2x2xf32>
    %cst_200 = arith.constant dense<0xFF800000> : vector<2xf32>
    %473 = vector.multi_reduction <maximumf>, %472, %cst_200 [1] : vector<2x2xf32> to vector<2xf32>
    %474 = vector.shape_cast %473 : vector<2xf32> to vector<2x1xf32>
    %475 = vector.broadcast %474 : vector<2x1xf32> to vector<2x2xf32>
    %476 = arith.subf %472, %475 : vector<2x2xf32>
    %477 = math.exp %476 : vector<2x2xf32>
    %cst_201 = arith.constant dense<0.000000e+00> : vector<2xf32>
    %478 = vector.multi_reduction <add>, %477, %cst_201 [1] : vector<2x2xf32> to vector<2xf32>
    %479 = vector.shape_cast %478 : vector<2xf32> to vector<2x1xf32>
    %480 = tpu.reciprocal %479 {approx = true} : vector<2x1xf32> -> vector<2x1xf32>
    %481 = vector.broadcast %480 : vector<2x1xf32> to vector<2x2xf32>
    %482 = arith.mulf %477, %481 : vector<2x2xf32>
    %c1_202 = arith.constant 1 : index
    %c0_203 = arith.constant 0 : index
    %c0_204 = arith.constant 0 : index
    %483 = vector.load %arg21[%c1_202, %c0_203, %c0_204] : memref<3x2x2xf32, #tpu.memory_space<vmem>>, vector<1x2x2xf32>
    %484 = vector.shape_cast %483 : vector<1x2x2xf32> to vector<2x2xf32>
    %485 = vector.shape_cast %482 : vector<2x2xf32> to vector<1x2x2xf32>
    tpu.vector_store %arg21[%c1_202, %c0_203, %c0_204], %485 {strides = array<i32>} : memref<3x2x2xf32, #tpu.memory_space<vmem>>, vector<1x2x2xf32>,
    %486 = vector.extract_strided_slice %443 {offsets = [0, 256], sizes = [2, 128], strides = [1, 1]} : vector<2x384xf32> to vector<2x128xf32>
    %c2_205 = arith.constant 2 : index
    %c0_206 = arith.constant 0 : index
    %c0_207 = arith.constant 0 : index
    %487 = vector.load %arg19[%c2_205, %c0_206, %c0_207] : memref<3x128x2xf32, #tpu.memory_space<vmem>>, vector<1x128x2xf32>
    %488 = vector.shape_cast %487 : vector<1x128x2xf32> to vector<128x2xf32>
    %cst_208 = arith.constant dense<0.000000e+00> : vector<2x2xf32>
    %489 = tpu.matmul %486, %488, %cst_208 {dimension_numbers = #tpu.dot_dimension_numbers<[1], [0], [0], [1], [0, 0, 1, 1], [], []>} : vector<2x128xf32>, vector<128x2xf32>, vector<2x2xf32> -> vector<2x2xf32>
    %c2_209 = arith.constant 2 : index
    %c0_210 = arith.constant 0 : index
    %c0_211 = arith.constant 0 : index
    %490 = vector.load %arg20[%c2_209, %c0_210, %c0_211] : memref<3x1x2xf32, #tpu.memory_space<vmem>>, vector<1x1x2xf32>
    %491 = vector.shape_cast %490 : vector<1x1x2xf32> to vector<1x2xf32>
    %492 = vector.broadcast %491 : vector<1x2xf32> to vector<2x2xf32>
    %493 = arith.addf %489, %492 : vector<2x2xf32>
    %cst_212 = arith.constant dense<0xFF800000> : vector<2xf32>
    %494 = vector.multi_reduction <maximumf>, %493, %cst_212 [1] : vector<2x2xf32> to vector<2xf32>
    %495 = vector.shape_cast %494 : vector<2xf32> to vector<2x1xf32>
    %496 = vector.broadcast %495 : vector<2x1xf32> to vector<2x2xf32>
    %497 = arith.subf %493, %496 : vector<2x2xf32>
    %498 = math.exp %497 : vector<2x2xf32>
    %cst_213 = arith.constant dense<0.000000e+00> : vector<2xf32>
    %499 = vector.multi_reduction <add>, %498, %cst_213 [1] : vector<2x2xf32> to vector<2xf32>
    %500 = vector.shape_cast %499 : vector<2xf32> to vector<2x1xf32>
    %501 = tpu.reciprocal %500 {approx = true} : vector<2x1xf32> -> vector<2x1xf32>
    %502 = vector.broadcast %501 : vector<2x1xf32> to vector<2x2xf32>
    %503 = arith.mulf %498, %502 : vector<2x2xf32>
    %c2_214 = arith.constant 2 : index
    %c0_215 = arith.constant 0 : index
    %c0_216 = arith.constant 0 : index
    %504 = vector.load %arg21[%c2_214, %c0_215, %c0_216] : memref<3x2x2xf32, #tpu.memory_space<vmem>>, vector<1x2x2xf32>
    %505 = vector.shape_cast %504 : vector<1x2x2xf32> to vector<2x2xf32>
    %506 = vector.shape_cast %503 : vector<2x2xf32> to vector<1x2x2xf32>
    tpu.vector_store %arg21[%c2_214, %c0_215, %c0_216], %506 {strides = array<i32>} : memref<3x2x2xf32, #tpu.memory_space<vmem>>, vector<1x2x2xf32>,
    return
  }
  func.func @transform_0(%arg0: i32) -> (i32, i32) {
    %c0_i32 = arith.constant 0 : i32
    %c0_i32_0 = arith.constant 0 : i32
    %c0_i32_1 = arith.constant 0 : i32
    return %c0_i32, %c0_i32_0 : i32, i32
  }
  func.func @transform_1(%arg0: i32) -> (i32, i32) {
    %c0_i32 = arith.constant 0 : i32
    %c0_i32_0 = arith.constant 0 : i32
    %c0_i32_1 = arith.constant 0 : i32
    return %c0_i32, %c0_i32_0 : i32, i32
  }
  func.func @transform_2(%arg0: i32) -> (i32, i32) {
    %c0_i32 = arith.constant 0 : i32
    %c0_i32_0 = arith.constant 0 : i32
    %c0_i32_1 = arith.constant 0 : i32
    return %c0_i32, %c0_i32_0 : i32, i32
  }
  func.func @transform_3(%arg0: i32) -> (i32, i32) {
    %c0_i32 = arith.constant 0 : i32
    %c0_i32_0 = arith.constant 0 : i32
    %c0_i32_1 = arith.constant 0 : i32
    return %c0_i32, %c0_i32_0 : i32, i32
  }
  func.func @transform_4(%arg0: i32) -> (i32, i32, i32) {
    %c0_i32 = arith.constant 0 : i32
    %c0_i32_0 = arith.constant 0 : i32
    %c0_i32_1 = arith.constant 0 : i32
    %c0_i32_2 = arith.constant 0 : i32
    return %c0_i32, %c0_i32_0, %c0_i32_1 : i32, i32, i32
  }
  func.func @transform_5(%arg0: i32) -> (i32, i32) {
    %c0_i32 = arith.constant 0 : i32
    %c0_i32_0 = arith.constant 0 : i32
    %c0_i32_1 = arith.constant 0 : i32
    return %c0_i32, %c0_i32_0 : i32, i32
  }
  func.func @transform_6(%arg0: i32) -> (i32, i32, i32) {
    %c0_i32 = arith.constant 0 : i32
    %c0_i32_0 = arith.constant 0 : i32
    %c0_i32_1 = arith.constant 0 : i32
    %c0_i32_2 = arith.constant 0 : i32
    return %c0_i32, %c0_i32_0, %c0_i32_1 : i32, i32, i32
  }
  func.func @transform_7(%arg0: i32) -> (i32, i32, i32) {
    %c0_i32 = arith.constant 0 : i32
    %c0_i32_0 = arith.constant 0 : i32
    %c0_i32_1 = arith.constant 0 : i32
    %c0_i32_2 = arith.constant 0 : i32
    return %c0_i32, %c0_i32_0, %c0_i32_1 : i32, i32, i32
  }
  func.func @transform_8(%arg0: i32) -> (i32, i32, i32) {
    %c0_i32 = arith.constant 0 : i32
    %c0_i32_0 = arith.constant 0 : i32
    %c0_i32_1 = arith.constant 0 : i32
    %c0_i32_2 = arith.constant 0 : i32
    return %c0_i32, %c0_i32_0, %c0_i32_1 : i32, i32, i32
  }
  func.func @transform_9(%arg0: i32) -> (i32, i32, i32) {
    %c0_i32 = arith.constant 0 : i32
    %c0_i32_0 = arith.constant 0 : i32
    %c0_i32_1 = arith.constant 0 : i32
    %c0_i32_2 = arith.constant 0 : i32
    return %c0_i32, %c0_i32_0, %c0_i32_1 : i32, i32, i32
  }
  func.func @transform_10(%arg0: i32) -> (i32, i32, i32) {
    %c0_i32 = arith.constant 0 : i32
    %c0_i32_0 = arith.constant 0 : i32
    %c0_i32_1 = arith.constant 0 : i32
    %c0_i32_2 = arith.constant 0 : i32
    return %c0_i32, %c0_i32_0, %c0_i32_1 : i32, i32, i32
  }
  func.func @transform_11(%arg0: i32) -> (i32, i32, i32) {
    %c0_i32 = arith.constant 0 : i32
    %c0_i32_0 = arith.constant 0 : i32
    %c0_i32_1 = arith.constant 0 : i32
    %c0_i32_2 = arith.constant 0 : i32
    return %c0_i32, %c0_i32_0, %c0_i32_1 : i32, i32, i32
  }
  func.func @transform_12(%arg0: i32) -> (i32, i32, i32) {
    %c0_i32 = arith.constant 0 : i32
    %c0_i32_0 = arith.constant 0 : i32
    %c0_i32_1 = arith.constant 0 : i32
    %c0_i32_2 = arith.constant 0 : i32
    return %c0_i32, %c0_i32_0, %c0_i32_1 : i32, i32, i32
  }
  func.func @transform_13(%arg0: i32) -> (i32, i32, i32) {
    %c0_i32 = arith.constant 0 : i32
    %c0_i32_0 = arith.constant 0 : i32
    %c0_i32_1 = arith.constant 0 : i32
    %c0_i32_2 = arith.constant 0 : i32
    return %c0_i32, %c0_i32_0, %c0_i32_1 : i32, i32, i32
  }
  func.func @transform_14(%arg0: i32) -> (i32, i32, i32) {
    %c0_i32 = arith.constant 0 : i32
    %c0_i32_0 = arith.constant 0 : i32
    %c0_i32_1 = arith.constant 0 : i32
    %c0_i32_2 = arith.constant 0 : i32
    return %c0_i32, %c0_i32_0, %c0_i32_1 : i32, i32, i32
  }
  func.func @transform_15(%arg0: i32) -> (i32, i32) {
    %c0_i32 = arith.constant 0 : i32
    %c0_i32_0 = arith.constant 0 : i32
    %c0_i32_1 = arith.constant 0 : i32
    return %c0_i32, %c0_i32_0 : i32, i32
  }
  func.func @transform_16(%arg0: i32) -> (i32, i32) {
    %c0_i32 = arith.constant 0 : i32
    %c0_i32_0 = arith.constant 0 : i32
    %c0_i32_1 = arith.constant 0 : i32
    return %c0_i32, %c0_i32_0 : i32, i32
  }
  func.func @transform_17(%arg0: i32) -> (i32, i32) {
    %c0_i32 = arith.constant 0 : i32
    %c0_i32_0 = arith.constant 0 : i32
    %c0_i32_1 = arith.constant 0 : i32
    return %c0_i32, %c0_i32_0 : i32, i32
  }
  func.func @transform_18(%arg0: i32) -> (i32, i32, i32) {
    %c0_i32 = arith.constant 0 : i32
    %c0_i32_0 = arith.constant 0 : i32
    %c0_i32_1 = arith.constant 0 : i32
    %c0_i32_2 = arith.constant 0 : i32
    return %c0_i32, %c0_i32_0, %c0_i32_1 : i32, i32, i32
  }
  func.func @transform_19(%arg0: i32) -> (i32, i32, i32) {
    %c0_i32 = arith.constant 0 : i32
    %c0_i32_0 = arith.constant 0 : i32
    %c0_i32_1 = arith.constant 0 : i32
    %c0_i32_2 = arith.constant 0 : i32
    return %c0_i32, %c0_i32_0, %c0_i32_1 : i32, i32, i32
  }
  func.func @transform_20(%arg0: i32) -> (i32, i32, i32) {
    %c0_i32 = arith.constant 0 : i32
    %c0_i32_0 = arith.constant 0 : i32
    %c0_i32_1 = arith.constant 0 : i32
    %c0_i32_2 = arith.constant 0 : i32
    return %c0_i32, %c0_i32_0, %c0_i32_1 : i32, i32, i32
  }
}

</mosaic_0001>

<llo_original>
// kernel: tpu_custom_call.1
$region0: #{tpu_custom_call.1}
  #allocation0 [shape = 'u32[]', space=smem, size = 0x4, offset = 0x4, fixed_abs, tag = 'smem constant byte address 0x4 - core index']
  #allocation1 [shape = 'u32[72,128]{1,0:T(1,128)}', space=vmem, size = 0x9000, scoped, tag = 'internal scratch']
  %s0 = inlined_call_operand.hbm [shape: f32[10,192], index: 0, kind: input, shape index: {}]
  %s1 = inlined_call_operand.hbm [shape: f32[192,128], index: 1, kind: input, shape index: {}]
  %s2 = inlined_call_operand.hbm [shape: f32[10,128], index: 2, kind: input, shape index: {}]
  %s3 = inlined_call_operand.hbm [shape: f32[10,10], index: 3, kind: input, shape index: {}]
  %s4 = inlined_call_operand.hbm [shape: f32[4,1,128], index: 4, kind: input, shape index: {}]
  %s5 = inlined_call_operand.hbm [shape: f32[2,10], index: 5, kind: input, shape index: {}]
  %s6 = inlined_call_operand.vmem [shape: f32[2,4,128], index: 6, kind: input, shape index: {}]
  %s7 = inlined_call_operand.hbm [shape: f32[2,128,384], index: 7, kind: input, shape index: {}]
  %s8 = inlined_call_operand.hbm [shape: f32[2,1,384], index: 8, kind: input, shape index: {}]
  %s9 = inlined_call_operand.hbm [shape: f32[2,128,128], index: 9, kind: input, shape index: {}]
  %s10 = inlined_call_operand.hbm [shape: f32[2,1,128], index: 10, kind: input, shape index: {}]
  %s11 = inlined_call_operand.hbm [shape: f32[2,128,256], index: 11, kind: input, shape index: {}]
  %s12 = inlined_call_operand.vmem [shape: f32[2,1,256], index: 12, kind: input, shape index: {}]
  %s13 = inlined_call_operand.hbm [shape: f32[2,256,128], index: 13, kind: input, shape index: {}]
  %s14 = inlined_call_operand.hbm [shape: f32[2,1,128], index: 14, kind: input, shape index: {}]
  %s15 = inlined_call_operand.vmem [shape: f32[2,128], index: 15, kind: input, shape index: {}]
  %s16 = inlined_call_operand.vmem [shape: f32[128,384], index: 16, kind: input, shape index: {}]
  %s17 = inlined_call_operand.vmem [shape: f32[1,384], index: 17, kind: input, shape index: {}]
  %s18 = inlined_call_operand.vmem [shape: f32[3,128,2], index: 18, kind: input, shape index: {}]
  %s19 = inlined_call_operand.vmem [shape: f32[3,1,2], index: 19, kind: input, shape index: {}]
  %s20 = inlined_call_operand.vmem [shape: f32[3,2,2], index: 20, kind: output, shape index: {}]
  %s21 = sld [smem:[#allocation0]]
  $region142: #{tpu_custom_call.1} parent=0
    _
  %s23 = ssub.s32 1, %s21
  %s24 = scalar_select 0, %s23, %s21
  $region1: #{tpu_custom_call.1} parent=0
    #allocation2 [shape = 'u8[16384]{0}', space=vmem, size = 0x4000, scoped, tag = 'input window, operand 0, single buffered']
    #allocation3 [shape = 's32[1]{0}', space=sflag, size = 0x4, scoped, tag = 'scoped memory for tpu_custom_call.1']
    #allocation4 [shape = 'u8[98304]{0}', space=vmem, size = 0x18000, scoped, tag = 'input window, operand 1, single buffered']
    #allocation5 [shape = 's32[1]{0}', space=sflag, size = 0x4, scoped, tag = 'scoped memory for tpu_custom_call.1']
    #allocation6 [shape = 'u8[8192]{0}', space=vmem, size = 0x2000, scoped, tag = 'input window, operand 2, single buffered']
    #allocation7 [shape = 'u8[8192]{0}', space=vmem, size = 0x2000, scoped, tag = 'input window, operand 3, single buffered']
    #allocation8 [shape = 's32[1]{0}', space=sflag, size = 0x4, scoped, tag = 'scoped memory for tpu_custom_call.1']
    #allocation9 [shape = 'u8[2048]{0}', space=vmem, size = 0x800, scoped, tag = 'input window, operand 4, single buffered']
    #allocation10 [shape = 'u8[1024]{0}', space=vmem, size = 0x400, scoped, tag = 'input window, operand 5, single buffered']
    #allocation11 [shape = 's32[1]{0}', space=sflag, size = 0x4, scoped, tag = 'scoped memory for tpu_custom_call.1']
    #allocation12 [shape = 'u8[393216]{0}', space=vmem, size = 0x60000, scoped, tag = 'input window, operand 7, single buffered']
    #allocation13 [shape = 'u8[3072]{0}', space=vmem, size = 0xc00, scoped, tag = 'input window, operand 8, single buffered']
    #allocation14 [shape = 's32[1]{0}', space=sflag, size = 0x4, scoped, tag = 'scoped memory for tpu_custom_call.1']
    #allocation15 [shape = 'u8[131072]{0}', space=vmem, size = 0x20000, scoped, tag = 'input window, operand 9, single buffered']
    #allocation16 [shape = 'u8[1024]{0}', space=vmem, size = 0x400, scoped, tag = 'input window, operand 10, single buffered']
    #allocation17 [shape = 's32[1]{0}', space=sflag, size = 0x4, scoped, tag = 'scoped memory for tpu_custom_call.1']
    #allocation18 [shape = 'u8[262144]{0}', space=vmem, size = 0x40000, scoped, tag = 'input window, operand 11, single buffered']
    #allocation19 [shape = 'u8[262144]{0}', space=vmem, size = 0x40000, scoped, tag = 'input window, operand 13, single buffered']
    #allocation20 [shape = 's32[1]{0}', space=sflag, size = 0x4, scoped, tag = 'scoped memory for tpu_custom_call.1']
    #allocation21 [shape = 'u8[1024]{0}', space=vmem, size = 0x400, scoped, tag = 'input window, operand 14, single buffered']
    %25 = vsyncpa [#allocation3], 0
    %26 = vsyncpa [#allocation5], 0
    %27 = vsyncpa [#allocation8], 0
    %28 = vsyncpa [#allocation11], 0
    %29 = vsyncpa [#allocation14], 0
    %30 = vsyncpa [#allocation17], 0
    %31 = vsyncpa [#allocation20], 0
    // Predicated region
    $region2: #{tpu_custom_call.1} parent=1 // pred_check
      _
    $region3: #{tpu_custom_call.1} parent=1 // pred_check_branch
      %33 = sbr.rel (0) target = $region5
    $region4: #{tpu_custom_call.1} parent=1 // pred_region
      %35 = vsyncadd [#allocation3], 0
      %s36 = sshll.u32 %s0, 4
      %s37 = int_to_ptr.hbm [resolvable:$true] %s36
      %s38 = sshll.u32 [#allocation2], 4
      %s39 = int_to_ptr.vmem [resolvable:$true] %s38
      %44 = dma.hbm_to_vmem [thread:$0]  %s37, 512, %s39, [#allocation3], 256, 256, 16
    $region5: #{tpu_custom_call.1} parent=1 // pred_fallthru
      _
    // Predicated region
    $region6: #{tpu_custom_call.1} parent=1 // pred_check
      _
    $region7: #{tpu_custom_call.1} parent=1 // pred_check_branch
      %46 = sbr.rel (0) target = $region9
    $region8: #{tpu_custom_call.1} parent=1 // pred_region
      %48 = vsyncadd [#allocation5], 0
      %s49 = sshll.u32 %s1, 4
      %s50 = int_to_ptr.hbm [resolvable:$true] %s49
      %s51 = sshll.u32 [#allocation4], 4
      %s52 = int_to_ptr.vmem [resolvable:$true] %s51
      %57 = dma.hbm_to_vmem [thread:$0]  %s50, 3072, %s52, [#allocation5], 128, 128, 8
    $region9: #{tpu_custom_call.1} parent=1 // pred_fallthru
      _
    // Predicated region
    $region10: #{tpu_custom_call.1} parent=1 // pred_check
      _
    $region11: #{tpu_custom_call.1} parent=1 // pred_check_branch
      %59 = sbr.rel (0) target = $region13
    $region12: #{tpu_custom_call.1} parent=1 // pred_region
      %61 = vsyncadd [#allocation5], 0
      %s62 = sshll.u32 %s2, 4
      %s63 = int_to_ptr.hbm [resolvable:$true] %s62
      %s64 = sshll.u32 [#allocation6], 4
      %s65 = int_to_ptr.vmem [resolvable:$true] %s64
      %70 = dma.hbm_to_vmem [thread:$0]  %s63, 256, %s65, [#allocation5], 128, 128, 8
    $region13: #{tpu_custom_call.1} parent=1 // pred_fallthru
      _
    // Predicated region
    $region14: #{tpu_custom_call.1} parent=1 // pred_check
      _
    $region15: #{tpu_custom_call.1} parent=1 // pred_check_branch
      %72 = sbr.rel (0) target = $region17
    $region16: #{tpu_custom_call.1} parent=1 // pred_region
      %74 = vsyncadd [#allocation8], 0
      %s75 = sshll.u32 %s3, 4
      %s76 = int_to_ptr.hbm [resolvable:$true] %s75
      %s77 = sshll.u32 [#allocation7], 4
      %s78 = int_to_ptr.vmem [resolvable:$true] %s77
      %83 = dma.hbm_to_vmem [thread:$0]  %s76, 256, %s78, [#allocation8], 128, 128, 8
    $region17: #{tpu_custom_call.1} parent=1 // pred_fallthru
      _
    // Predicated region
    $region18: #{tpu_custom_call.1} parent=1 // pred_check
      _
    $region19: #{tpu_custom_call.1} parent=1 // pred_check_branch
      %85 = sbr.rel (0) target = $region21
    $region20: #{tpu_custom_call.1} parent=1 // pred_region
      %87 = vsyncadd [#allocation8], 0
      %s88 = sshll.u32 %s4, 4
      %s89 = int_to_ptr.hbm [resolvable:$true] %s88
      %s90 = sshll.u32 [#allocation9], 4
      %s91 = int_to_ptr.vmem [resolvable:$true] %s90
      %96 = dma.hbm_to_vmem [thread:$0]  %s89, 64, %s91, [#allocation8], 16, 16, 1
    $region21: #{tpu_custom_call.1} parent=1 // pred_fallthru
      _
    // Predicated region
    $region22: #{tpu_custom_call.1} parent=1 // pred_check
      _
    $region23: #{tpu_custom_call.1} parent=1 // pred_check_branch
      %98 = sbr.rel (0) target = $region25
    $region24: #{tpu_custom_call.1} parent=1 // pred_region
      %100 = vsyncadd [#allocation11], 0
      %s102 = sshll.u32 %s5, 4
      %s103 = int_to_ptr.hbm [resolvable:$true] %s102
      %s104 = sshll.u32 [#allocation10], 4
      %s105 = int_to_ptr.vmem [resolvable:$true] %s104
      %107 = dma.hbm_to_vmem [thread:$0]  %s103, 32, %s105, [#allocation11]
    $region25: #{tpu_custom_call.1} parent=1 // pred_fallthru
      _
    // Predicated region
    $region26: #{tpu_custom_call.1} parent=1 // pred_check
      _
    $region27: #{tpu_custom_call.1} parent=1 // pred_check_branch
      %109 = sbr.rel (0) target = $region29
    $region28: #{tpu_custom_call.1} parent=1 // pred_region
      _
    $region29: #{tpu_custom_call.1} parent=1 // pred_fallthru
      _
    // Predicated region
    $region30: #{tpu_custom_call.1} parent=1 // pred_check
      _
    $region31: #{tpu_custom_call.1} parent=1 // pred_check_branch
      %111 = sbr.rel (0) target = $region33
    $region32: #{tpu_custom_call.1} parent=1 // pred_region
      %113 = vsyncadd [#allocation11], 0
      %s114 = sshll.u32 %s7, 4
      %s115 = int_to_ptr.hbm [resolvable:$true] %s114
      %s116 = sshll.u32 [#allocation12], 4
      %s117 = int_to_ptr.vmem [resolvable:$true] %s116
      %122 = dma.hbm_to_vmem [thread:$0]  %s115, 12288, %s117, [#allocation11], 384, 384, 24
    $region33: #{tpu_custom_call.1} parent=1 // pred_fallthru
      _
    // Predicated region
    $region34: #{tpu_custom_call.1} parent=1 // pred_check
      _
    $region35: #{tpu_custom_call.1} parent=1 // pred_check_branch
      %124 = sbr.rel (0) target = $region37
    $region36: #{tpu_custom_call.1} parent=1 // pred_region
      %126 = vsyncadd [#allocation14], 0
      %s127 = sshll.u32 %s8, 4
      %s128 = int_to_ptr.hbm [resolvable:$true] %s127
      %s129 = sshll.u32 [#allocation13], 4
      %s130 = int_to_ptr.vmem [resolvable:$true] %s129
      %135 = dma.hbm_to_vmem [thread:$0]  %s128, 96, %s130, [#allocation14], 48, 48, 3
    $region37: #{tpu_custom_call.1} parent=1 // pred_fallthru
      _
    // Predicated region
    $region38: #{tpu_custom_call.1} parent=1 // pred_check
      _
    $region39: #{tpu_custom_call.1} parent=1 // pred_check_branch
      %137 = sbr.rel (0) target = $region41
    $region40: #{tpu_custom_call.1} parent=1 // pred_region
      %139 = vsyncadd [#allocation14], 0
      %s140 = sshll.u32 %s9, 4
      %s141 = int_to_ptr.hbm [resolvable:$true] %s140
      %s142 = sshll.u32 [#allocation15], 4
      %s143 = int_to_ptr.vmem [resolvable:$true] %s142
      %148 = dma.hbm_to_vmem [thread:$0]  %s141, 4096, %s143, [#allocation14], 128, 128, 8
    $region41: #{tpu_custom_call.1} parent=1 // pred_fallthru
      _
    // Predicated region
    $region42: #{tpu_custom_call.1} parent=1 // pred_check
      _
    $region43: #{tpu_custom_call.1} parent=1 // pred_check_branch
      %150 = sbr.rel (0) target = $region45
    $region44: #{tpu_custom_call.1} parent=1 // pred_region
      %152 = vsyncadd [#allocation17], 0
      %s153 = sshll.u32 %s10, 4
      %s154 = int_to_ptr.hbm [resolvable:$true] %s153
      %s155 = sshll.u32 [#allocation16], 4
      %s156 = int_to_ptr.vmem [resolvable:$true] %s155
      %161 = dma.hbm_to_vmem [thread:$0]  %s154, 32, %s156, [#allocation17], 16, 16, 1
    $region45: #{tpu_custom_call.1} parent=1 // pred_fallthru
      _
    // Predicated region
    $region46: #{tpu_custom_call.1} parent=1 // pred_check
      _
    $region47: #{tpu_custom_call.1} parent=1 // pred_check_branch
      %163 = sbr.rel (0) target = $region49
    $region48: #{tpu_custom_call.1} parent=1 // pred_region
      %165 = vsyncadd [#allocation17], 0
      %s166 = sshll.u32 %s11, 4
      %s167 = int_to_ptr.hbm [resolvable:$true] %s166
      %s168 = sshll.u32 [#allocation18], 4
      %s169 = int_to_ptr.vmem [resolvable:$true] %s168
      %174 = dma.hbm_to_vmem [thread:$0]  %s167, 8192, %s169, [#allocation17], 256, 256, 16
    $region49: #{tpu_custom_call.1} parent=1 // pred_fallthru
      _
    // Predicated region
    $region50: #{tpu_custom_call.1} parent=1 // pred_check
      _
    $region51: #{tpu_custom_call.1} parent=1 // pred_check_branch
      %176 = sbr.rel (0) target = $region53
    $region52: #{tpu_custom_call.1} parent=1 // pred_region
      _
    $region53: #{tpu_custom_call.1} parent=1 // pred_fallthru
      _
    // Predicated region
    $region54: #{tpu_custom_call.1} parent=1 // pred_check
      _
    $region55: #{tpu_custom_call.1} parent=1 // pred_check_branch
      %178 = sbr.rel (0) target = $region57
    $region56: #{tpu_custom_call.1} parent=1 // pred_region
      %180 = vsyncadd [#allocation20], 0
      %s181 = sshll.u32 %s13, 4
      %s182 = int_to_ptr.hbm [resolvable:$true] %s181
      %s183 = sshll.u32 [#allocation19], 4
      %s184 = int_to_ptr.vmem [resolvable:$true] %s183
      %189 = dma.hbm_to_vmem [thread:$0]  %s182, 8192, %s184, [#allocation20], 128, 128, 8
    $region57: #{tpu_custom_call.1} parent=1 // pred_fallthru
      _
    // Predicated region
    $region58: #{tpu_custom_call.1} parent=1 // pred_check
      _
    $region59: #{tpu_custom_call.1} parent=1 // pred_check_branch
      %191 = sbr.rel (0) target = $region61
    $region60: #{tpu_custom_call.1} parent=1 // pred_region
      %193 = vsyncadd [#allocation20], 0
      %s194 = sshll.u32 %s14, 4
      %s195 = int_to_ptr.hbm [resolvable:$true] %s194
      %s196 = sshll.u32 [#allocation21], 4
      %s197 = int_to_ptr.vmem [resolvable:$true] %s196
      %202 = dma.hbm_to_vmem [thread:$0]  %s195, 32, %s197, [#allocation20], 16, 16, 1
    $region61: #{tpu_custom_call.1} parent=1 // pred_fallthru
      _
    // Predicated region
    $region62: #{tpu_custom_call.1} parent=1 // pred_check
      _
    $region63: #{tpu_custom_call.1} parent=1 // pred_check_branch
      %204 = sbr.rel (0) target = $region65
    $region64: #{tpu_custom_call.1} parent=1 // pred_region
      _
    $region65: #{tpu_custom_call.1} parent=1 // pred_fallthru
      _
    // Predicated region
    $region66: #{tpu_custom_call.1} parent=1 // pred_check
      _
    $region67: #{tpu_custom_call.1} parent=1 // pred_check_branch
      %206 = sbr.rel (0) target = $region69
    $region68: #{tpu_custom_call.1} parent=1 // pred_region
      _
    $region69: #{tpu_custom_call.1} parent=1 // pred_fallthru
      _
    // Predicated region
    $region70: #{tpu_custom_call.1} parent=1 // pred_check
      _
    $region71: #{tpu_custom_call.1} parent=1 // pred_check_branch
      %208 = sbr.rel (0) target = $region73
    $region72: #{tpu_custom_call.1} parent=1 // pred_region
      _
    $region73: #{tpu_custom_call.1} parent=1 // pred_fallthru
      _
    // Predicated region
    $region74: #{tpu_custom_call.1} parent=1 // pred_check
      _
    $region75: #{tpu_custom_call.1} parent=1 // pred_check_branch
      %210 = sbr.rel (0) target = $region77
    $region76: #{tpu_custom_call.1} parent=1 // pred_region
      _
    $region77: #{tpu_custom_call.1} parent=1 // pred_fallthru
      _
    // Predicated region
    $region78: #{tpu_custom_call.1} parent=1 // pred_check
      _
    $region79: #{tpu_custom_call.1} parent=1 // pred_check_branch
      %212 = sbr.rel (0) target = $region81
    $region80: #{tpu_custom_call.1} parent=1 // pred_region
      _
    $region81: #{tpu_custom_call.1} parent=1 // pred_fallthru
      _
    // Predicated region
    $region82: #{tpu_custom_call.1} parent=1 // pred_check
      _
    $region83: #{tpu_custom_call.1} parent=1 // pred_check_branch
      %214 = sbr.rel (0) target = $region85
    $region84: #{tpu_custom_call.1} parent=1 // pred_region
      %216 = dma.done [#allocation3], 512
    $region85: #{tpu_custom_call.1} parent=1 // pred_fallthru
      _
    // Predicated region
    $region86: #{tpu_custom_call.1} parent=1 // pred_check
      _
    $region87: #{tpu_custom_call.1} parent=1 // pred_check_branch
      %218 = sbr.rel (0) target = $region89
    $region88: #{tpu_custom_call.1} parent=1 // pred_region
      %220 = dma.done [#allocation5], 3072
    $region89: #{tpu_custom_call.1} parent=1 // pred_fallthru
      _
    // Predicated region
    $region90: #{tpu_custom_call.1} parent=1 // pred_check
      _
    $region91: #{tpu_custom_call.1} parent=1 // pred_check_branch
      %222 = sbr.rel (0) target = $region93
    $region92: #{tpu_custom_call.1} parent=1 // pred_region
      %224 = dma.done [#allocation5], 256
    $region93: #{tpu_custom_call.1} parent=1 // pred_fallthru
      _
    // Predicated region
    $region94: #{tpu_custom_call.1} parent=1 // pred_check
      _
    $region95: #{tpu_custom_call.1} parent=1 // pred_check_branch
      %226 = sbr.rel (0) target = $region97
    $region96: #{tpu_custom_call.1} parent=1 // pred_region
      %228 = dma.done [#allocation8], 256
    $region97: #{tpu_custom_call.1} parent=1 // pred_fallthru
      _
    // Predicated region
    $region98: #{tpu_custom_call.1} parent=1 // pred_check
      _
    $region99: #{tpu_custom_call.1} parent=1 // pred_check_branch
      %230 = sbr.rel (0) target = $region101
    $region100: #{tpu_custom_call.1} parent=1 // pred_region
      %232 = dma.done [#allocation8], 64
    $region101: #{tpu_custom_call.1} parent=1 // pred_fallthru
      _
    // Predicated region
    $region102: #{tpu_custom_call.1} parent=1 // pred_check
      _
    $region103: #{tpu_custom_call.1} parent=1 // pred_check_branch
      %234 = sbr.rel (0) target = $region105
    $region104: #{tpu_custom_call.1} parent=1 // pred_region
      %236 = dma.done [#allocation11], 32
    $region105: #{tpu_custom_call.1} parent=1 // pred_fallthru
      _
    // Predicated region
    $region106: #{tpu_custom_call.1} parent=1 // pred_check
      _
    $region107: #{tpu_custom_call.1} parent=1 // pred_check_branch
      %238 = sbr.rel (0) target = $region109
    $region108: #{tpu_custom_call.1} parent=1 // pred_region
      %240 = dma.done [#allocation11], 12288
    $region109: #{tpu_custom_call.1} parent=1 // pred_fallthru
      _
    // Predicated region
    $region110: #{tpu_custom_call.1} parent=1 // pred_check
      _
    $region111: #{tpu_custom_call.1} parent=1 // pred_check_branch
      %242 = sbr.rel (0) target = $region113
    $region112: #{tpu_custom_call.1} parent=1 // pred_region
      %244 = dma.done [#allocation14], 96
    $region113: #{tpu_custom_call.1} parent=1 // pred_fallthru
      _
    // Predicated region
    $region114: #{tpu_custom_call.1} parent=1 // pred_check
      _
    $region115: #{tpu_custom_call.1} parent=1 // pred_check_branch
      %246 = sbr.rel (0) target = $region117
    $region116: #{tpu_custom_call.1} parent=1 // pred_region
      %248 = dma.done [#allocation14], 4096
    $region117: #{tpu_custom_call.1} parent=1 // pred_fallthru
      _
    // Predicated region
    $region118: #{tpu_custom_call.1} parent=1 // pred_check
      _
    $region119: #{tpu_custom_call.1} parent=1 // pred_check_branch
      %250 = sbr.rel (0) target = $region121
    $region120: #{tpu_custom_call.1} parent=1 // pred_region
      %252 = dma.done [#allocation17], 32
    $region121: #{tpu_custom_call.1} parent=1 // pred_fallthru
      _
    // Predicated region
    $region122: #{tpu_custom_call.1} parent=1 // pred_check
      _
    $region123: #{tpu_custom_call.1} parent=1 // pred_check_branch
      %254 = sbr.rel (0) target = $region125
    $region124: #{tpu_custom_call.1} parent=1 // pred_region
      %256 = dma.done [#allocation17], 8192
    $region125: #{tpu_custom_call.1} parent=1 // pred_fallthru
      _
    // Predicated region
    $region126: #{tpu_custom_call.1} parent=1 // pred_check
      _
    $region127: #{tpu_custom_call.1} parent=1 // pred_check_branch
      %258 = sbr.rel (0) target = $region129
    $region128: #{tpu_custom_call.1} parent=1 // pred_region
      %260 = dma.done [#allocation20], 8192
    $region129: #{tpu_custom_call.1} parent=1 // pred_fallthru
      _
    // Predicated region
    $region130: #{tpu_custom_call.1} parent=1 // pred_check
      _
    $region131: #{tpu_custom_call.1} parent=1 // pred_check_branch
      %262 = sbr.rel (0) target = $region133
    $region132: #{tpu_custom_call.1} parent=1 // pred_region
      %264 = dma.done [#allocation20], 32
    $region133: #{tpu_custom_call.1} parent=1 // pred_fallthru
      _
    %v265 = vld [vmem:[#allocation2] sm:$0xff]
    %v266 = vld [vmem:[#allocation2 + $0x8] sm:$0xff]
    %v267 = vld [vmem:[#allocation2 + $0x10] sm:$0x3]
    %v268 = vld [vmem:[#allocation2 + $0x18] sm:$0x3]
    %v269 = vld [vmem:[#allocation4] sm:$0xff]
    %v270 = vld [vmem:[#allocation4 + $0x8] sm:$0xff]
    %v271 = vld [vmem:[#allocation4 + $0x10] sm:$0xff]
    %v272 = vld [vmem:[#allocation4 + $0x18] sm:$0xff]
    %v273 = vld [vmem:[#allocation4 + $0x20] sm:$0xff]
    %v274 = vld [vmem:[#allocation4 + $0x28] sm:$0xff]
    %v275 = vld [vmem:[#allocation4 + $0x30] sm:$0xff]
    %v276 = vld [vmem:[#allocation4 + $0x38] sm:$0xff]
    %v277 = vld [vmem:[#allocation4 + $0x40] sm:$0xff]
    %v278 = vld [vmem:[#allocation4 + $0x48] sm:$0xff]
    %v279 = vld [vmem:[#allocation4 + $0x50] sm:$0xff]
    %v280 = vld [vmem:[#allocation4 + $0x58] sm:$0xff]
    %v281 = vld [vmem:[#allocation4 + $0x60] sm:$0xff]
    %v282 = vld [vmem:[#allocation4 + $0x68] sm:$0xff]
    %v283 = vld [vmem:[#allocation4 + $0x70] sm:$0xff]
    %v284 = vld [vmem:[#allocation4 + $0x78] sm:$0xff]
    %v285 = vld [vmem:[#allocation4 + $0x80] sm:$0xff]
    %v286 = vld [vmem:[#allocation4 + $0x88] sm:$0xff]
    %v287 = vld [vmem:[#allocation4 + $0x90] sm:$0xff]
    %v288 = vld [vmem:[#allocation4 + $0x98] sm:$0xff]
    %v289 = vld [vmem:[#allocation4 + $0xa0] sm:$0xff]
    %v290 = vld [vmem:[#allocation4 + $0xa8] sm:$0xff]
    %v291 = vld [vmem:[#allocation4 + $0xb0] sm:$0xff]
    %v292 = vld [vmem:[#allocation4 + $0xb8] sm:$0xff]
    %v293 = vld [vmem:[#allocation6] sm:$0xff]
    %v294 = vld [vmem:[#allocation6 + $0x8] sm:$0x3]
    %vm295 = vcmask 523264
    %v297 = vsel %vm295, %v266, 0
    %v300 = vsel %vm295, %v268, 0
    %302 = vmatpush.msra.mxu0 %v284
    %303 = vmatpush.msra.mxu0 %v283
    %304 = vmatpush.msra.mxu0 %v282
    %305 = vmatpush.msra.mxu0 %v281
    %306 = vmatpush.msra.mxu0 %v280
    %307 = vmatpush.msra.mxu0 %v279
    %308 = vmatpush.msra.mxu0 %v278
    %309 = vmatpush.msra.mxu0 %v277
    %310 = vmatpush.msra.mxu0 %v276
    %311 = vmatpush.msra.mxu0 %v275
    %312 = vmatpush.msra.mxu0 %v274
    %313 = vmatpush.msra.mxu0 %v273
    %314 = vmatpush.msra.mxu0 %v272
    %315 = vmatpush.msra.mxu0 %v271
    %316 = vmatpush.msra.mxu0 %v270
    %317 = vmatpush.msra.mxu0 %v269
    %318 = vmatmul.f32.gmra.mxu0 %v265
    %v319 = vpop.f32.mrf.mxu0
    %v320 = vadd.f32 %v293, %v319
    %321 = vmatmul.f32.gmra.mxu0 %v267
    %v322 = vpop.f32.mrf.mxu0
    %v323 = vadd.f32 %v294, %v322
    %324 = vdwg.mxu0
    %325 = vmatpush.msra.mxu0 0.0
    %326 = vmatpush.msra.mxu0 0.0
    %327 = vmatpush.msra.mxu0 0.0
    %328 = vmatpush.msra.mxu0 0.0
    %329 = vmatpush.msra.mxu0 0.0
    %330 = vmatpush.msra.mxu0 0.0
    %331 = vmatpush.msra.mxu0 0.0
    %332 = vmatpush.msra.mxu0 0.0
    %333 = vmatpush.msra.mxu0 %v292
    %334 = vmatpush.msra.mxu0 %v291
    %335 = vmatpush.msra.mxu0 %v290
    %336 = vmatpush.msra.mxu0 %v289
    %337 = vmatpush.msra.mxu0 %v288
    %338 = vmatpush.msra.mxu0 %v287
    %339 = vmatpush.msra.mxu0 %v286
    %340 = vmatpush.msra.mxu0 %v285
    %341 = vmatmul.f32.gmra.mxu0 %v297
    %v342 = vpop.f32.mrf.mxu0
    %v343 = vadd.f32 %v320, %v342
    %344 = vmatmul.f32.gmra.mxu0 %v300
    %v345 = vpop.f32.mrf.mxu0
    %v346 = vadd.f32 %v323, %v345
    %347 = vdwg.mxu0
    %v348 = vld [vmem:[#allocation7] sm:$0xff]
    %v349 = vld [vmem:[#allocation7 + $0x8] sm:$0x3]
    %v350 = vld [vmem:[%s6] sm:$0xf]
    %351 = vadd.xlane.f32.xlu0 %v343
    %v352 = vpop.xlane.xlu0 %351
    %vm353 = vcmask 1041408
    %v354 = vsel %vm353, %v346, 0.0
    %355 = vadd.xlane.f32.xlu0 %v354
    %v356 = vpop.xlane.xlu0 %355
    %v357 = vrcp.pop 128.0
    %v358 = vmul.f32 128.0, %v357
    %v359 = vsub.f32 1.0, %v358
    %v360 = vmul.f32 %v357, %v359
    %v361 = vadd.f32 %v357, %v360
    %vm362 = vweird.f32 %v357
    %v363 = vsel %vm362, %v357, %v361
    %v364 = vmul.f32 %v352, %v363
    %v365 = vmul.f32 %v356, %v363
    %v366 = vsub.f32 %v343, %v364
    %v367 = vsub.f32 %v346, %v365
    %v368 = vmul.f32 %v366, %v366
    %v369 = vmul.f32 %v367, %v367
    %370 = vadd.xlane.f32.xlu0 %v368
    %v371 = vpop.xlane.xlu0 %370
    %v372 = vsel %vm353, %v369, 0.0
    %373 = vadd.xlane.f32.xlu0 %v372
    %v374 = vpop.xlane.xlu0 %373
    %v375 = vmul.f32 %v371, %v363
    %v376 = vmul.f32 %v374, %v363
    %v377 = vadd.f32 %v375, 1e-06
    %v378 = vadd.f32 %v376, 1e-06
    %v379 = vrsqrt.pop %v377
    %v380 = vmul.f32 %v379, %v377
    %v381 = vmul.f32 %v380, %v379
    %v382 = vmul.f32 0.5, %v381
    %v383 = vsub.f32 1.5, %v382
    %v384 = vmul.f32 %v379, %v383
    %vm385 = vweird.f32 %v377
    %vm386 = vweird.f32 %v379
    %vm387 = vmor %vm385, %vm386
    %v388 = vsel %vm387, %v379, %v384
    %v389 = vrsqrt.pop %v378
    %v390 = vmul.f32 %v389, %v378
    %v391 = vmul.f32 %v390, %v389
    %v392 = vmul.f32 0.5, %v391
    %v393 = vsub.f32 1.5, %v392
    %v394 = vmul.f32 %v389, %v393
    %vm395 = vweird.f32 %v378
    %vm396 = vweird.f32 %v389
    %vm397 = vmor %vm395, %vm396
    %v398 = vsel %vm397, %v389, %v394
    %v399 = vmul.f32 %v366, %v388
    %v400 = vmul.f32 %v367, %v398
    %v401 = vperm.slane %v350, 0
    %v402 = vmul.f32 %v399, %v401
    %v403 = vmul.f32 %v400, %v401
    %v404 = vperm.slane %v350, 1
    %v405 = vadd.f32 %v402, %v404
    %v406 = vadd.f32 %v403, %v404
    %v407 = vld [vmem:[#allocation12] sm:$0xff]
    %v408 = vld [vmem:[#allocation12 + $0x8] sm:$0xff]
    %v409 = vld [vmem:[#allocation12 + $0x10] sm:$0xff]
    %v410 = vld [vmem:[#allocation12 + $0x18] sm:$0xff]
    %v411 = vld [vmem:[#allocation12 + $0x20] sm:$0xff]
    %v412 = vld [vmem:[#allocation12 + $0x28] sm:$0xff]
    %v413 = vld [vmem:[#allocation12 + $0x30] sm:$0xff]
    %v414 = vld [vmem:[#allocation12 + $0x38] sm:$0xff]
    %v415 = vld [vmem:[#allocation12 + $0x40] sm:$0xff]
    %v416 = vld [vmem:[#allocation12 + $0x48] sm:$0xff]
    %v417 = vld [vmem:[#allocation12 + $0x50] sm:$0xff]
    %v418 = vld [vmem:[#allocation12 + $0x58] sm:$0xff]
    %v419 = vld [vmem:[#allocation12 + $0x60] sm:$0xff]
    %v420 = vld [vmem:[#allocation12 + $0x68] sm:$0xff]
    %v421 = vld [vmem:[#allocation12 + $0x70] sm:$0xff]
    %v422 = vld [vmem:[#allocation12 + $0x78] sm:$0xff]
    %v423 = vld [vmem:[#allocation12 + $0x80] sm:$0xff]
    %v424 = vld [vmem:[#allocation12 + $0x88] sm:$0xff]
    %v425 = vld [vmem:[#allocation12 + $0x90] sm:$0xff]
    %v426 = vld [vmem:[#allocation12 + $0x98] sm:$0xff]
    %v427 = vld [vmem:[#allocation12 + $0xa0] sm:$0xff]
    %v428 = vld [vmem:[#allocation12 + $0xa8] sm:$0xff]
    %v429 = vld [vmem:[#allocation12 + $0xb0] sm:$0xff]
    %v430 = vld [vmem:[#allocation12 + $0xb8] sm:$0xff]
    %v431 = vld [vmem:[#allocation12 + $0xc0] sm:$0xff]
    %v432 = vld [vmem:[#allocation12 + $0xc8] sm:$0xff]
    %v433 = vld [vmem:[#allocation12 + $0xd0] sm:$0xff]
    %v434 = vld [vmem:[#allocation12 + $0xd8] sm:$0xff]
    %v435 = vld [vmem:[#allocation12 + $0xe0] sm:$0xff]
    %v436 = vld [vmem:[#allocation12 + $0xe8] sm:$0xff]
    %v437 = vld [vmem:[#allocation12 + $0xf0] sm:$0xff]
    %v438 = vld [vmem:[#allocation12 + $0xf8] sm:$0xff]
    %v439 = vld [vmem:[#allocation12 + $0x100] sm:$0xff]
    %v440 = vld [vmem:[#allocation12 + $0x108] sm:$0xff]
    %v441 = vld [vmem:[#allocation12 + $0x110] sm:$0xff]
    %v442 = vld [vmem:[#allocation12 + $0x118] sm:$0xff]
    %v443 = vld [vmem:[#allocation12 + $0x120] sm:$0xff]
    %v444 = vld [vmem:[#allocation12 + $0x128] sm:$0xff]
    %v445 = vld [vmem:[#allocation12 + $0x130] sm:$0xff]
    %v446 = vld [vmem:[#allocation12 + $0x138] sm:$0xff]
    %v447 = vld [vmem:[#allocation12 + $0x140] sm:$0xff]
    %v448 = vld [vmem:[#allocation12 + $0x148] sm:$0xff]
    %v449 = vld [vmem:[#allocation12 + $0x150] sm:$0xff]
    %v450 = vld [vmem:[#allocation12 + $0x158] sm:$0xff]
    %v451 = vld [vmem:[#allocation12 + $0x160] sm:$0xff]
    %v452 = vld [vmem:[#allocation12 + $0x168] sm:$0xff]
    %v453 = vld [vmem:[#allocation12 + $0x170] sm:$0xff]
    %v454 = vld [vmem:[#allocation12 + $0x178] sm:$0xff]
    %v455 = vld [vmem:[#allocation13] sm:$0x7]
    %v457 = vperm.slane %v455, 0
    %v458 = vperm.slane %v455, 1
    %v459 = vperm.slane %v455, 2
    %463 = vmatpush.msra.mxu0 %v452
    %464 = vmatpush.msra.mxu0 %v449
    %465 = vmatpush.msra.mxu0 %v446
    %466 = vmatpush.msra.mxu0 %v443
    %467 = vmatpush.msra.mxu0 %v440
    %468 = vmatpush.msra.mxu0 %v437
    %469 = vmatpush.msra.mxu0 %v434
    %470 = vmatpush.msra.mxu0 %v431
    %471 = vmatpush.msra.mxu0 %v428
    %472 = vmatpush.msra.mxu0 %v425
    %473 = vmatpush.msra.mxu0 %v422
    %474 = vmatpush.msra.mxu0 %v419
    %475 = vmatpush.msra.mxu0 %v416
    %476 = vmatpush.msra.mxu0 %v413
    %477 = vmatpush.msra.mxu0 %v410
    %478 = vmatpush.msra.mxu0 %v407
    %479 = vmatmul.f32.gmra.mxu0 %v405
    %v480 = vpop.f32.mrf.mxu0
    %v481 = vadd.f32 %v457, %v480
    %482 = vmatmul.f32.gmra.mxu0 %v406
    %v483 = vpop.f32.mrf.mxu0
    %v484 = vadd.f32 %v457, %v483
    %485 = vdwg.mxu0
    %486 = vmatpush.msra.mxu0 %v453
    %487 = vmatpush.msra.mxu0 %v450
    %488 = vmatpush.msra.mxu0 %v447
    %489 = vmatpush.msra.mxu0 %v444
    %490 = vmatpush.msra.mxu0 %v441
    %491 = vmatpush.msra.mxu0 %v438
    %492 = vmatpush.msra.mxu0 %v435
    %493 = vmatpush.msra.mxu0 %v432
    %494 = vmatpush.msra.mxu0 %v429
    %495 = vmatpush.msra.mxu0 %v426
    %496 = vmatpush.msra.mxu0 %v423
    %497 = vmatpush.msra.mxu0 %v420
    %498 = vmatpush.msra.mxu0 %v417
    %499 = vmatpush.msra.mxu0 %v414
    %500 = vmatpush.msra.mxu0 %v411
    %501 = vmatpush.msra.mxu0 %v408
    %502 = vmatmul.f32.gmra.mxu0 %v405
    %v503 = vpop.f32.mrf.mxu0
    %v504 = vadd.f32 %v458, %v503
    %505 = vmatmul.f32.gmra.mxu0 %v406
    %v506 = vpop.f32.mrf.mxu0
    %v507 = vadd.f32 %v458, %v506
    %508 = vdwg.mxu0
    %509 = vmatpush.msra.mxu0 %v454
    %510 = vmatpush.msra.mxu0 %v451
    %511 = vmatpush.msra.mxu0 %v448
    %512 = vmatpush.msra.mxu0 %v445
    %513 = vmatpush.msra.mxu0 %v442
    %514 = vmatpush.msra.mxu0 %v439
    %515 = vmatpush.msra.mxu0 %v436
    %516 = vmatpush.msra.mxu0 %v433
    %517 = vmatpush.msra.mxu0 %v430
    %518 = vmatpush.msra.mxu0 %v427
    %519 = vmatpush.msra.mxu0 %v424
    %520 = vmatpush.msra.mxu0 %v421
    %521 = vmatpush.msra.mxu0 %v418
    %522 = vmatpush.msra.mxu0 %v415
    %523 = vmatpush.msra.mxu0 %v412
    %524 = vmatpush.msra.mxu0 %v409
    %525 = vmatmul.f32.gmra.mxu0 %v405
    %v526 = vpop.f32.mrf.mxu0
    %v527 = vadd.f32 %v459, %v526
    %528 = vmatmul.f32.gmra.mxu0 %v406
    %v529 = vpop.f32.mrf.mxu0
    %v530 = vadd.f32 %v459, %v529
    %531 = vdwg.mxu0
    %v532 = vld [vmem:[#allocation9] sm:$0x1]
    %v534 = vperm.slane %v532, 0
    %v536 = vmul.f32 %v481, %v534
    %v537 = vmul.f32 %v484, %v534
    %v538 = vmul.f32 %v504, %v534
    %v539 = vmul.f32 %v507, %v534
    %540 = vmatpush.xpose.msra.mxu0 0.0
    %541 = vmatpush.xpose.msra.mxu0 0.0
    %542 = vmatpush.xpose.msra.mxu0 0.0
    %543 = vmatpush.xpose.msra.mxu0 0.0
    %544 = vmatpush.xpose.msra.mxu0 0.0
    %545 = vmatpush.xpose.msra.mxu0 0.0
    %546 = vmatpush.xpose.msra.mxu0 0.0
    %547 = vmatpush.xpose.msra.mxu0 0.0
    %548 = vmatpush.xpose.msra.mxu0 0.0
    %549 = vmatpush.xpose.msra.mxu0 0.0
    %550 = vmatpush.xpose.msra.mxu0 0.0
    %551 = vmatpush.xpose.msra.mxu0 0.0
    %552 = vmatpush.xpose.msra.mxu0 0.0
    %553 = vmatpush.xpose.msra.mxu0 0.0
    %554 = vmatpush.xpose.msra.mxu0 %v539
    %555 = vmatpush.xpose.msra.mxu0 %v538
    %556 = vmatmul.f32.gmra.mxu0 %v536
    %v557 = vpop.f32.mrf.mxu0
    %v558 = vadd.f32 0.0, %v557
    %559 = vmatmul.f32.gmra.mxu0 %v537
    %v560 = vpop.f32.mrf.mxu0
    %v561 = vadd.f32 0.0, %v560
    %562 = vdwg.mxu0
    %v563 = vmul.f32 %v558, 0.17677669
    %v564 = vmul.f32 %v561, 0.17677669
    %v565 = vadd.f32 %v563, %v348
    %v566 = vadd.f32 %v564, %v349
    %vm567 = vcmask 80896
    %v568 = vsel %vm567, %v565, -inf
    %569 = vmax.xlane.f32.xlu0 %v568
    %v570 = vpop.xlane.xlu0 %569
    %vm571 = vcmask 74752
    %v572 = vsel %vm571, %v566, -inf
    %573 = vmax.xlane.f32.xlu0 %v572
    %v574 = vpop.xlane.xlu0 %573
    %v575 = vsub.f32 %v565, %v570
    %v576 = vsub.f32 %v566, %v574
    %v577 = vmul.f32 %v575, 1.442695
    %v578 = vpow.pop %v577
    %v579 = vmul.f32 %v576, 1.442695
    %v580 = vpow.pop %v579
    %v581 = vsel %vm567, %v578, 0.0
    %582 = vadd.xlane.f32.xlu0 %v581
    %v583 = vpop.xlane.xlu0 %582
    %v584 = vsel %vm571, %v580, 0.0
    %585 = vadd.xlane.f32.xlu0 %v584
    %v586 = vpop.xlane.xlu0 %585
    %v587 = vrcp.pop %v583
    %v588 = vrcp.pop %v586
    %v589 = vmul.f32 %v578, %v587
    %v590 = vmul.f32 %v580, %v588
    %v591 = vmul.f32 %v527, %v534
    %v592 = vmul.f32 %v530, %v534
    %s593 = scalar_lea.vmem [#allocation9], 1
    %v594 = vld [vmem:[%s593] sm:$0x1]
    %v596 = vperm.slane %v594, 0
    %v598 = vmul.f32 %v481, %v596
    %v599 = vmul.f32 %v484, %v596
    %v600 = vmul.f32 %v504, %v596
    %v601 = vmul.f32 %v507, %v596
    %602 = vmatpush.xpose.msra.mxu0 0.0
    %603 = vmatpush.xpose.msra.mxu0 0.0
    %604 = vmatpush.xpose.msra.mxu0 0.0
    %605 = vmatpush.xpose.msra.mxu0 0.0
    %606 = vmatpush.xpose.msra.mxu0 0.0
    %607 = vmatpush.xpose.msra.mxu0 0.0
    %608 = vmatpush.xpose.msra.mxu0 0.0
    %609 = vmatpush.xpose.msra.mxu0 0.0
    %610 = vmatpush.xpose.msra.mxu0 0.0
    %611 = vmatpush.xpose.msra.mxu0 0.0
    %612 = vmatpush.xpose.msra.mxu0 0.0
    %613 = vmatpush.xpose.msra.mxu0 0.0
    %614 = vmatpush.xpose.msra.mxu0 0.0
    %615 = vmatpush.xpose.msra.mxu0 0.0
    %616 = vmatpush.xpose.msra.mxu0 %v601
    %617 = vmatpush.xpose.msra.mxu0 %v600
    %618 = vmatmul.f32.gmra.mxu0 %v598
    %v619 = vpop.f32.mrf.mxu0
    %v620 = vadd.f32 0.0, %v619
    %621 = vmatmul.f32.gmra.mxu0 %v599
    %v622 = vpop.f32.mrf.mxu0
    %v623 = vadd.f32 0.0, %v622
    %624 = vdwg.mxu0
    %v625 = vmul.f32 %v620, 0.17677669
    %v626 = vmul.f32 %v623, 0.17677669
    %v627 = vadd.f32 %v625, %v348
    %v628 = vadd.f32 %v626, %v349
    %v629 = vsel %vm567, %v627, -inf
    %630 = vmax.xlane.f32.xlu0 %v629
    %v631 = vpop.xlane.xlu0 %630
    %v632 = vsel %vm571, %v628, -inf
    %633 = vmax.xlane.f32.xlu0 %v632
    %v634 = vpop.xlane.xlu0 %633
    %v635 = vsub.f32 %v627, %v631
    %v636 = vsub.f32 %v628, %v634
    %v637 = vmul.f32 %v635, 1.442695
    %v638 = vpow.pop %v637
    %v639 = vmul.f32 %v636, 1.442695
    %v640 = vpow.pop %v639
    %v641 = vsel %vm567, %v638, 0.0
    %642 = vadd.xlane.f32.xlu0 %v641
    %v643 = vpop.xlane.xlu0 %642
    %v644 = vsel %vm571, %v640, 0.0
    %645 = vadd.xlane.f32.xlu0 %v644
    %v646 = vpop.xlane.xlu0 %645
    %v647 = vrcp.pop %v643
    %v648 = vrcp.pop %v646
    %v649 = vmul.f32 %v638, %v647
    %v650 = vmul.f32 %v640, %v648
    %v651 = vmul.f32 %v527, %v596
    %v652 = vmul.f32 %v530, %v596
    %v654 = vsel %vm567, %v649, 0
    %v657 = vsel %vm567, %v650, 0
    %v660 = vsel %vm353, %v652, 0
    %662 = vmatpush.msra.mxu0 0.0
    %663 = vmatpush.msra.mxu0 0.0
    %664 = vmatpush.msra.mxu0 0.0
    %665 = vmatpush.msra.mxu0 0.0
    %666 = vmatpush.msra.mxu0 0.0
    %667 = vmatpush.msra.mxu0 0.0
    %668 = vmatpush.msra.mxu0 0.0
    %669 = vmatpush.msra.mxu0 0.0
    %670 = vmatpush.msra.mxu0 0.0
    %671 = vmatpush.msra.mxu0 0.0
    %672 = vmatpush.msra.mxu0 0.0
    %673 = vmatpush.msra.mxu0 0.0
    %674 = vmatpush.msra.mxu0 0.0
    %675 = vmatpush.msra.mxu0 0.0
    %676 = vmatpush.msra.mxu0 %v660
    %677 = vmatpush.msra.mxu0 %v651
    %678 = vmatmul.f32.gmra.mxu0 %v654
    %v679 = vpop.f32.mrf.mxu0
    %v680 = vadd.f32 0.0, %v679
    %681 = vmatmul.f32.gmra.mxu0 %v657
    %v682 = vpop.f32.mrf.mxu0
    %v683 = vadd.f32 0.0, %v682
    %684 = vdwg.mxu0
    %v686 = vsel %vm567, %v589, 0
    %v689 = vsel %vm567, %v590, 0
    %v692 = vsel %vm353, %v592, 0
    %694 = vmatpush.msra.mxu0 0.0
    %695 = vmatpush.msra.mxu0 0.0
    %696 = vmatpush.msra.mxu0 0.0
    %697 = vmatpush.msra.mxu0 0.0
    %698 = vmatpush.msra.mxu0 0.0
    %699 = vmatpush.msra.mxu0 0.0
    %700 = vmatpush.msra.mxu0 0.0
    %701 = vmatpush.msra.mxu0 0.0
    %702 = vmatpush.msra.mxu0 0.0
    %703 = vmatpush.msra.mxu0 0.0
    %704 = vmatpush.msra.mxu0 0.0
    %705 = vmatpush.msra.mxu0 0.0
    %706 = vmatpush.msra.mxu0 0.0
    %707 = vmatpush.msra.mxu0 0.0
    %708 = vmatpush.msra.mxu0 %v692
    %709 = vmatpush.msra.mxu0 %v591
    %710 = vmatmul.f32.gmra.mxu0 %v686
    %v711 = vpop.f32.mrf.mxu0
    %v712 = vadd.f32 %v680, %v711
    %713 = vmatmul.f32.gmra.mxu0 %v689
    %v714 = vpop.f32.mrf.mxu0
    %v715 = vadd.f32 %v683, %v714
    %716 = vdwg.mxu0
    %s717 = scalar_lea.vmem [#allocation9], 2
    %v718 = vld [vmem:[%s717] sm:$0x1]
    %v720 = vperm.slane %v718, 0
    %v722 = vmul.f32 %v481, %v720
    %v723 = vmul.f32 %v484, %v720
    %v724 = vmul.f32 %v504, %v720
    %v725 = vmul.f32 %v507, %v720
    %726 = vmatpush.xpose.msra.mxu0 0.0
    %727 = vmatpush.xpose.msra.mxu0 0.0
    %728 = vmatpush.xpose.msra.mxu0 0.0
    %729 = vmatpush.xpose.msra.mxu0 0.0
    %730 = vmatpush.xpose.msra.mxu0 0.0
    %731 = vmatpush.xpose.msra.mxu0 0.0
    %732 = vmatpush.xpose.msra.mxu0 0.0
    %733 = vmatpush.xpose.msra.mxu0 0.0
    %734 = vmatpush.xpose.msra.mxu0 0.0
    %735 = vmatpush.xpose.msra.mxu0 0.0
    %736 = vmatpush.xpose.msra.mxu0 0.0
    %737 = vmatpush.xpose.msra.mxu0 0.0
    %738 = vmatpush.xpose.msra.mxu0 0.0
    %739 = vmatpush.xpose.msra.mxu0 0.0
    %740 = vmatpush.xpose.msra.mxu0 %v725
    %741 = vmatpush.xpose.msra.mxu0 %v724
    %742 = vmatmul.f32.gmra.mxu0 %v722
    %v743 = vpop.f32.mrf.mxu0
    %v744 = vadd.f32 0.0, %v743
    %745 = vmatmul.f32.gmra.mxu0 %v723
    %v746 = vpop.f32.mrf.mxu0
    %v747 = vadd.f32 0.0, %v746
    %748 = vdwg.mxu0
    %v749 = vmul.f32 %v744, 0.17677669
    %v750 = vmul.f32 %v747, 0.17677669
    %v751 = vadd.f32 %v749, %v348
    %v752 = vadd.f32 %v750, %v349
    %v753 = vsel %vm567, %v751, -inf
    %754 = vmax.xlane.f32.xlu0 %v753
    %v755 = vpop.xlane.xlu0 %754
    %v756 = vsel %vm571, %v752, -inf
    %757 = vmax.xlane.f32.xlu0 %v756
    %v758 = vpop.xlane.xlu0 %757
    %v759 = vsub.f32 %v751, %v755
    %v760 = vsub.f32 %v752, %v758
    %v761 = vmul.f32 %v759, 1.442695
    %v762 = vpow.pop %v761
    %v763 = vmul.f32 %v760, 1.442695
    %v764 = vpow.pop %v763
    %v765 = vsel %vm567, %v762, 0.0
    %766 = vadd.xlane.f32.xlu0 %v765
    %v767 = vpop.xlane.xlu0 %766
    %v768 = vsel %vm571, %v764, 0.0
    %769 = vadd.xlane.f32.xlu0 %v768
    %v770 = vpop.xlane.xlu0 %769
    %v771 = vrcp.pop %v767
    %v772 = vrcp.pop %v770
    %v773 = vmul.f32 %v762, %v771
    %v774 = vmul.f32 %v764, %v772
    %v775 = vmul.f32 %v527, %v720
    %v776 = vmul.f32 %v530, %v720
    %v778 = vsel %vm567, %v773, 0
    %v781 = vsel %vm567, %v774, 0
    %v784 = vsel %vm353, %v776, 0
    %786 = vmatpush.msra.mxu0 0.0
    %787 = vmatpush.msra.mxu0 0.0
    %788 = vmatpush.msra.mxu0 0.0
    %789 = vmatpush.msra.mxu0 0.0
    %790 = vmatpush.msra.mxu0 0.0
    %791 = vmatpush.msra.mxu0 0.0
    %792 = vmatpush.msra.mxu0 0.0
    %793 = vmatpush.msra.mxu0 0.0
    %794 = vmatpush.msra.mxu0 0.0
    %795 = vmatpush.msra.mxu0 0.0
    %796 = vmatpush.msra.mxu0 0.0
    %797 = vmatpush.msra.mxu0 0.0
    %798 = vmatpush.msra.mxu0 0.0
    %799 = vmatpush.msra.mxu0 0.0
    %800 = vmatpush.msra.mxu0 %v784
    %801 = vmatpush.msra.mxu0 %v775
    %802 = vmatmul.f32.gmra.mxu0 %v778
    %v803 = vpop.f32.mrf.mxu0
    %v804 = vadd.f32 0.0, %v803
    %805 = vmatmul.f32.gmra.mxu0 %v781
    %v806 = vpop.f32.mrf.mxu0
    %v807 = vadd.f32 0.0, %v806
    %808 = vdwg.mxu0
    %v809 = vadd.f32 %v712, %v804
    %v810 = vadd.f32 %v715, %v807
    %s811 = scalar_lea.vmem [#allocation9], 3
    %v812 = vld [vmem:[%s811] sm:$0x1]
    %v814 = vperm.slane %v812, 0
    %v816 = vmul.f32 %v481, %v814
    %v817 = vmul.f32 %v484, %v814
    %v818 = vmul.f32 %v504, %v814
    %v819 = vmul.f32 %v507, %v814
    %820 = vmatpush.xpose.msra.mxu0 0.0
    %821 = vmatpush.xpose.msra.mxu0 0.0
    %822 = vmatpush.xpose.msra.mxu0 0.0
    %823 = vmatpush.xpose.msra.mxu0 0.0
    %824 = vmatpush.xpose.msra.mxu0 0.0
    %825 = vmatpush.xpose.msra.mxu0 0.0
    %826 = vmatpush.xpose.msra.mxu0 0.0
    %827 = vmatpush.xpose.msra.mxu0 0.0
    %828 = vmatpush.xpose.msra.mxu0 0.0
    %829 = vmatpush.xpose.msra.mxu0 0.0
    %830 = vmatpush.xpose.msra.mxu0 0.0
    %831 = vmatpush.xpose.msra.mxu0 0.0
    %832 = vmatpush.xpose.msra.mxu0 0.0
    %833 = vmatpush.xpose.msra.mxu0 0.0
    %834 = vmatpush.xpose.msra.mxu0 %v819
    %835 = vmatpush.xpose.msra.mxu0 %v818
    %836 = vmatmul.f32.gmra.mxu0 %v816
    %v837 = vpop.f32.mrf.mxu0
    %v838 = vadd.f32 0.0, %v837
    %839 = vmatmul.f32.gmra.mxu0 %v817
    %v840 = vpop.f32.mrf.mxu0
    %v841 = vadd.f32 0.0, %v840
    %842 = vdwg.mxu0
    %v843 = vmul.f32 %v838, 0.17677669
    %v844 = vmul.f32 %v841, 0.17677669
    %v845 = vadd.f32 %v843, %v348
    %v846 = vadd.f32 %v844, %v349
    %v847 = vsel %vm567, %v845, -inf
    %848 = vmax.xlane.f32.xlu0 %v847
    %v849 = vpop.xlane.xlu0 %848
    %v850 = vsel %vm571, %v846, -inf
    %851 = vmax.xlane.f32.xlu0 %v850
    %v852 = vpop.xlane.xlu0 %851
    %v853 = vsub.f32 %v845, %v849
    %v854 = vsub.f32 %v846, %v852
    %v855 = vmul.f32 %v853, 1.442695
    %v856 = vpow.pop %v855
    %v857 = vmul.f32 %v854, 1.442695
    %v858 = vpow.pop %v857
    %v859 = vsel %vm567, %v856, 0.0
    %860 = vadd.xlane.f32.xlu0 %v859
    %v861 = vpop.xlane.xlu0 %860
    %v862 = vsel %vm571, %v858, 0.0
    %863 = vadd.xlane.f32.xlu0 %v862
    %v864 = vpop.xlane.xlu0 %863
    %v865 = vrcp.pop %v861
    %v866 = vrcp.pop %v864
    %v867 = vmul.f32 %v856, %v865
    %v868 = vmul.f32 %v858, %v866
    %v869 = vmul.f32 %v527, %v814
    %v870 = vmul.f32 %v530, %v814
    %v872 = vsel %vm567, %v867, 0
    %v875 = vsel %vm567, %v868, 0
    %v878 = vsel %vm353, %v870, 0
    %880 = vmatpush.msra.mxu0 0.0
    %881 = vmatpush.msra.mxu0 0.0
    %882 = vmatpush.msra.mxu0 0.0
    %883 = vmatpush.msra.mxu0 0.0
    %884 = vmatpush.msra.mxu0 0.0
    %885 = vmatpush.msra.mxu0 0.0
    %886 = vmatpush.msra.mxu0 0.0
    %887 = vmatpush.msra.mxu0 0.0
    %888 = vmatpush.msra.mxu0 0.0
    %889 = vmatpush.msra.mxu0 0.0
    %890 = vmatpush.msra.mxu0 0.0
    %891 = vmatpush.msra.mxu0 0.0
    %892 = vmatpush.msra.mxu0 0.0
    %893 = vmatpush.msra.mxu0 0.0
    %894 = vmatpush.msra.mxu0 %v878
    %895 = vmatpush.msra.mxu0 %v869
    %896 = vmatmul.f32.gmra.mxu0 %v872
    %v897 = vpop.f32.mrf.mxu0
    %v898 = vadd.f32 0.0, %v897
    %899 = vmatmul.f32.gmra.mxu0 %v875
    %v900 = vpop.f32.mrf.mxu0
    %v901 = vadd.f32 0.0, %v900
    %902 = vdwg.mxu0
    %v903 = vadd.f32 %v809, %v898
    %v904 = vadd.f32 %v810, %v901
    %v905 = vld [vmem:[#allocation15] sm:$0xff]
    %v906 = vld [vmem:[#allocation15 + $0x8] sm:$0xff]
    %v907 = vld [vmem:[#allocation15 + $0x10] sm:$0xff]
    %v908 = vld [vmem:[#allocation15 + $0x18] sm:$0xff]
    %v909 = vld [vmem:[#allocation15 + $0x20] sm:$0xff]
    %v910 = vld [vmem:[#allocation15 + $0x28] sm:$0xff]
    %v911 = vld [vmem:[#allocation15 + $0x30] sm:$0xff]
    %v912 = vld [vmem:[#allocation15 + $0x38] sm:$0xff]
    %v913 = vld [vmem:[#allocation15 + $0x40] sm:$0xff]
    %v914 = vld [vmem:[#allocation15 + $0x48] sm:$0xff]
    %v915 = vld [vmem:[#allocation15 + $0x50] sm:$0xff]
    %v916 = vld [vmem:[#allocation15 + $0x58] sm:$0xff]
    %v917 = vld [vmem:[#allocation15 + $0x60] sm:$0xff]
    %v918 = vld [vmem:[#allocation15 + $0x68] sm:$0xff]
    %v919 = vld [vmem:[#allocation15 + $0x70] sm:$0xff]
    %v920 = vld [vmem:[#allocation15 + $0x78] sm:$0xff]
    %921 = vmatpush.msra.mxu0 %v920
    %922 = vmatpush.msra.mxu0 %v919
    %923 = vmatpush.msra.mxu0 %v918
    %924 = vmatpush.msra.mxu0 %v917
    %925 = vmatpush.msra.mxu0 %v916
    %926 = vmatpush.msra.mxu0 %v915
    %927 = vmatpush.msra.mxu0 %v914
    %928 = vmatpush.msra.mxu0 %v913
    %929 = vmatpush.msra.mxu0 %v912
    %930 = vmatpush.msra.mxu0 %v911
    %931 = vmatpush.msra.mxu0 %v910
    %932 = vmatpush.msra.mxu0 %v909
    %933 = vmatpush.msra.mxu0 %v908
    %934 = vmatpush.msra.mxu0 %v907
    %935 = vmatpush.msra.mxu0 %v906
    %936 = vmatpush.msra.mxu0 %v905
    %937 = vmatmul.f32.gmra.mxu0 %v903
    %v938 = vpop.f32.mrf.mxu0
    %v939 = vadd.f32 0.0, %v938
    %940 = vmatmul.f32.gmra.mxu0 %v904
    %v941 = vpop.f32.mrf.mxu0
    %v942 = vadd.f32 0.0, %v941
    %943 = vdwg.mxu0
    %v944 = vadd.f32 %v343, %v939
    %v945 = vadd.f32 %v346, %v942
    %v946 = vld [vmem:[#allocation16] sm:$0x1]
    %v948 = vperm.slane %v946, 0
    %v950 = vadd.f32 %v944, %v948
    %v951 = vadd.f32 %v945, %v948
    %952 = vadd.xlane.f32.xlu0 %v950
    %v953 = vpop.xlane.xlu0 %952
    %v954 = vsel %vm353, %v951, 0.0
    %955 = vadd.xlane.f32.xlu0 %v954
    %v956 = vpop.xlane.xlu0 %955
    %v957 = vmul.f32 %v953, %v363
    %v958 = vmul.f32 %v956, %v363
    %v959 = vsub.f32 %v950, %v957
    %v960 = vsub.f32 %v951, %v958
    %v961 = vmul.f32 %v959, %v959
    %v962 = vmul.f32 %v960, %v960
    %963 = vadd.xlane.f32.xlu0 %v961
    %v964 = vpop.xlane.xlu0 %963
    %v965 = vsel %vm353, %v962, 0.0
    %966 = vadd.xlane.f32.xlu0 %v965
    %v967 = vpop.xlane.xlu0 %966
    %v968 = vmul.f32 %v964, %v363
    %v969 = vmul.f32 %v967, %v363
    %v970 = vadd.f32 %v968, 1e-06
    %v971 = vadd.f32 %v969, 1e-06
    %v972 = vrsqrt.pop %v970
    %v973 = vmul.f32 %v972, %v970
    %v974 = vmul.f32 %v973, %v972
    %v975 = vmul.f32 0.5, %v974
    %v976 = vsub.f32 1.5, %v975
    %v977 = vmul.f32 %v972, %v976
    %vm978 = vweird.f32 %v970
    %vm979 = vweird.f32 %v972
    %vm980 = vmor %vm978, %vm979
    %v981 = vsel %vm980, %v972, %v977
    %v982 = vrsqrt.pop %v971
    %v983 = vmul.f32 %v982, %v971
    %v984 = vmul.f32 %v983, %v982
    %v985 = vmul.f32 0.5, %v984
    %v986 = vsub.f32 1.5, %v985
    %v987 = vmul.f32 %v982, %v986
    %vm988 = vweird.f32 %v971
    %vm989 = vweird.f32 %v982
    %vm990 = vmor %vm988, %vm989
    %v991 = vsel %vm990, %v982, %v987
    %v992 = vmul.f32 %v959, %v981
    %v993 = vmul.f32 %v960, %v991
    %v994 = vperm.slane %v350, 2
    %v995 = vmul.f32 %v992, %v994
    %v996 = vmul.f32 %v993, %v994
    %v997 = vperm.slane %v350, 3
    %v998 = vadd.f32 %v995, %v997
    %v999 = vadd.f32 %v996, %v997
    %v1000 = vld [vmem:[#allocation18] sm:$0xff]
    %v1001 = vld [vmem:[#allocation18 + $0x8] sm:$0xff]
    %v1002 = vld [vmem:[#allocation18 + $0x10] sm:$0xff]
    %v1003 = vld [vmem:[#allocation18 + $0x18] sm:$0xff]
    %v1004 = vld [vmem:[#allocation18 + $0x20] sm:$0xff]
    %v1005 = vld [vmem:[#allocation18 + $0x28] sm:$0xff]
    %v1006 = vld [vmem:[#allocation18 + $0x30] sm:$0xff]
    %v1007 = vld [vmem:[#allocation18 + $0x38] sm:$0xff]
    %v1008 = vld [vmem:[#allocation18 + $0x40] sm:$0xff]
    %v1009 = vld [vmem:[#allocation18 + $0x48] sm:$0xff]
    %v1010 = vld [vmem:[#allocation18 + $0x50] sm:$0xff]
    %v1011 = vld [vmem:[#allocation18 + $0x58] sm:$0xff]
    %v1012 = vld [vmem:[#allocation18 + $0x60] sm:$0xff]
    %v1013 = vld [vmem:[#allocation18 + $0x68] sm:$0xff]
    %v1014 = vld [vmem:[#allocation18 + $0x70] sm:$0xff]
    %v1015 = vld [vmem:[#allocation18 + $0x78] sm:$0xff]
    %v1016 = vld [vmem:[#allocation18 + $0x80] sm:$0xff]
    %v1017 = vld [vmem:[#allocation18 + $0x88] sm:$0xff]
    %v1018 = vld [vmem:[#allocation18 + $0x90] sm:$0xff]
    %v1019 = vld [vmem:[#allocation18 + $0x98] sm:$0xff]
    %v1020 = vld [vmem:[#allocation18 + $0xa0] sm:$0xff]
    %v1021 = vld [vmem:[#allocation18 + $0xa8] sm:$0xff]
    %v1022 = vld [vmem:[#allocation18 + $0xb0] sm:$0xff]
    %v1023 = vld [vmem:[#allocation18 + $0xb8] sm:$0xff]
    %v1024 = vld [vmem:[#allocation18 + $0xc0] sm:$0xff]
    %v1025 = vld [vmem:[#allocation18 + $0xc8] sm:$0xff]
    %v1026 = vld [vmem:[#allocation18 + $0xd0] sm:$0xff]
    %v1027 = vld [vmem:[#allocation18 + $0xd8] sm:$0xff]
    %v1028 = vld [vmem:[#allocation18 + $0xe0] sm:$0xff]
    %v1029 = vld [vmem:[#allocation18 + $0xe8] sm:$0xff]
    %v1030 = vld [vmem:[#allocation18 + $0xf0] sm:$0xff]
    %v1031 = vld [vmem:[#allocation18 + $0xf8] sm:$0xff]
    %v1032 = vld [vmem:[%s12] sm:$0x3]
    %v1034 = vperm.slane %v1032, 0
    %v1035 = vperm.slane %v1032, 1
    %1038 = vmatpush.msra.mxu0 %v1030
    %1039 = vmatpush.msra.mxu0 %v1028
    %1040 = vmatpush.msra.mxu0 %v1026
    %1041 = vmatpush.msra.mxu0 %v1024
    %1042 = vmatpush.msra.mxu0 %v1022
    %1043 = vmatpush.msra.mxu0 %v1020
    %1044 = vmatpush.msra.mxu0 %v1018
    %1045 = vmatpush.msra.mxu0 %v1016
    %1046 = vmatpush.msra.mxu0 %v1014
    %1047 = vmatpush.msra.mxu0 %v1012
    %1048 = vmatpush.msra.mxu0 %v1010
    %1049 = vmatpush.msra.mxu0 %v1008
    %1050 = vmatpush.msra.mxu0 %v1006
    %1051 = vmatpush.msra.mxu0 %v1004
    %1052 = vmatpush.msra.mxu0 %v1002
    %1053 = vmatpush.msra.mxu0 %v1000
    %1054 = vmatmul.f32.gmra.mxu0 %v998
    %v1055 = vpop.f32.mrf.mxu0
    %v1056 = vadd.f32 %v1034, %v1055
    %1057 = vmatmul.f32.gmra.mxu0 %v999
    %v1058 = vpop.f32.mrf.mxu0
    %v1059 = vadd.f32 %v1034, %v1058
    %1060 = vdwg.mxu0
    %1061 = vmatpush.msra.mxu0 %v1031
    %1062 = vmatpush.msra.mxu0 %v1029
    %1063 = vmatpush.msra.mxu0 %v1027
    %1064 = vmatpush.msra.mxu0 %v1025
    %1065 = vmatpush.msra.mxu0 %v1023
    %1066 = vmatpush.msra.mxu0 %v1021
    %1067 = vmatpush.msra.mxu0 %v1019
    %1068 = vmatpush.msra.mxu0 %v1017
    %1069 = vmatpush.msra.mxu0 %v1015
    %1070 = vmatpush.msra.mxu0 %v1013
    %1071 = vmatpush.msra.mxu0 %v1011
    %1072 = vmatpush.msra.mxu0 %v1009
    %1073 = vmatpush.msra.mxu0 %v1007
    %1074 = vmatpush.msra.mxu0 %v1005
    %1075 = vmatpush.msra.mxu0 %v1003
    %1076 = vmatpush.msra.mxu0 %v1001
    %1077 = vmatmul.f32.gmra.mxu0 %v998
    %v1078 = vpop.f32.mrf.mxu0
    %v1079 = vadd.f32 %v1035, %v1078
    %1080 = vmatmul.f32.gmra.mxu0 %v999
    %v1081 = vpop.f32.mrf.mxu0
    %v1082 = vadd.f32 %v1035, %v1081
    %1083 = vdwg.mxu0
    %v1084 = vmul.f32 %v1056, 0.5
    %v1085 = vmul.f32 %v1079, 0.5
    %v1086 = vmul.f32 %v1059, 0.5
    %v1087 = vmul.f32 %v1082, 0.5
    %v1088 = vmul.f32 %v1056, 0.044715
    %v1089 = vmul.f32 %v1079, 0.044715
    %v1090 = vmul.f32 %v1059, 0.044715
    %v1091 = vmul.f32 %v1082, 0.044715
    %v1092 = vmul.f32 %v1088, %v1056
    %v1093 = vmul.f32 %v1089, %v1079
    %v1094 = vmul.f32 %v1090, %v1059
    %v1095 = vmul.f32 %v1091, %v1082
    %v1096 = vmul.f32 %v1092, %v1056
    %v1097 = vmul.f32 %v1093, %v1079
    %v1098 = vmul.f32 %v1094, %v1059
    %v1099 = vmul.f32 %v1095, %v1082
    %v1100 = vadd.f32 %v1056, %v1096
    %v1101 = vadd.f32 %v1079, %v1097
    %v1102 = vadd.f32 %v1059, %v1098
    %v1103 = vadd.f32 %v1082, %v1099
    %v1104 = vmul.f32 %v1100, 0.7978846
    %v1105 = vmul.f32 %v1101, 0.7978846
    %v1106 = vmul.f32 %v1102, 0.7978846
    %v1107 = vmul.f32 %v1103, 0.7978846
    %v1108 = vtanh.pop %v1104
    %v1109 = vtanh.pop %v1105
    %v1110 = vtanh.pop %v1106
    %v1111 = vtanh.pop %v1107
    %v1112 = vadd.f32 %v1108, 1.0
    %v1113 = vadd.f32 %v1109, 1.0
    %v1114 = vadd.f32 %v1110, 1.0
    %v1115 = vadd.f32 %v1111, 1.0
    %v1116 = vmul.f32 %v1084, %v1112
    %v1117 = vmul.f32 %v1085, %v1113
    %v1118 = vmul.f32 %v1086, %v1114
    %v1119 = vmul.f32 %v1087, %v1115
    %v1120 = vld [vmem:[#allocation19] sm:$0xff]
    %v1121 = vld [vmem:[#allocation19 + $0x8] sm:$0xff]
    %v1122 = vld [vmem:[#allocation19 + $0x10] sm:$0xff]
    %v1123 = vld [vmem:[#allocation19 + $0x18] sm:$0xff]
    %v1124 = vld [vmem:[#allocation19 + $0x20] sm:$0xff]
    %v1125 = vld [vmem:[#allocation19 + $0x28] sm:$0xff]
    %v1126 = vld [vmem:[#allocation19 + $0x30] sm:$0xff]
    %v1127 = vld [vmem:[#allocation19 + $0x38] sm:$0xff]
    %v1128 = vld [vmem:[#allocation19 + $0x40] sm:$0xff]
    %v1129 = vld [vmem:[#allocation19 + $0x48] sm:$0xff]
    %v1130 = vld [vmem:[#allocation19 + $0x50] sm:$0xff]
    %v1131 = vld [vmem:[#allocation19 + $0x58] sm:$0xff]
    %v1132 = vld [vmem:[#allocation19 + $0x60] sm:$0xff]
    %v1133 = vld [vmem:[#allocation19 + $0x68] sm:$0xff]
    %v1134 = vld [vmem:[#allocation19 + $0x70] sm:$0xff]
    %v1135 = vld [vmem:[#allocation19 + $0x78] sm:$0xff]
    %v1136 = vld [vmem:[#allocation19 + $0x80] sm:$0xff]
    %v1137 = vld [vmem:[#allocation19 + $0x88] sm:$0xff]
    %v1138 = vld [vmem:[#allocation19 + $0x90] sm:$0xff]
    %v1139 = vld [vmem:[#allocation19 + $0x98] sm:$0xff]
    %v1140 = vld [vmem:[#allocation19 + $0xa0] sm:$0xff]
    %v1141 = vld [vmem:[#allocation19 + $0xa8] sm:$0xff]
    %v1142 = vld [vmem:[#allocation19 + $0xb0] sm:$0xff]
    %v1143 = vld [vmem:[#allocation19 + $0xb8] sm:$0xff]
    %v1144 = vld [vmem:[#allocation19 + $0xc0] sm:$0xff]
    %v1145 = vld [vmem:[#allocation19 + $0xc8] sm:$0xff]
    %v1146 = vld [vmem:[#allocation19 + $0xd0] sm:$0xff]
    %v1147 = vld [vmem:[#allocation19 + $0xd8] sm:$0xff]
    %v1148 = vld [vmem:[#allocation19 + $0xe0] sm:$0xff]
    %v1149 = vld [vmem:[#allocation19 + $0xe8] sm:$0xff]
    %v1150 = vld [vmem:[#allocation19 + $0xf0] sm:$0xff]
    %v1151 = vld [vmem:[#allocation19 + $0xf8] sm:$0xff]
    %1152 = vmatpush.msra.mxu0 %v1135
    %1153 = vmatpush.msra.mxu0 %v1134
    %1154 = vmatpush.msra.mxu0 %v1133
    %1155 = vmatpush.msra.mxu0 %v1132
    %1156 = vmatpush.msra.mxu0 %v1131
    %1157 = vmatpush.msra.mxu0 %v1130
    %1158 = vmatpush.msra.mxu0 %v1129
    %1159 = vmatpush.msra.mxu0 %v1128
    %1160 = vmatpush.msra.mxu0 %v1127
    %1161 = vmatpush.msra.mxu0 %v1126
    %1162 = vmatpush.msra.mxu0 %v1125
    %1163 = vmatpush.msra.mxu0 %v1124
    %1164 = vmatpush.msra.mxu0 %v1123
    %1165 = vmatpush.msra.mxu0 %v1122
    %1166 = vmatpush.msra.mxu0 %v1121
    %1167 = vmatpush.msra.mxu0 %v1120
    %1168 = vmatmul.f32.gmra.mxu0 %v1116
    %v1169 = vpop.f32.mrf.mxu0
    %v1170 = vadd.f32 0.0, %v1169
    %1171 = vmatmul.f32.gmra.mxu0 %v1118
    %v1172 = vpop.f32.mrf.mxu0
    %v1173 = vadd.f32 0.0, %v1172
    %1174 = vdwg.mxu0
    %1175 = vmatpush.msra.mxu0 %v1151
    %1176 = vmatpush.msra.mxu0 %v1150
    %1177 = vmatpush.msra.mxu0 %v1149
    %1178 = vmatpush.msra.mxu0 %v1148
    %1179 = vmatpush.msra.mxu0 %v1147
    %1180 = vmatpush.msra.mxu0 %v1146
    %1181 = vmatpush.msra.mxu0 %v1145
    %1182 = vmatpush.msra.mxu0 %v1144
    %1183 = vmatpush.msra.mxu0 %v1143
    %1184 = vmatpush.msra.mxu0 %v1142
    %1185 = vmatpush.msra.mxu0 %v1141
    %1186 = vmatpush.msra.mxu0 %v1140
    %1187 = vmatpush.msra.mxu0 %v1139
    %1188 = vmatpush.msra.mxu0 %v1138
    %1189 = vmatpush.msra.mxu0 %v1137
    %1190 = vmatpush.msra.mxu0 %v1136
    %1191 = vmatmul.f32.gmra.mxu0 %v1117
    %v1192 = vpop.f32.mrf.mxu0
    %v1193 = vadd.f32 %v1170, %v1192
    %1194 = vmatmul.f32.gmra.mxu0 %v1119
    %v1195 = vpop.f32.mrf.mxu0
    %v1196 = vadd.f32 %v1173, %v1195
    %1197 = vdwg.mxu0
    %v1198 = vadd.f32 %v950, %v1193
    %v1199 = vadd.f32 %v951, %v1196
    %v1200 = vld [vmem:[#allocation21] sm:$0x1]
    %v1202 = vperm.slane %v1200, 0
    %v1204 = vadd.f32 %v1198, %v1202
    %v1205 = vadd.f32 %v1199, %v1202
    %s1206 = scalar_lea.vmem %s6, 4
    %v1207 = vld [vmem:[%s1206] sm:$0xf]
    %1208 = vadd.xlane.f32.xlu0 %v1204
    %v1209 = vpop.xlane.xlu0 %1208
    %v1210 = vsel %vm353, %v1205, 0.0
    %1211 = vadd.xlane.f32.xlu0 %v1210
    %v1212 = vpop.xlane.xlu0 %1211
    %v1213 = vmul.f32 %v1209, %v363
    %v1214 = vmul.f32 %v1212, %v363
    %v1215 = vsub.f32 %v1204, %v1213
    %v1216 = vsub.f32 %v1205, %v1214
    %v1217 = vmul.f32 %v1215, %v1215
    %v1218 = vmul.f32 %v1216, %v1216
    %1219 = vadd.xlane.f32.xlu0 %v1217
    %v1220 = vpop.xlane.xlu0 %1219
    %v1221 = vsel %vm353, %v1218, 0.0
    %1222 = vadd.xlane.f32.xlu0 %v1221
    %v1223 = vpop.xlane.xlu0 %1222
    %v1224 = vmul.f32 %v1220, %v363
    %v1225 = vmul.f32 %v1223, %v363
    %v1226 = vadd.f32 %v1224, 1e-06
    %v1227 = vadd.f32 %v1225, 1e-06
    %v1228 = vrsqrt.pop %v1226
    %v1229 = vmul.f32 %v1228, %v1226
    %v1230 = vmul.f32 %v1229, %v1228
    %v1231 = vmul.f32 0.5, %v1230
    %v1232 = vsub.f32 1.5, %v1231
    %v1233 = vmul.f32 %v1228, %v1232
    %vm1234 = vweird.f32 %v1226
    %vm1235 = vweird.f32 %v1228
    %vm1236 = vmor %vm1234, %vm1235
    %v1237 = vsel %vm1236, %v1228, %v1233
    %v1238 = vrsqrt.pop %v1227
    %v1239 = vmul.f32 %v1238, %v1227
    %v1240 = vmul.f32 %v1239, %v1238
    %v1241 = vmul.f32 0.5, %v1240
    %v1242 = vsub.f32 1.5, %v1241
    %v1243 = vmul.f32 %v1238, %v1242
    %vm1244 = vweird.f32 %v1227
    %vm1245 = vweird.f32 %v1238
    %vm1246 = vmor %vm1244, %vm1245
    %v1247 = vsel %vm1246, %v1238, %v1243
    %v1248 = vmul.f32 %v1215, %v1237
    %v1249 = vmul.f32 %v1216, %v1247
    %v1250 = vperm.slane %v1207, 0
    %v1251 = vmul.f32 %v1248, %v1250
    %v1252 = vmul.f32 %v1249, %v1250
    %v1253 = vperm.slane %v1207, 1
    %v1254 = vadd.f32 %v1251, %v1253
    %v1255 = vadd.f32 %v1252, %v1253
    %s1256 = scalar_lea.vmem [#allocation12], 384
    %v1257 = vld [vmem:[%s1256] sm:$0xff]
    %v1258 = vld [vmem:[%s1256 + $0x8] sm:$0xff]
    %v1259 = vld [vmem:[%s1256 + $0x10] sm:$0xff]
    %v1260 = vld [vmem:[%s1256 + $0x18] sm:$0xff]
    %v1261 = vld [vmem:[%s1256 + $0x20] sm:$0xff]
    %v1262 = vld [vmem:[%s1256 + $0x28] sm:$0xff]
    %v1263 = vld [vmem:[%s1256 + $0x30] sm:$0xff]
    %v1264 = vld [vmem:[%s1256 + $0x38] sm:$0xff]
    %v1265 = vld [vmem:[%s1256 + $0x40] sm:$0xff]
    %v1266 = vld [vmem:[%s1256 + $0x48] sm:$0xff]
    %v1267 = vld [vmem:[%s1256 + $0x50] sm:$0xff]
    %v1268 = vld [vmem:[%s1256 + $0x58] sm:$0xff]
    %v1269 = vld [vmem:[%s1256 + $0x60] sm:$0xff]
    %v1270 = vld [vmem:[%s1256 + $0x68] sm:$0xff]
    %v1271 = vld [vmem:[%s1256 + $0x70] sm:$0xff]
    %v1272 = vld [vmem:[%s1256 + $0x78] sm:$0xff]
    %v1273 = vld [vmem:[%s1256 + $0x80] sm:$0xff]
    %v1274 = vld [vmem:[%s1256 + $0x88] sm:$0xff]
    %v1275 = vld [vmem:[%s1256 + $0x90] sm:$0xff]
    %v1276 = vld [vmem:[%s1256 + $0x98] sm:$0xff]
    %v1277 = vld [vmem:[%s1256 + $0xa0] sm:$0xff]
    %v1278 = vld [vmem:[%s1256 + $0xa8] sm:$0xff]
    %v1279 = vld [vmem:[%s1256 + $0xb0] sm:$0xff]
    %v1280 = vld [vmem:[%s1256 + $0xb8] sm:$0xff]
    %v1281 = vld [vmem:[%s1256 + $0xc0] sm:$0xff]
    %v1282 = vld [vmem:[%s1256 + $0xc8] sm:$0xff]
    %v1283 = vld [vmem:[%s1256 + $0xd0] sm:$0xff]
    %v1284 = vld [vmem:[%s1256 + $0xd8] sm:$0xff]
    %v1285 = vld [vmem:[%s1256 + $0xe0] sm:$0xff]
    %v1286 = vld [vmem:[%s1256 + $0xe8] sm:$0xff]
    %v1287 = vld [vmem:[%s1256 + $0xf0] sm:$0xff]
    %v1288 = vld [vmem:[%s1256 + $0xf8] sm:$0xff]
    %v1289 = vld [vmem:[%s1256 + $0x100] sm:$0xff]
    %v1290 = vld [vmem:[%s1256 + $0x108] sm:$0xff]
    %v1291 = vld [vmem:[%s1256 + $0x110] sm:$0xff]
    %v1292 = vld [vmem:[%s1256 + $0x118] sm:$0xff]
    %v1293 = vld [vmem:[%s1256 + $0x120] sm:$0xff]
    %v1294 = vld [vmem:[%s1256 + $0x128] sm:$0xff]
    %v1295 = vld [vmem:[%s1256 + $0x130] sm:$0xff]
    %v1296 = vld [vmem:[%s1256 + $0x138] sm:$0xff]
    %v1297 = vld [vmem:[%s1256 + $0x140] sm:$0xff]
    %v1298 = vld [vmem:[%s1256 + $0x148] sm:$0xff]
    %v1299 = vld [vmem:[%s1256 + $0x150] sm:$0xff]
    %v1300 = vld [vmem:[%s1256 + $0x158] sm:$0xff]
    %v1301 = vld [vmem:[%s1256 + $0x160] sm:$0xff]
    %v1302 = vld [vmem:[%s1256 + $0x168] sm:$0xff]
    %v1303 = vld [vmem:[%s1256 + $0x170] sm:$0xff]
    %v1304 = vld [vmem:[%s1256 + $0x178] sm:$0xff]
    %s1305 = scalar_lea.vmem [#allocation13], 3
    %v1306 = vld [vmem:[%s1305] sm:$0x7]
    %v1308 = vperm.slane %v1306, 0
    %v1309 = vperm.slane %v1306, 1
    %v1310 = vperm.slane %v1306, 2
    %1314 = vmatpush.msra.mxu0 %v1302
    %1315 = vmatpush.msra.mxu0 %v1299
    %1316 = vmatpush.msra.mxu0 %v1296
    %1317 = vmatpush.msra.mxu0 %v1293
    %1318 = vmatpush.msra.mxu0 %v1290
    %1319 = vmatpush.msra.mxu0 %v1287
    %1320 = vmatpush.msra.mxu0 %v1284
    %1321 = vmatpush.msra.mxu0 %v1281
    %1322 = vmatpush.msra.mxu0 %v1278
    %1323 = vmatpush.msra.mxu0 %v1275
    %1324 = vmatpush.msra.mxu0 %v1272
    %1325 = vmatpush.msra.mxu0 %v1269
    %1326 = vmatpush.msra.mxu0 %v1266
    %1327 = vmatpush.msra.mxu0 %v1263
    %1328 = vmatpush.msra.mxu0 %v1260
    %1329 = vmatpush.msra.mxu0 %v1257
    %1330 = vmatmul.f32.gmra.mxu0 %v1254
    %v1331 = vpop.f32.mrf.mxu0
    %v1332 = vadd.f32 %v1308, %v1331
    %1333 = vmatmul.f32.gmra.mxu0 %v1255
    %v1334 = vpop.f32.mrf.mxu0
    %v1335 = vadd.f32 %v1308, %v1334
    %1336 = vdwg.mxu0
    %1337 = vmatpush.msra.mxu0 %v1303
    %1338 = vmatpush.msra.mxu0 %v1300
    %1339 = vmatpush.msra.mxu0 %v1297
    %1340 = vmatpush.msra.mxu0 %v1294
    %1341 = vmatpush.msra.mxu0 %v1291
    %1342 = vmatpush.msra.mxu0 %v1288
    %1343 = vmatpush.msra.mxu0 %v1285
    %1344 = vmatpush.msra.mxu0 %v1282
    %1345 = vmatpush.msra.mxu0 %v1279
    %1346 = vmatpush.msra.mxu0 %v1276
    %1347 = vmatpush.msra.mxu0 %v1273
    %1348 = vmatpush.msra.mxu0 %v1270
    %1349 = vmatpush.msra.mxu0 %v1267
    %1350 = vmatpush.msra.mxu0 %v1264
    %1351 = vmatpush.msra.mxu0 %v1261
    %1352 = vmatpush.msra.mxu0 %v1258
    %1353 = vmatmul.f32.gmra.mxu0 %v1254
    %v1354 = vpop.f32.mrf.mxu0
    %v1355 = vadd.f32 %v1309, %v1354
    %1356 = vmatmul.f32.gmra.mxu0 %v1255
    %v1357 = vpop.f32.mrf.mxu0
    %v1358 = vadd.f32 %v1309, %v1357
    %1359 = vdwg.mxu0
    %1360 = vmatpush.msra.mxu0 %v1304
    %1361 = vmatpush.msra.mxu0 %v1301
    %1362 = vmatpush.msra.mxu0 %v1298
    %1363 = vmatpush.msra.mxu0 %v1295
    %1364 = vmatpush.msra.mxu0 %v1292
    %1365 = vmatpush.msra.mxu0 %v1289
    %1366 = vmatpush.msra.mxu0 %v1286
    %1367 = vmatpush.msra.mxu0 %v1283
    %1368 = vmatpush.msra.mxu0 %v1280
    %1369 = vmatpush.msra.mxu0 %v1277
    %1370 = vmatpush.msra.mxu0 %v1274
    %1371 = vmatpush.msra.mxu0 %v1271
    %1372 = vmatpush.msra.mxu0 %v1268
    %1373 = vmatpush.msra.mxu0 %v1265
    %1374 = vmatpush.msra.mxu0 %v1262
    %1375 = vmatpush.msra.mxu0 %v1259
    %1376 = vmatmul.f32.gmra.mxu0 %v1254
    %v1377 = vpop.f32.mrf.mxu0
    %v1378 = vadd.f32 %v1310, %v1377
    %1379 = vmatmul.f32.gmra.mxu0 %v1255
    %v1380 = vpop.f32.mrf.mxu0
    %v1381 = vadd.f32 %v1310, %v1380
    %1382 = vdwg.mxu0
    %v1383 = vmul.f32 %v1332, %v534
    %v1384 = vmul.f32 %v1335, %v534
    %v1385 = vmul.f32 %v1355, %v534
    %v1386 = vmul.f32 %v1358, %v534
    %1387 = vmatpush.xpose.msra.mxu0 0.0
    %1388 = vmatpush.xpose.msra.mxu0 0.0
    %1389 = vmatpush.xpose.msra.mxu0 0.0
    %1390 = vmatpush.xpose.msra.mxu0 0.0
    %1391 = vmatpush.xpose.msra.mxu0 0.0
    %1392 = vmatpush.xpose.msra.mxu0 0.0
    %1393 = vmatpush.xpose.msra.mxu0 0.0
    %1394 = vmatpush.xpose.msra.mxu0 0.0
    %1395 = vmatpush.xpose.msra.mxu0 0.0
    %1396 = vmatpush.xpose.msra.mxu0 0.0
    %1397 = vmatpush.xpose.msra.mxu0 0.0
    %1398 = vmatpush.xpose.msra.mxu0 0.0
    %1399 = vmatpush.xpose.msra.mxu0 0.0
    %1400 = vmatpush.xpose.msra.mxu0 0.0
    %1401 = vmatpush.xpose.msra.mxu0 %v1386
    %1402 = vmatpush.xpose.msra.mxu0 %v1385
    %1403 = vmatmul.f32.gmra.mxu0 %v1383
    %v1404 = vpop.f32.mrf.mxu0
    %v1405 = vadd.f32 0.0, %v1404
    %1406 = vmatmul.f32.gmra.mxu0 %v1384
    %v1407 = vpop.f32.mrf.mxu0
    %v1408 = vadd.f32 0.0, %v1407
    %1409 = vdwg.mxu0
    %v1410 = vmul.f32 %v1405, 0.17677669
    %v1411 = vmul.f32 %v1408, 0.17677669
    %v1412 = vadd.f32 %v1410, %v348
    %v1413 = vadd.f32 %v1411, %v349
    %v1414 = vsel %vm567, %v1412, -inf
    %1415 = vmax.xlane.f32.xlu0 %v1414
    %v1416 = vpop.xlane.xlu0 %1415
    %v1417 = vsel %vm571, %v1413, -inf
    %1418 = vmax.xlane.f32.xlu0 %v1417
    %v1419 = vpop.xlane.xlu0 %1418
    %v1420 = vsub.f32 %v1412, %v1416
    %v1421 = vsub.f32 %v1413, %v1419
    %v1422 = vmul.f32 %v1420, 1.442695
    %v1423 = vpow.pop %v1422
    %v1424 = vmul.f32 %v1421, 1.442695
    %v1425 = vpow.pop %v1424
    %v1426 = vsel %vm567, %v1423, 0.0
    %1427 = vadd.xlane.f32.xlu0 %v1426
    %v1428 = vpop.xlane.xlu0 %1427
    %v1429 = vsel %vm571, %v1425, 0.0
    %1430 = vadd.xlane.f32.xlu0 %v1429
    %v1431 = vpop.xlane.xlu0 %1430
    %v1432 = vrcp.pop %v1428
    %v1433 = vrcp.pop %v1431
    %v1434 = vmul.f32 %v1423, %v1432
    %v1435 = vmul.f32 %v1425, %v1433
    %v1436 = vmul.f32 %v1378, %v534
    %v1437 = vmul.f32 %v1381, %v534
    %v1438 = vmul.f32 %v1332, %v596
    %v1439 = vmul.f32 %v1335, %v596
    %v1440 = vmul.f32 %v1355, %v596
    %v1441 = vmul.f32 %v1358, %v596
    %1442 = vmatpush.xpose.msra.mxu0 0.0
    %1443 = vmatpush.xpose.msra.mxu0 0.0
    %1444 = vmatpush.xpose.msra.mxu0 0.0
    %1445 = vmatpush.xpose.msra.mxu0 0.0
    %1446 = vmatpush.xpose.msra.mxu0 0.0
    %1447 = vmatpush.xpose.msra.mxu0 0.0
    %1448 = vmatpush.xpose.msra.mxu0 0.0
    %1449 = vmatpush.xpose.msra.mxu0 0.0
    %1450 = vmatpush.xpose.msra.mxu0 0.0
    %1451 = vmatpush.xpose.msra.mxu0 0.0
    %1452 = vmatpush.xpose.msra.mxu0 0.0
    %1453 = vmatpush.xpose.msra.mxu0 0.0
    %1454 = vmatpush.xpose.msra.mxu0 0.0
    %1455 = vmatpush.xpose.msra.mxu0 0.0
    %1456 = vmatpush.xpose.msra.mxu0 %v1441
    %1457 = vmatpush.xpose.msra.mxu0 %v1440
    %1458 = vmatmul.f32.gmra.mxu0 %v1438
    %v1459 = vpop.f32.mrf.mxu0
    %v1460 = vadd.f32 0.0, %v1459
    %1461 = vmatmul.f32.gmra.mxu0 %v1439
    %v1462 = vpop.f32.mrf.mxu0
    %v1463 = vadd.f32 0.0, %v1462
    %1464 = vdwg.mxu0
    %v1465 = vmul.f32 %v1460, 0.17677669
    %v1466 = vmul.f32 %v1463, 0.17677669
    %v1467 = vadd.f32 %v1465, %v348
    %v1468 = vadd.f32 %v1466, %v349
    %v1469 = vsel %vm567, %v1467, -inf
    %1470 = vmax.xlane.f32.xlu0 %v1469
    %v1471 = vpop.xlane.xlu0 %1470
    %v1472 = vsel %vm571, %v1468, -inf
    %1473 = vmax.xlane.f32.xlu0 %v1472
    %v1474 = vpop.xlane.xlu0 %1473
    %v1475 = vsub.f32 %v1467, %v1471
    %v1476 = vsub.f32 %v1468, %v1474
    %v1477 = vmul.f32 %v1475, 1.442695
    %v1478 = vpow.pop %v1477
    %v1479 = vmul.f32 %v1476, 1.442695
    %v1480 = vpow.pop %v1479
    %v1481 = vsel %vm567, %v1478, 0.0
    %1482 = vadd.xlane.f32.xlu0 %v1481
    %v1483 = vpop.xlane.xlu0 %1482
    %v1484 = vsel %vm571, %v1480, 0.0
    %1485 = vadd.xlane.f32.xlu0 %v1484
    %v1486 = vpop.xlane.xlu0 %1485
    %v1487 = vrcp.pop %v1483
    %v1488 = vrcp.pop %v1486
    %v1489 = vmul.f32 %v1478, %v1487
    %v1490 = vmul.f32 %v1480, %v1488
    %v1491 = vmul.f32 %v1378, %v596
    %v1492 = vmul.f32 %v1381, %v596
    %v1494 = vsel %vm567, %v1489, 0
    %v1497 = vsel %vm567, %v1490, 0
    %v1500 = vsel %vm353, %v1492, 0
    %1502 = vmatpush.msra.mxu0 0.0
    %1503 = vmatpush.msra.mxu0 0.0
    %1504 = vmatpush.msra.mxu0 0.0
    %1505 = vmatpush.msra.mxu0 0.0
    %1506 = vmatpush.msra.mxu0 0.0
    %1507 = vmatpush.msra.mxu0 0.0
    %1508 = vmatpush.msra.mxu0 0.0
    %1509 = vmatpush.msra.mxu0 0.0
    %1510 = vmatpush.msra.mxu0 0.0
    %1511 = vmatpush.msra.mxu0 0.0
    %1512 = vmatpush.msra.mxu0 0.0
    %1513 = vmatpush.msra.mxu0 0.0
    %1514 = vmatpush.msra.mxu0 0.0
    %1515 = vmatpush.msra.mxu0 0.0
    %1516 = vmatpush.msra.mxu0 %v1500
    %1517 = vmatpush.msra.mxu0 %v1491
    %1518 = vmatmul.f32.gmra.mxu0 %v1494
    %v1519 = vpop.f32.mrf.mxu0
    %v1520 = vadd.f32 0.0, %v1519
    %1521 = vmatmul.f32.gmra.mxu0 %v1497
    %v1522 = vpop.f32.mrf.mxu0
    %v1523 = vadd.f32 0.0, %v1522
    %1524 = vdwg.mxu0
    %v1526 = vsel %vm567, %v1434, 0
    %v1529 = vsel %vm567, %v1435, 0
    %v1532 = vsel %vm353, %v1437, 0
    %1534 = vmatpush.msra.mxu0 0.0
    %1535 = vmatpush.msra.mxu0 0.0
    %1536 = vmatpush.msra.mxu0 0.0
    %1537 = vmatpush.msra.mxu0 0.0
    %1538 = vmatpush.msra.mxu0 0.0
    %1539 = vmatpush.msra.mxu0 0.0
    %1540 = vmatpush.msra.mxu0 0.0
    %1541 = vmatpush.msra.mxu0 0.0
    %1542 = vmatpush.msra.mxu0 0.0
    %1543 = vmatpush.msra.mxu0 0.0
    %1544 = vmatpush.msra.mxu0 0.0
    %1545 = vmatpush.msra.mxu0 0.0
    %1546 = vmatpush.msra.mxu0 0.0
    %1547 = vmatpush.msra.mxu0 0.0
    %1548 = vmatpush.msra.mxu0 %v1532
    %1549 = vmatpush.msra.mxu0 %v1436
    %1550 = vmatmul.f32.gmra.mxu0 %v1526
    %v1551 = vpop.f32.mrf.mxu0
    %v1552 = vadd.f32 %v1520, %v1551
    %1553 = vmatmul.f32.gmra.mxu0 %v1529
    %v1554 = vpop.f32.mrf.mxu0
    %v1555 = vadd.f32 %v1523, %v1554
    %1556 = vdwg.mxu0
    %v1557 = vmul.f32 %v1332, %v720
    %v1558 = vmul.f32 %v1335, %v720
    %v1559 = vmul.f32 %v1355, %v720
    %v1560 = vmul.f32 %v1358, %v720
    %1561 = vmatpush.xpose.msra.mxu0 0.0
    %1562 = vmatpush.xpose.msra.mxu0 0.0
    %1563 = vmatpush.xpose.msra.mxu0 0.0
    %1564 = vmatpush.xpose.msra.mxu0 0.0
    %1565 = vmatpush.xpose.msra.mxu0 0.0
    %1566 = vmatpush.xpose.msra.mxu0 0.0
    %1567 = vmatpush.xpose.msra.mxu0 0.0
    %1568 = vmatpush.xpose.msra.mxu0 0.0
    %1569 = vmatpush.xpose.msra.mxu0 0.0
    %1570 = vmatpush.xpose.msra.mxu0 0.0
    %1571 = vmatpush.xpose.msra.mxu0 0.0
    %1572 = vmatpush.xpose.msra.mxu0 0.0
    %1573 = vmatpush.xpose.msra.mxu0 0.0
    %1574 = vmatpush.xpose.msra.mxu0 0.0
    %1575 = vmatpush.xpose.msra.mxu0 %v1560
    %1576 = vmatpush.xpose.msra.mxu0 %v1559
    %1577 = vmatmul.f32.gmra.mxu0 %v1557
    %v1578 = vpop.f32.mrf.mxu0
    %v1579 = vadd.f32 0.0, %v1578
    %1580 = vmatmul.f32.gmra.mxu0 %v1558
    %v1581 = vpop.f32.mrf.mxu0
    %v1582 = vadd.f32 0.0, %v1581
    %1583 = vdwg.mxu0
    %v1584 = vmul.f32 %v1579, 0.17677669
    %v1585 = vmul.f32 %v1582, 0.17677669
    %v1586 = vadd.f32 %v1584, %v348
    %v1587 = vadd.f32 %v1585, %v349
    %v1588 = vsel %vm567, %v1586, -inf
    %1589 = vmax.xlane.f32.xlu0 %v1588
    %v1590 = vpop.xlane.xlu0 %1589
    %v1591 = vsel %vm571, %v1587, -inf
    %1592 = vmax.xlane.f32.xlu0 %v1591
    %v1593 = vpop.xlane.xlu0 %1592
    %v1594 = vsub.f32 %v1586, %v1590
    %v1595 = vsub.f32 %v1587, %v1593
    %v1596 = vmul.f32 %v1594, 1.442695
    %v1597 = vpow.pop %v1596
    %v1598 = vmul.f32 %v1595, 1.442695
    %v1599 = vpow.pop %v1598
    %v1600 = vsel %vm567, %v1597, 0.0
    %1601 = vadd.xlane.f32.xlu0 %v1600
    %v1602 = vpop.xlane.xlu0 %1601
    %v1603 = vsel %vm571, %v1599, 0.0
    %1604 = vadd.xlane.f32.xlu0 %v1603
    %v1605 = vpop.xlane.xlu0 %1604
    %v1606 = vrcp.pop %v1602
    %v1607 = vrcp.pop %v1605
    %v1608 = vmul.f32 %v1597, %v1606
    %v1609 = vmul.f32 %v1599, %v1607
    %v1610 = vmul.f32 %v1378, %v720
    %v1611 = vmul.f32 %v1381, %v720
    %v1613 = vsel %vm567, %v1608, 0
    %v1616 = vsel %vm567, %v1609, 0
    %v1619 = vsel %vm353, %v1611, 0
    %1621 = vmatpush.msra.mxu0 0.0
    %1622 = vmatpush.msra.mxu0 0.0
    %1623 = vmatpush.msra.mxu0 0.0
    %1624 = vmatpush.msra.mxu0 0.0
    %1625 = vmatpush.msra.mxu0 0.0
    %1626 = vmatpush.msra.mxu0 0.0
    %1627 = vmatpush.msra.mxu0 0.0
    %1628 = vmatpush.msra.mxu0 0.0
    %1629 = vmatpush.msra.mxu0 0.0
    %1630 = vmatpush.msra.mxu0 0.0
    %1631 = vmatpush.msra.mxu0 0.0
    %1632 = vmatpush.msra.mxu0 0.0
    %1633 = vmatpush.msra.mxu0 0.0
    %1634 = vmatpush.msra.mxu0 0.0
    %1635 = vmatpush.msra.mxu0 %v1619
    %1636 = vmatpush.msra.mxu0 %v1610
    %1637 = vmatmul.f32.gmra.mxu0 %v1613
    %v1638 = vpop.f32.mrf.mxu0
    %v1639 = vadd.f32 0.0, %v1638
    %1640 = vmatmul.f32.gmra.mxu0 %v1616
    %v1641 = vpop.f32.mrf.mxu0
    %v1642 = vadd.f32 0.0, %v1641
    %1643 = vdwg.mxu0
    %v1644 = vadd.f32 %v1552, %v1639
    %v1645 = vadd.f32 %v1555, %v1642
    %v1646 = vmul.f32 %v1332, %v814
    %v1647 = vmul.f32 %v1335, %v814
    %v1648 = vmul.f32 %v1355, %v814
    %v1649 = vmul.f32 %v1358, %v814
    %1650 = vmatpush.xpose.msra.mxu0 0.0
    %1651 = vmatpush.xpose.msra.mxu0 0.0
    %1652 = vmatpush.xpose.msra.mxu0 0.0
    %1653 = vmatpush.xpose.msra.mxu0 0.0
    %1654 = vmatpush.xpose.msra.mxu0 0.0
    %1655 = vmatpush.xpose.msra.mxu0 0.0
    %1656 = vmatpush.xpose.msra.mxu0 0.0
    %1657 = vmatpush.xpose.msra.mxu0 0.0
    %1658 = vmatpush.xpose.msra.mxu0 0.0
    %1659 = vmatpush.xpose.msra.mxu0 0.0
    %1660 = vmatpush.xpose.msra.mxu0 0.0
    %1661 = vmatpush.xpose.msra.mxu0 0.0
    %1662 = vmatpush.xpose.msra.mxu0 0.0
    %1663 = vmatpush.xpose.msra.mxu0 0.0
    %1664 = vmatpush.xpose.msra.mxu0 %v1649
    %1665 = vmatpush.xpose.msra.mxu0 %v1648
    %1666 = vmatmul.f32.gmra.mxu0 %v1646
    %v1667 = vpop.f32.mrf.mxu0
    %v1668 = vadd.f32 0.0, %v1667
    %1669 = vmatmul.f32.gmra.mxu0 %v1647
    %v1670 = vpop.f32.mrf.mxu0
    %v1671 = vadd.f32 0.0, %v1670
    %1672 = vdwg.mxu0
    %v1673 = vmul.f32 %v1668, 0.17677669
    %v1674 = vmul.f32 %v1671, 0.17677669
    %v1675 = vadd.f32 %v1673, %v348
    %v1676 = vadd.f32 %v1674, %v349
    %v1677 = vsel %vm567, %v1675, -inf
    %1678 = vmax.xlane.f32.xlu0 %v1677
    %v1679 = vpop.xlane.xlu0 %1678
    %v1680 = vsel %vm571, %v1676, -inf
    %1681 = vmax.xlane.f32.xlu0 %v1680
    %v1682 = vpop.xlane.xlu0 %1681
    %v1683 = vsub.f32 %v1675, %v1679
    %v1684 = vsub.f32 %v1676, %v1682
    %v1685 = vmul.f32 %v1683, 1.442695
    %v1686 = vpow.pop %v1685
    %v1687 = vmul.f32 %v1684, 1.442695
    %v1688 = vpow.pop %v1687
    %v1689 = vsel %vm567, %v1686, 0.0
    %1690 = vadd.xlane.f32.xlu0 %v1689
    %v1691 = vpop.xlane.xlu0 %1690
    %v1692 = vsel %vm571, %v1688, 0.0
    %1693 = vadd.xlane.f32.xlu0 %v1692
    %v1694 = vpop.xlane.xlu0 %1693
    %v1695 = vrcp.pop %v1691
    %v1696 = vrcp.pop %v1694
    %v1697 = vmul.f32 %v1686, %v1695
    %v1698 = vmul.f32 %v1688, %v1696
    %v1699 = vmul.f32 %v1378, %v814
    %v1700 = vmul.f32 %v1381, %v814
    %v1702 = vsel %vm567, %v1697, 0
    %v1705 = vsel %vm567, %v1698, 0
    %v1708 = vsel %vm353, %v1700, 0
    %1710 = vmatpush.msra.mxu0 0.0
    %1711 = vmatpush.msra.mxu0 0.0
    %1712 = vmatpush.msra.mxu0 0.0
    %1713 = vmatpush.msra.mxu0 0.0
    %1714 = vmatpush.msra.mxu0 0.0
    %1715 = vmatpush.msra.mxu0 0.0
    %1716 = vmatpush.msra.mxu0 0.0
    %1717 = vmatpush.msra.mxu0 0.0
    %1718 = vmatpush.msra.mxu0 0.0
    %1719 = vmatpush.msra.mxu0 0.0
    %1720 = vmatpush.msra.mxu0 0.0
    %1721 = vmatpush.msra.mxu0 0.0
    %1722 = vmatpush.msra.mxu0 0.0
    %1723 = vmatpush.msra.mxu0 0.0
    %1724 = vmatpush.msra.mxu0 %v1708
    %1725 = vmatpush.msra.mxu0 %v1699
    %1726 = vmatmul.f32.gmra.mxu0 %v1702
    %v1727 = vpop.f32.mrf.mxu0
    %v1728 = vadd.f32 0.0, %v1727
    %1729 = vmatmul.f32.gmra.mxu0 %v1705
    %v1730 = vpop.f32.mrf.mxu0
    %v1731 = vadd.f32 0.0, %v1730
    %1732 = vdwg.mxu0
    %v1733 = vadd.f32 %v1644, %v1728
    %v1734 = vadd.f32 %v1645, %v1731
    %s1735 = scalar_lea.vmem [#allocation15], 128
    %v1736 = vld [vmem:[%s1735] sm:$0xff]
    %v1737 = vld [vmem:[%s1735 + $0x8] sm:$0xff]
    %v1738 = vld [vmem:[%s1735 + $0x10] sm:$0xff]
    %v1739 = vld [vmem:[%s1735 + $0x18] sm:$0xff]
    %v1740 = vld [vmem:[%s1735 + $0x20] sm:$0xff]
    %v1741 = vld [vmem:[%s1735 + $0x28] sm:$0xff]
    %v1742 = vld [vmem:[%s1735 + $0x30] sm:$0xff]
    %v1743 = vld [vmem:[%s1735 + $0x38] sm:$0xff]
    %v1744 = vld [vmem:[%s1735 + $0x40] sm:$0xff]
    %v1745 = vld [vmem:[%s1735 + $0x48] sm:$0xff]
    %v1746 = vld [vmem:[%s1735 + $0x50] sm:$0xff]
    %v1747 = vld [vmem:[%s1735 + $0x58] sm:$0xff]
    %v1748 = vld [vmem:[%s1735 + $0x60] sm:$0xff]
    %v1749 = vld [vmem:[%s1735 + $0x68] sm:$0xff]
    %v1750 = vld [vmem:[%s1735 + $0x70] sm:$0xff]
    %v1751 = vld [vmem:[%s1735 + $0x78] sm:$0xff]
    %1752 = vmatpush.msra.mxu0 %v1751
    %1753 = vmatpush.msra.mxu0 %v1750
    %1754 = vmatpush.msra.mxu0 %v1749
    %1755 = vmatpush.msra.mxu0 %v1748
    %1756 = vmatpush.msra.mxu0 %v1747
    %1757 = vmatpush.msra.mxu0 %v1746
    %1758 = vmatpush.msra.mxu0 %v1745
    %1759 = vmatpush.msra.mxu0 %v1744
    %1760 = vmatpush.msra.mxu0 %v1743
    %1761 = vmatpush.msra.mxu0 %v1742
    %1762 = vmatpush.msra.mxu0 %v1741
    %1763 = vmatpush.msra.mxu0 %v1740
    %1764 = vmatpush.msra.mxu0 %v1739
    %1765 = vmatpush.msra.mxu0 %v1738
    %1766 = vmatpush.msra.mxu0 %v1737
    %1767 = vmatpush.msra.mxu0 %v1736
    %1768 = vmatmul.f32.gmra.mxu0 %v1733
    %v1769 = vpop.f32.mrf.mxu0
    %v1770 = vadd.f32 0.0, %v1769
    %1771 = vmatmul.f32.gmra.mxu0 %v1734
    %v1772 = vpop.f32.mrf.mxu0
    %v1773 = vadd.f32 0.0, %v1772
    %1774 = vdwg.mxu0
    %v1775 = vadd.f32 %v1204, %v1770
    %v1776 = vadd.f32 %v1205, %v1773
    %s1777 = scalar_lea.vmem [#allocation16], 1
    %v1778 = vld [vmem:[%s1777] sm:$0x1]
    %v1780 = vperm.slane %v1778, 0
    %v1782 = vadd.f32 %v1775, %v1780
    %v1783 = vadd.f32 %v1776, %v1780
    %1784 = vadd.xlane.f32.xlu0 %v1782
    %v1785 = vpop.xlane.xlu0 %1784
    %v1786 = vsel %vm353, %v1783, 0.0
    %1787 = vadd.xlane.f32.xlu0 %v1786
    %v1788 = vpop.xlane.xlu0 %1787
    %v1789 = vmul.f32 %v1785, %v363
    %v1790 = vmul.f32 %v1788, %v363
    %v1791 = vsub.f32 %v1782, %v1789
    %v1792 = vsub.f32 %v1783, %v1790
    %v1793 = vmul.f32 %v1791, %v1791
    %v1794 = vmul.f32 %v1792, %v1792
    %1795 = vadd.xlane.f32.xlu0 %v1793
    %v1796 = vpop.xlane.xlu0 %1795
    %v1797 = vsel %vm353, %v1794, 0.0
    %1798 = vadd.xlane.f32.xlu0 %v1797
    %v1799 = vpop.xlane.xlu0 %1798
    %v1800 = vmul.f32 %v1796, %v363
    %v1801 = vmul.f32 %v1799, %v363
    %v1802 = vadd.f32 %v1800, 1e-06
    %v1803 = vadd.f32 %v1801, 1e-06
    %v1804 = vrsqrt.pop %v1802
    %v1805 = vmul.f32 %v1804, %v1802
    %v1806 = vmul.f32 %v1805, %v1804
    %v1807 = vmul.f32 0.5, %v1806
    %v1808 = vsub.f32 1.5, %v1807
    %v1809 = vmul.f32 %v1804, %v1808
    %vm1810 = vweird.f32 %v1802
    %vm1811 = vweird.f32 %v1804
    %vm1812 = vmor %vm1810, %vm1811
    %v1813 = vsel %vm1812, %v1804, %v1809
    %v1814 = vrsqrt.pop %v1803
    %v1815 = vmul.f32 %v1814, %v1803
    %v1816 = vmul.f32 %v1815, %v1814
    %v1817 = vmul.f32 0.5, %v1816
    %v1818 = vsub.f32 1.5, %v1817
    %v1819 = vmul.f32 %v1814, %v1818
    %vm1820 = vweird.f32 %v1803
    %vm1821 = vweird.f32 %v1814
    %vm1822 = vmor %vm1820, %vm1821
    %v1823 = vsel %vm1822, %v1814, %v1819
    %v1824 = vmul.f32 %v1791, %v1813
    %v1825 = vmul.f32 %v1792, %v1823
    %v1826 = vperm.slane %v1207, 2
    %v1827 = vmul.f32 %v1824, %v1826
    %v1828 = vmul.f32 %v1825, %v1826
    %v1829 = vperm.slane %v1207, 3
    %v1830 = vadd.f32 %v1827, %v1829
    %v1831 = vadd.f32 %v1828, %v1829
    %s1832 = scalar_lea.vmem [#allocation18], 256
    %v1833 = vld [vmem:[%s1832] sm:$0xff]
    %v1834 = vld [vmem:[%s1832 + $0x8] sm:$0xff]
    %v1835 = vld [vmem:[%s1832 + $0x10] sm:$0xff]
    %v1836 = vld [vmem:[%s1832 + $0x18] sm:$0xff]
    %v1837 = vld [vmem:[%s1832 + $0x20] sm:$0xff]
    %v1838 = vld [vmem:[%s1832 + $0x28] sm:$0xff]
    %v1839 = vld [vmem:[%s1832 + $0x30] sm:$0xff]
    %v1840 = vld [vmem:[%s1832 + $0x38] sm:$0xff]
    %v1841 = vld [vmem:[%s1832 + $0x40] sm:$0xff]
    %v1842 = vld [vmem:[%s1832 + $0x48] sm:$0xff]
    %v1843 = vld [vmem:[%s1832 + $0x50] sm:$0xff]
    %v1844 = vld [vmem:[%s1832 + $0x58] sm:$0xff]
    %v1845 = vld [vmem:[%s1832 + $0x60] sm:$0xff]
    %v1846 = vld [vmem:[%s1832 + $0x68] sm:$0xff]
    %v1847 = vld [vmem:[%s1832 + $0x70] sm:$0xff]
    %v1848 = vld [vmem:[%s1832 + $0x78] sm:$0xff]
    %v1849 = vld [vmem:[%s1832 + $0x80] sm:$0xff]
    %v1850 = vld [vmem:[%s1832 + $0x88] sm:$0xff]
    %v1851 = vld [vmem:[%s1832 + $0x90] sm:$0xff]
    %v1852 = vld [vmem:[%s1832 + $0x98] sm:$0xff]
    %v1853 = vld [vmem:[%s1832 + $0xa0] sm:$0xff]
    %v1854 = vld [vmem:[%s1832 + $0xa8] sm:$0xff]
    %v1855 = vld [vmem:[%s1832 + $0xb0] sm:$0xff]
    %v1856 = vld [vmem:[%s1832 + $0xb8] sm:$0xff]
    %v1857 = vld [vmem:[%s1832 + $0xc0] sm:$0xff]
    %v1858 = vld [vmem:[%s1832 + $0xc8] sm:$0xff]
    %v1859 = vld [vmem:[%s1832 + $0xd0] sm:$0xff]
    %v1860 = vld [vmem:[%s1832 + $0xd8] sm:$0xff]
    %v1861 = vld [vmem:[%s1832 + $0xe0] sm:$0xff]
    %v1862 = vld [vmem:[%s1832 + $0xe8] sm:$0xff]
    %v1863 = vld [vmem:[%s1832 + $0xf0] sm:$0xff]
    %v1864 = vld [vmem:[%s1832 + $0xf8] sm:$0xff]
    %s1865 = scalar_lea.vmem %s12, 2
    %v1866 = vld [vmem:[%s1865] sm:$0x3]
    %v1868 = vperm.slane %v1866, 0
    %v1869 = vperm.slane %v1866, 1
    %1872 = vmatpush.msra.mxu0 %v1863
    %1873 = vmatpush.msra.mxu0 %v1861
    %1874 = vmatpush.msra.mxu0 %v1859
    %1875 = vmatpush.msra.mxu0 %v1857
    %1876 = vmatpush.msra.mxu0 %v1855
    %1877 = vmatpush.msra.mxu0 %v1853
    %1878 = vmatpush.msra.mxu0 %v1851
    %1879 = vmatpush.msra.mxu0 %v1849
    %1880 = vmatpush.msra.mxu0 %v1847
    %1881 = vmatpush.msra.mxu0 %v1845
    %1882 = vmatpush.msra.mxu0 %v1843
    %1883 = vmatpush.msra.mxu0 %v1841
    %1884 = vmatpush.msra.mxu0 %v1839
    %1885 = vmatpush.msra.mxu0 %v1837
    %1886 = vmatpush.msra.mxu0 %v1835
    %1887 = vmatpush.msra.mxu0 %v1833
    %1888 = vmatmul.f32.gmra.mxu0 %v1830
    %v1889 = vpop.f32.mrf.mxu0
    %v1890 = vadd.f32 %v1868, %v1889
    %1891 = vmatmul.f32.gmra.mxu0 %v1831
    %v1892 = vpop.f32.mrf.mxu0
    %v1893 = vadd.f32 %v1868, %v1892
    %1894 = vdwg.mxu0
    %1895 = vmatpush.msra.mxu0 %v1864
    %1896 = vmatpush.msra.mxu0 %v1862
    %1897 = vmatpush.msra.mxu0 %v1860
    %1898 = vmatpush.msra.mxu0 %v1858
    %1899 = vmatpush.msra.mxu0 %v1856
    %1900 = vmatpush.msra.mxu0 %v1854
    %1901 = vmatpush.msra.mxu0 %v1852
    %1902 = vmatpush.msra.mxu0 %v1850
    %1903 = vmatpush.msra.mxu0 %v1848
    %1904 = vmatpush.msra.mxu0 %v1846
    %1905 = vmatpush.msra.mxu0 %v1844
    %1906 = vmatpush.msra.mxu0 %v1842
    %1907 = vmatpush.msra.mxu0 %v1840
    %1908 = vmatpush.msra.mxu0 %v1838
    %1909 = vmatpush.msra.mxu0 %v1836
    %1910 = vmatpush.msra.mxu0 %v1834
    %1911 = vmatmul.f32.gmra.mxu0 %v1830
    %v1912 = vpop.f32.mrf.mxu0
    %v1913 = vadd.f32 %v1869, %v1912
    %1914 = vmatmul.f32.gmra.mxu0 %v1831
    %v1915 = vpop.f32.mrf.mxu0
    %v1916 = vadd.f32 %v1869, %v1915
    %1917 = vdwg.mxu0
    %v1918 = vmul.f32 %v1890, 0.5
    %v1919 = vmul.f32 %v1913, 0.5
    %v1920 = vmul.f32 %v1893, 0.5
    %v1921 = vmul.f32 %v1916, 0.5
    %v1922 = vmul.f32 %v1890, 0.044715
    %v1923 = vmul.f32 %v1913, 0.044715
    %v1924 = vmul.f32 %v1893, 0.044715
    %v1925 = vmul.f32 %v1916, 0.044715
    %v1926 = vmul.f32 %v1922, %v1890
    %v1927 = vmul.f32 %v1923, %v1913
    %v1928 = vmul.f32 %v1924, %v1893
    %v1929 = vmul.f32 %v1925, %v1916
    %v1930 = vmul.f32 %v1926, %v1890
    %v1931 = vmul.f32 %v1927, %v1913
    %v1932 = vmul.f32 %v1928, %v1893
    %v1933 = vmul.f32 %v1929, %v1916
    %v1934 = vadd.f32 %v1890, %v1930
    %v1935 = vadd.f32 %v1913, %v1931
    %v1936 = vadd.f32 %v1893, %v1932
    %v1937 = vadd.f32 %v1916, %v1933
    %v1938 = vmul.f32 %v1934, 0.7978846
    %v1939 = vmul.f32 %v1935, 0.7978846
    %v1940 = vmul.f32 %v1936, 0.7978846
    %v1941 = vmul.f32 %v1937, 0.7978846
    %v1942 = vtanh.pop %v1938
    %v1943 = vtanh.pop %v1939
    %v1944 = vtanh.pop %v1940
    %v1945 = vtanh.pop %v1941
    %v1946 = vadd.f32 %v1942, 1.0
    %v1947 = vadd.f32 %v1943, 1.0
    %v1948 = vadd.f32 %v1944, 1.0
    %v1949 = vadd.f32 %v1945, 1.0
    %v1950 = vmul.f32 %v1918, %v1946
    %v1951 = vmul.f32 %v1919, %v1947
    %v1952 = vmul.f32 %v1920, %v1948
    %v1953 = vmul.f32 %v1921, %v1949
    %s1954 = scalar_lea.vmem [#allocation19], 256
    %v1955 = vld [vmem:[%s1954] sm:$0xff]
    %v1956 = vld [vmem:[%s1954 + $0x8] sm:$0xff]
    %v1957 = vld [vmem:[%s1954 + $0x10] sm:$0xff]
    %v1958 = vld [vmem:[%s1954 + $0x18] sm:$0xff]
    %v1959 = vld [vmem:[%s1954 + $0x20] sm:$0xff]
    %v1960 = vld [vmem:[%s1954 + $0x28] sm:$0xff]
    %v1961 = vld [vmem:[%s1954 + $0x30] sm:$0xff]
    %v1962 = vld [vmem:[%s1954 + $0x38] sm:$0xff]
    %v1963 = vld [vmem:[%s1954 + $0x40] sm:$0xff]
    %v1964 = vld [vmem:[%s1954 + $0x48] sm:$0xff]
    %v1965 = vld [vmem:[%s1954 + $0x50] sm:$0xff]
    %v1966 = vld [vmem:[%s1954 + $0x58] sm:$0xff]
    %v1967 = vld [vmem:[%s1954 + $0x60] sm:$0xff]
    %v1968 = vld [vmem:[%s1954 + $0x68] sm:$0xff]
    %v1969 = vld [vmem:[%s1954 + $0x70] sm:$0xff]
    %v1970 = vld [vmem:[%s1954 + $0x78] sm:$0xff]
    %v1971 = vld [vmem:[%s1954 + $0x80] sm:$0xff]
    %v1972 = vld [vmem:[%s1954 + $0x88] sm:$0xff]
    %v1973 = vld [vmem:[%s1954 + $0x90] sm:$0xff]
    %v1974 = vld [vmem:[%s1954 + $0x98] sm:$0xff]
    %v1975 = vld [vmem:[%s1954 + $0xa0] sm:$0xff]
    %v1976 = vld [vmem:[%s1954 + $0xa8] sm:$0xff]
    %v1977 = vld [vmem:[%s1954 + $0xb0] sm:$0xff]
    %v1978 = vld [vmem:[%s1954 + $0xb8] sm:$0xff]
    %v1979 = vld [vmem:[%s1954 + $0xc0] sm:$0xff]
    %v1980 = vld [vmem:[%s1954 + $0xc8] sm:$0xff]
    %v1981 = vld [vmem:[%s1954 + $0xd0] sm:$0xff]
    %v1982 = vld [vmem:[%s1954 + $0xd8] sm:$0xff]
    %v1983 = vld [vmem:[%s1954 + $0xe0] sm:$0xff]
    %v1984 = vld [vmem:[%s1954 + $0xe8] sm:$0xff]
    %v1985 = vld [vmem:[%s1954 + $0xf0] sm:$0xff]
    %v1986 = vld [vmem:[%s1954 + $0xf8] sm:$0xff]
    %1987 = vmatpush.msra.mxu0 %v1970
    %1988 = vmatpush.msra.mxu0 %v1969
    %1989 = vmatpush.msra.mxu0 %v1968
    %1990 = vmatpush.msra.mxu0 %v1967
    %1991 = vmatpush.msra.mxu0 %v1966
    %1992 = vmatpush.msra.mxu0 %v1965
    %1993 = vmatpush.msra.mxu0 %v1964
    %1994 = vmatpush.msra.mxu0 %v1963
    %1995 = vmatpush.msra.mxu0 %v1962
    %1996 = vmatpush.msra.mxu0 %v1961
    %1997 = vmatpush.msra.mxu0 %v1960
    %1998 = vmatpush.msra.mxu0 %v1959
    %1999 = vmatpush.msra.mxu0 %v1958
    %2000 = vmatpush.msra.mxu0 %v1957
    %2001 = vmatpush.msra.mxu0 %v1956
    %2002 = vmatpush.msra.mxu0 %v1955
    %2003 = vmatmul.f32.gmra.mxu0 %v1950
    %v2004 = vpop.f32.mrf.mxu0
    %v2005 = vadd.f32 0.0, %v2004
    %2006 = vmatmul.f32.gmra.mxu0 %v1952
    %v2007 = vpop.f32.mrf.mxu0
    %v2008 = vadd.f32 0.0, %v2007
    %2009 = vdwg.mxu0
    %2010 = vmatpush.msra.mxu0 %v1986
    %2011 = vmatpush.msra.mxu0 %v1985
    %2012 = vmatpush.msra.mxu0 %v1984
    %2013 = vmatpush.msra.mxu0 %v1983
    %2014 = vmatpush.msra.mxu0 %v1982
    %2015 = vmatpush.msra.mxu0 %v1981
    %2016 = vmatpush.msra.mxu0 %v1980
    %2017 = vmatpush.msra.mxu0 %v1979
    %2018 = vmatpush.msra.mxu0 %v1978
    %2019 = vmatpush.msra.mxu0 %v1977
    %2020 = vmatpush.msra.mxu0 %v1976
    %2021 = vmatpush.msra.mxu0 %v1975
    %2022 = vmatpush.msra.mxu0 %v1974
    %2023 = vmatpush.msra.mxu0 %v1973
    %2024 = vmatpush.msra.mxu0 %v1972
    %2025 = vmatpush.msra.mxu0 %v1971
    %2026 = vmatmul.f32.gmra.mxu0 %v1951
    %v2027 = vpop.f32.mrf.mxu0
    %v2028 = vadd.f32 %v2005, %v2027
    %2029 = vmatmul.f32.gmra.mxu0 %v1953
    %v2030 = vpop.f32.mrf.mxu0
    %v2031 = vadd.f32 %v2008, %v2030
    %2032 = vdwg.mxu0
    %v2033 = vadd.f32 %v1782, %v2028
    %v2034 = vadd.f32 %v1783, %v2031
    %s2035 = scalar_lea.vmem [#allocation21], 1
    %v2036 = vld [vmem:[%s2035] sm:$0x1]
    %v2038 = vperm.slane %v2036, 0
    %v2040 = vadd.f32 %v2033, %v2038
    %v2041 = vadd.f32 %v2034, %v2038
    %v2042 = vld [vmem:[%s15] sm:$0x3]
    %2043 = vadd.xlane.f32.xlu0 %v2040
    %v2044 = vpop.xlane.xlu0 %2043
    %v2045 = vsel %vm353, %v2041, 0.0
    %2046 = vadd.xlane.f32.xlu0 %v2045
    %v2047 = vpop.xlane.xlu0 %2046
    %v2048 = vmul.f32 %v2044, %v363
    %v2049 = vmul.f32 %v2047, %v363
    %v2050 = vsub.f32 %v2040, %v2048
    %v2051 = vsub.f32 %v2041, %v2049
    %v2052 = vmul.f32 %v2050, %v2050
    %v2053 = vmul.f32 %v2051, %v2051
    %2054 = vadd.xlane.f32.xlu0 %v2052
    %v2055 = vpop.xlane.xlu0 %2054
    %v2056 = vsel %vm353, %v2053, 0.0
    %2057 = vadd.xlane.f32.xlu0 %v2056
    %v2058 = vpop.xlane.xlu0 %2057
    %v2059 = vmul.f32 %v2055, %v363
    %v2060 = vmul.f32 %v2058, %v363
    %v2061 = vadd.f32 %v2059, 1e-06
    %v2062 = vadd.f32 %v2060, 1e-06
    %v2063 = vrsqrt.pop %v2061
    %v2064 = vmul.f32 %v2063, %v2061
    %v2065 = vmul.f32 %v2064, %v2063
    %v2066 = vmul.f32 0.5, %v2065
    %v2067 = vsub.f32 1.5, %v2066
    %v2068 = vmul.f32 %v2063, %v2067
    %vm2069 = vweird.f32 %v2061
    %vm2070 = vweird.f32 %v2063
    %vm2071 = vmor %vm2069, %vm2070
    %v2072 = vsel %vm2071, %v2063, %v2068
    %v2073 = vrsqrt.pop %v2062
    %v2074 = vmul.f32 %v2073, %v2062
    %v2075 = vmul.f32 %v2074, %v2073
    %v2076 = vmul.f32 0.5, %v2075
    %v2077 = vsub.f32 1.5, %v2076
    %v2078 = vmul.f32 %v2073, %v2077
    %vm2079 = vweird.f32 %v2062
    %vm2080 = vweird.f32 %v2073
    %vm2081 = vmor %vm2079, %vm2080
    %v2082 = vsel %vm2081, %v2073, %v2078
    %v2083 = vmul.f32 %v2050, %v2072
    %v2084 = vmul.f32 %v2051, %v2082
    %v2085 = vperm.slane %v2042, 0
    %v2086 = vmul.f32 %v2083, %v2085
    %v2087 = vmul.f32 %v2084, %v2085
    %v2088 = vperm.slane %v2042, 1
    %v2089 = vadd.f32 %v2086, %v2088
    %v2090 = vadd.f32 %v2087, %v2088
    %v2091 = vld [vmem:[#allocation10] sm:$0x3]
    %v2093 = vsel %vm567, %v2091, 0
    %v2096 = vsel %vm353, %v2090, 0
    %2098 = vmatpush.msra.mxu0 0.0
    %2099 = vmatpush.msra.mxu0 0.0
    %2100 = vmatpush.msra.mxu0 0.0
    %2101 = vmatpush.msra.mxu0 0.0
    %2102 = vmatpush.msra.mxu0 0.0
    %2103 = vmatpush.msra.mxu0 0.0
    %2104 = vmatpush.msra.mxu0 0.0
    %2105 = vmatpush.msra.mxu0 0.0
    %2106 = vmatpush.msra.mxu0 0.0
    %2107 = vmatpush.msra.mxu0 0.0
    %2108 = vmatpush.msra.mxu0 0.0
    %2109 = vmatpush.msra.mxu0 0.0
    %2110 = vmatpush.msra.mxu0 0.0
    %2111 = vmatpush.msra.mxu0 0.0
    %2112 = vmatpush.msra.mxu0 %v2096
    %2113 = vmatpush.msra.mxu0 %v2089
    %2114 = vmatmul.f32.gmra.mxu0 %v2093
    %v2115 = vpop.f32.mrf.mxu0
    %v2116 = vadd.f32 0.0, %v2115
    %2117 = vdwg.mxu0
    %v2118 = vsel %vm353, %v2116, 0.0
    %2119 = vadd.xlane.f32.xlu0 %v2118
    %v2120 = vpop.xlane.xlu0 %2119
    %v2121 = vmul.f32 %v2120, %v363
    %v2122 = vsub.f32 %v2116, %v2121
    %v2123 = vmul.f32 %v2122, %v2122
    %v2124 = vsel %vm353, %v2123, 0.0
    %2125 = vadd.xlane.f32.xlu0 %v2124
    %v2126 = vpop.xlane.xlu0 %2125
    %v2127 = vmul.f32 %v2126, %v363
    %v2128 = vadd.f32 %v2127, 1e-05
    %v2129 = vrsqrt.pop %v2128
    %v2130 = vmul.f32 %v2129, %v2128
    %v2131 = vmul.f32 %v2130, %v2129
    %v2132 = vmul.f32 0.5, %v2131
    %v2133 = vsub.f32 1.5, %v2132
    %v2134 = vmul.f32 %v2129, %v2133
    %vm2135 = vweird.f32 %v2128
    %vm2136 = vweird.f32 %v2129
    %vm2137 = vmor %vm2135, %vm2136
    %v2138 = vsel %vm2137, %v2129, %v2134
    %v2139 = vmul.f32 %v2122, %v2138
    %v2140 = vld [vmem:[%s16] sm:$0xff]
    %v2141 = vld [vmem:[%s16 + $0x8] sm:$0xff]
    %v2142 = vld [vmem:[%s16 + $0x10] sm:$0xff]
    %v2143 = vld [vmem:[%s16 + $0x18] sm:$0xff]
    %v2144 = vld [vmem:[%s16 + $0x20] sm:$0xff]
    %v2145 = vld [vmem:[%s16 + $0x28] sm:$0xff]
    %v2146 = vld [vmem:[%s16 + $0x30] sm:$0xff]
    %v2147 = vld [vmem:[%s16 + $0x38] sm:$0xff]
    %v2148 = vld [vmem:[%s16 + $0x40] sm:$0xff]
    %v2149 = vld [vmem:[%s16 + $0x48] sm:$0xff]
    %v2150 = vld [vmem:[%s16 + $0x50] sm:$0xff]
    %v2151 = vld [vmem:[%s16 + $0x58] sm:$0xff]
    %v2152 = vld [vmem:[%s16 + $0x60] sm:$0xff]
    %v2153 = vld [vmem:[%s16 + $0x68] sm:$0xff]
    %v2154 = vld [vmem:[%s16 + $0x70] sm:$0xff]
    %v2155 = vld [vmem:[%s16 + $0x78] sm:$0xff]
    %v2156 = vld [vmem:[%s16 + $0x80] sm:$0xff]
    %v2157 = vld [vmem:[%s16 + $0x88] sm:$0xff]
    %v2158 = vld [vmem:[%s16 + $0x90] sm:$0xff]
    %v2159 = vld [vmem:[%s16 + $0x98] sm:$0xff]
    %v2160 = vld [vmem:[%s16 + $0xa0] sm:$0xff]
    %v2161 = vld [vmem:[%s16 + $0xa8] sm:$0xff]
    %v2162 = vld [vmem:[%s16 + $0xb0] sm:$0xff]
    %v2163 = vld [vmem:[%s16 + $0xb8] sm:$0xff]
    %v2164 = vld [vmem:[%s16 + $0xc0] sm:$0xff]
    %v2165 = vld [vmem:[%s16 + $0xc8] sm:$0xff]
    %v2166 = vld [vmem:[%s16 + $0xd0] sm:$0xff]
    %v2167 = vld [vmem:[%s16 + $0xd8] sm:$0xff]
    %v2168 = vld [vmem:[%s16 + $0xe0] sm:$0xff]
    %v2169 = vld [vmem:[%s16 + $0xe8] sm:$0xff]
    %v2170 = vld [vmem:[%s16 + $0xf0] sm:$0xff]
    %v2171 = vld [vmem:[%s16 + $0xf8] sm:$0xff]
    %v2172 = vld [vmem:[%s16 + $0x100] sm:$0xff]
    %v2173 = vld [vmem:[%s16 + $0x108] sm:$0xff]
    %v2174 = vld [vmem:[%s16 + $0x110] sm:$0xff]
    %v2175 = vld [vmem:[%s16 + $0x118] sm:$0xff]
    %v2176 = vld [vmem:[%s16 + $0x120] sm:$0xff]
    %v2177 = vld [vmem:[%s16 + $0x128] sm:$0xff]
    %v2178 = vld [vmem:[%s16 + $0x130] sm:$0xff]
    %v2179 = vld [vmem:[%s16 + $0x138] sm:$0xff]
    %v2180 = vld [vmem:[%s16 + $0x140] sm:$0xff]
    %v2181 = vld [vmem:[%s16 + $0x148] sm:$0xff]
    %v2182 = vld [vmem:[%s16 + $0x150] sm:$0xff]
    %v2183 = vld [vmem:[%s16 + $0x158] sm:$0xff]
    %v2184 = vld [vmem:[%s16 + $0x160] sm:$0xff]
    %v2185 = vld [vmem:[%s16 + $0x168] sm:$0xff]
    %v2186 = vld [vmem:[%s16 + $0x170] sm:$0xff]
    %v2187 = vld [vmem:[%s16 + $0x178] sm:$0xff]
    %v2188 = vld [vmem:[%s17] sm:$0x7]
    %v2190 = vperm.slane %v2188, 0
    %v2191 = vperm.slane %v2188, 1
    %v2192 = vperm.slane %v2188, 2
    %2196 = vmatpush.msra.mxu0 %v2185
    %2197 = vmatpush.msra.mxu0 %v2182
    %2198 = vmatpush.msra.mxu0 %v2179
    %2199 = vmatpush.msra.mxu0 %v2176
    %2200 = vmatpush.msra.mxu0 %v2173
    %2201 = vmatpush.msra.mxu0 %v2170
    %2202 = vmatpush.msra.mxu0 %v2167
    %2203 = vmatpush.msra.mxu0 %v2164
    %2204 = vmatpush.msra.mxu0 %v2161
    %2205 = vmatpush.msra.mxu0 %v2158
    %2206 = vmatpush.msra.mxu0 %v2155
    %2207 = vmatpush.msra.mxu0 %v2152
    %2208 = vmatpush.msra.mxu0 %v2149
    %2209 = vmatpush.msra.mxu0 %v2146
    %2210 = vmatpush.msra.mxu0 %v2143
    %2211 = vmatpush.msra.mxu0 %v2140
    %2212 = vmatmul.f32.gmra.mxu0 %v2139
    %v2213 = vpop.f32.mrf.mxu0
    %v2214 = vadd.f32 %v2190, %v2213
    %2215 = vdwg.mxu0
    %2216 = vmatpush.msra.mxu0 %v2186
    %2217 = vmatpush.msra.mxu0 %v2183
    %2218 = vmatpush.msra.mxu0 %v2180
    %2219 = vmatpush.msra.mxu0 %v2177
    %2220 = vmatpush.msra.mxu0 %v2174
    %2221 = vmatpush.msra.mxu0 %v2171
    %2222 = vmatpush.msra.mxu0 %v2168
    %2223 = vmatpush.msra.mxu0 %v2165
    %2224 = vmatpush.msra.mxu0 %v2162
    %2225 = vmatpush.msra.mxu0 %v2159
    %2226 = vmatpush.msra.mxu0 %v2156
    %2227 = vmatpush.msra.mxu0 %v2153
    %2228 = vmatpush.msra.mxu0 %v2150
    %2229 = vmatpush.msra.mxu0 %v2147
    %2230 = vmatpush.msra.mxu0 %v2144
    %2231 = vmatpush.msra.mxu0 %v2141
    %2232 = vmatmul.f32.gmra.mxu0 %v2139
    %v2233 = vpop.f32.mrf.mxu0
    %v2234 = vadd.f32 %v2191, %v2233
    %2235 = vdwg.mxu0
    %2236 = vmatpush.msra.mxu0 %v2187
    %2237 = vmatpush.msra.mxu0 %v2184
    %2238 = vmatpush.msra.mxu0 %v2181
    %2239 = vmatpush.msra.mxu0 %v2178
    %2240 = vmatpush.msra.mxu0 %v2175
    %2241 = vmatpush.msra.mxu0 %v2172
    %2242 = vmatpush.msra.mxu0 %v2169
    %2243 = vmatpush.msra.mxu0 %v2166
    %2244 = vmatpush.msra.mxu0 %v2163
    %2245 = vmatpush.msra.mxu0 %v2160
    %2246 = vmatpush.msra.mxu0 %v2157
    %2247 = vmatpush.msra.mxu0 %v2154
    %2248 = vmatpush.msra.mxu0 %v2151
    %2249 = vmatpush.msra.mxu0 %v2148
    %2250 = vmatpush.msra.mxu0 %v2145
    %2251 = vmatpush.msra.mxu0 %v2142
    %2252 = vmatmul.f32.gmra.mxu0 %v2139
    %v2253 = vpop.f32.mrf.mxu0
    %v2254 = vadd.f32 %v2192, %v2253
    %2255 = vdwg.mxu0
    %v2256 = vmax.f32 %v2214, 0.0
    %v2257 = vmax.f32 %v2234, 0.0
    %v2258 = vmax.f32 %v2254, 0.0
    %v2259 = vld [vmem:[%s18] sm:$0xff]
    %v2260 = vld [vmem:[%s18 + $0x8] sm:$0xff]
    %v2261 = vld [vmem:[%s18 + $0x10] sm:$0xff]
    %v2262 = vld [vmem:[%s18 + $0x18] sm:$0xff]
    %v2263 = vld [vmem:[%s18 + $0x20] sm:$0xff]
    %v2264 = vld [vmem:[%s18 + $0x28] sm:$0xff]
    %v2265 = vld [vmem:[%s18 + $0x30] sm:$0xff]
    %v2266 = vld [vmem:[%s18 + $0x38] sm:$0xff]
    %v2267 = vld [vmem:[%s18 + $0x40] sm:$0xff]
    %v2268 = vld [vmem:[%s18 + $0x48] sm:$0xff]
    %v2269 = vld [vmem:[%s18 + $0x50] sm:$0xff]
    %v2270 = vld [vmem:[%s18 + $0x58] sm:$0xff]
    %v2271 = vld [vmem:[%s18 + $0x60] sm:$0xff]
    %v2272 = vld [vmem:[%s18 + $0x68] sm:$0xff]
    %v2273 = vld [vmem:[%s18 + $0x70] sm:$0xff]
    %v2274 = vld [vmem:[%s18 + $0x78] sm:$0xff]
    %v2275 = vld [vmem:[%s19] sm:$0x1]
    %v2277 = vperm.slane %v2275, 0
    %2279 = vmatpush.msra.mxu0 %v2274
    %2280 = vmatpush.msra.mxu0 %v2273
    %2281 = vmatpush.msra.mxu0 %v2272
    %2282 = vmatpush.msra.mxu0 %v2271
    %2283 = vmatpush.msra.mxu0 %v2270
    %2284 = vmatpush.msra.mxu0 %v2269
    %2285 = vmatpush.msra.mxu0 %v2268
    %2286 = vmatpush.msra.mxu0 %v2267
    %2287 = vmatpush.msra.mxu0 %v2266
    %2288 = vmatpush.msra.mxu0 %v2265
    %2289 = vmatpush.msra.mxu0 %v2264
    %2290 = vmatpush.msra.mxu0 %v2263
    %2291 = vmatpush.msra.mxu0 %v2262
    %2292 = vmatpush.msra.mxu0 %v2261
    %2293 = vmatpush.msra.mxu0 %v2260
    %2294 = vmatpush.msra.mxu0 %v2259
    %2295 = vmatmul.f32.gmra.mxu0 %v2256
    %v2296 = vpop.f32.mrf.mxu0
    %v2297 = vadd.f32 %v2277, %v2296
    %2298 = vdwg.mxu0
    %vm2299 = vcmask 9216
    %v2300 = vsel %vm2299, %v2297, -inf
    %2301 = vmax.xlane.f32.xlu0 %v2300
    %v2302 = vpop.xlane.xlu0 %2301
    %v2303 = vsub.f32 %v2297, %v2302
    %v2304 = vmul.f32 %v2303, 1.442695
    %v2305 = vpow.pop %v2304
    %v2306 = vsel %vm2299, %v2305, 0.0
    %2307 = vadd.xlane.f32.xlu0 %v2306
    %v2308 = vpop.xlane.xlu0 %2307
    %v2309 = vrcp.pop %v2308
    %v2310 = vmul.f32 %v2305, %v2309
    %2311 = vst.msk [vmem:[%s20] sm:$0x3] %vm2299, %v2310
    %s2312 = scalar_lea.vmem %s18, 128
    %v2313 = vld [vmem:[%s2312] sm:$0xff]
    %v2314 = vld [vmem:[%s2312 + $0x8] sm:$0xff]
    %v2315 = vld [vmem:[%s2312 + $0x10] sm:$0xff]
    %v2316 = vld [vmem:[%s2312 + $0x18] sm:$0xff]
    %v2317 = vld [vmem:[%s2312 + $0x20] sm:$0xff]
    %v2318 = vld [vmem:[%s2312 + $0x28] sm:$0xff]
    %v2319 = vld [vmem:[%s2312 + $0x30] sm:$0xff]
    %v2320 = vld [vmem:[%s2312 + $0x38] sm:$0xff]
    %v2321 = vld [vmem:[%s2312 + $0x40] sm:$0xff]
    %v2322 = vld [vmem:[%s2312 + $0x48] sm:$0xff]
    %v2323 = vld [vmem:[%s2312 + $0x50] sm:$0xff]
    %v2324 = vld [vmem:[%s2312 + $0x58] sm:$0xff]
    %v2325 = vld [vmem:[%s2312 + $0x60] sm:$0xff]
    %v2326 = vld [vmem:[%s2312 + $0x68] sm:$0xff]
    %v2327 = vld [vmem:[%s2312 + $0x70] sm:$0xff]
    %v2328 = vld [vmem:[%s2312 + $0x78] sm:$0xff]
    %s2329 = scalar_lea.vmem %s19, 1
    %v2330 = vld [vmem:[%s2329] sm:$0x1]
    %v2332 = vperm.slane %v2330, 0
    %2334 = vmatpush.msra.mxu0 %v2328
    %2335 = vmatpush.msra.mxu0 %v2327
    %2336 = vmatpush.msra.mxu0 %v2326
    %2337 = vmatpush.msra.mxu0 %v2325
    %2338 = vmatpush.msra.mxu0 %v2324
    %2339 = vmatpush.msra.mxu0 %v2323
    %2340 = vmatpush.msra.mxu0 %v2322
    %2341 = vmatpush.msra.mxu0 %v2321
    %2342 = vmatpush.msra.mxu0 %v2320
    %2343 = vmatpush.msra.mxu0 %v2319
    %2344 = vmatpush.msra.mxu0 %v2318
    %2345 = vmatpush.msra.mxu0 %v2317
    %2346 = vmatpush.msra.mxu0 %v2316
    %2347 = vmatpush.msra.mxu0 %v2315
    %2348 = vmatpush.msra.mxu0 %v2314
    %2349 = vmatpush.msra.mxu0 %v2313
    %2350 = vmatmul.f32.gmra.mxu0 %v2257
    %v2351 = vpop.f32.mrf.mxu0
    %v2352 = vadd.f32 %v2332, %v2351
    %2353 = vdwg.mxu0
    %v2354 = vsel %vm2299, %v2352, -inf
    %2355 = vmax.xlane.f32.xlu0 %v2354
    %v2356 = vpop.xlane.xlu0 %2355
    %v2357 = vsub.f32 %v2352, %v2356
    %v2358 = vmul.f32 %v2357, 1.442695
    %v2359 = vpow.pop %v2358
    %v2360 = vsel %vm2299, %v2359, 0.0
    %2361 = vadd.xlane.f32.xlu0 %v2360
    %v2362 = vpop.xlane.xlu0 %2361
    %v2363 = vrcp.pop %v2362
    %v2364 = vmul.f32 %v2359, %v2363
    %s2365 = scalar_lea.vmem %s20, 2
    %2366 = vst.msk [vmem:[%s2365] sm:$0x3] %vm2299, %v2364
    %s2367 = scalar_lea.vmem %s18, 256
    %v2368 = vld [vmem:[%s2367] sm:$0xff]
    %v2369 = vld [vmem:[%s2367 + $0x8] sm:$0xff]
    %v2370 = vld [vmem:[%s2367 + $0x10] sm:$0xff]
    %v2371 = vld [vmem:[%s2367 + $0x18] sm:$0xff]
    %v2372 = vld [vmem:[%s2367 + $0x20] sm:$0xff]
    %v2373 = vld [vmem:[%s2367 + $0x28] sm:$0xff]
    %v2374 = vld [vmem:[%s2367 + $0x30] sm:$0xff]
    %v2375 = vld [vmem:[%s2367 + $0x38] sm:$0xff]
    %v2376 = vld [vmem:[%s2367 + $0x40] sm:$0xff]
    %v2377 = vld [vmem:[%s2367 + $0x48] sm:$0xff]
    %v2378 = vld [vmem:[%s2367 + $0x50] sm:$0xff]
    %v2379 = vld [vmem:[%s2367 + $0x58] sm:$0xff]
    %v2380 = vld [vmem:[%s2367 + $0x60] sm:$0xff]
    %v2381 = vld [vmem:[%s2367 + $0x68] sm:$0xff]
    %v2382 = vld [vmem:[%s2367 + $0x70] sm:$0xff]
    %v2383 = vld [vmem:[%s2367 + $0x78] sm:$0xff]
    %s2384 = scalar_lea.vmem %s19, 2
    %v2385 = vld [vmem:[%s2384] sm:$0x1]
    %v2387 = vperm.slane %v2385, 0
    %2389 = vmatpush.msra.mxu0 %v2383
    %2390 = vmatpush.msra.mxu0 %v2382
    %2391 = vmatpush.msra.mxu0 %v2381
    %2392 = vmatpush.msra.mxu0 %v2380
    %2393 = vmatpush.msra.mxu0 %v2379
    %2394 = vmatpush.msra.mxu0 %v2378
    %2395 = vmatpush.msra.mxu0 %v2377
    %2396 = vmatpush.msra.mxu0 %v2376
    %2397 = vmatpush.msra.mxu0 %v2375
    %2398 = vmatpush.msra.mxu0 %v2374
    %2399 = vmatpush.msra.mxu0 %v2373
    %2400 = vmatpush.msra.mxu0 %v2372
    %2401 = vmatpush.msra.mxu0 %v2371
    %2402 = vmatpush.msra.mxu0 %v2370
    %2403 = vmatpush.msra.mxu0 %v2369
    %2404 = vmatpush.msra.mxu0 %v2368
    %2405 = vmatmul.f32.gmra.mxu0 %v2258
    %v2406 = vpop.f32.mrf.mxu0
    %v2407 = vadd.f32 %v2387, %v2406
    %2408 = vdwg.mxu0
    %v2409 = vsel %vm2299, %v2407, -inf
    %2410 = vmax.xlane.f32.xlu0 %v2409
    %v2411 = vpop.xlane.xlu0 %2410
    %v2412 = vsub.f32 %v2407, %v2411
    %v2413 = vmul.f32 %v2412, 1.442695
    %v2414 = vpow.pop %v2413
    %v2415 = vsel %vm2299, %v2414, 0.0
    %2416 = vadd.xlane.f32.xlu0 %v2415
    %v2417 = vpop.xlane.xlu0 %2416
    %v2418 = vrcp.pop %v2417
    %v2419 = vmul.f32 %v2414, %v2418
    %s2420 = scalar_lea.vmem %s20, 4
    %2421 = vst.msk [vmem:[%s2420] sm:$0x3] %vm2299, %v2419
    // Predicated region
    $region134: #{tpu_custom_call.1} parent=1 // pred_check
      _
    $region135: #{tpu_custom_call.1} parent=1 // pred_check_branch
      %2423 = sbr.rel (0) target = $region137
    $region136: #{tpu_custom_call.1} parent=1 // pred_region
      _
    $region137: #{tpu_custom_call.1} parent=1 // pred_fallthru
      _
    // Predicated region
    $region138: #{tpu_custom_call.1} parent=1 // pred_check
      _
    $region139: #{tpu_custom_call.1} parent=1 // pred_check_branch
      %2425 = sbr.rel (0) target = $region141
    $region140: #{tpu_custom_call.1} parent=1 // pred_region
      _
    $region141: #{tpu_custom_call.1} parent=1 // pred_fallthru
      _
    %2426 = vsyncpa [#allocation3], 1
    %2427 = vsyncpa [#allocation5], 1
    %2428 = vsyncpa [#allocation8], 1
    %2429 = vsyncpa [#allocation11], 1
    %2430 = vsyncpa [#allocation14], 1
    %2431 = vsyncpa [#allocation17], 1
    %2432 = vsyncpa [#allocation20], 1

</llo_original>
